<compile_context>
chip_gen: v5e
topology: v5e:2x2
jax: 0.10.0
libtpu: 0.0.40
codegen_flags: <defaults>
</compile_context>

<pallas_src>
import math

import jax
import jax.numpy as jnp
from jax.experimental import pallas as pl
from jax.experimental.pallas import tpu as pltpu


def _build_kernel(*, bi, N, D, P, K, W0, H, O, LW,
                  r_first, r_w1, r_b1, r_w2, r_b2):
    """Kernel for one grid step processing `bi` independent instances."""
    DD = D * D
    NM = N * N          # M == N (enforced by the wrapper)

    def kernel(xy_ref, b0bw_ref, repxy_ref, const_ref, out_ref):
        # ---- Kron features: ONE replication matmul + one VPU outer product +
        #      ONE contraction against the permuted `first` --------------------
        xy = xy_ref[...].reshape(bi * N, 2 * D)                     # (bi*N, 2D)
        cols = jnp.dot(xy, repxy_ref[...],
                       preferred_element_type=jnp.float32)          # (bi*N, 2*DD)
        # lanes [0,DD):  xcols[b,n,d*D+e] = x[b,n,d]
        # lanes [DD,..): ycols[b,m,d*D+e] = y[b,m,e]
        xcols = cols[:, :DD].reshape(bi, N, DD)
        ycols = cols[:, DD:].reshape(bi, N, DD)
        # z[b, n*M+m, d*D+e] = x[b,n,d] * y[b,m,e]
        z = (xcols[:, :, None, :] * ycols[:, None, :, :]).reshape(bi * NM, DD)
        first_ff = const_ref[r_first:r_first + DD, :W0]              # (DD, W0)
        xf = jnp.dot(z, first_ff, preferred_element_type=jnp.float32)
        xf = xf.reshape(bi, NM, W0)                                  # (bi, N*M, W0)

        # ---- Indexing + blend: one-hot selection matmul (batched) -------------
        b0bw = b0bw_ref[...]                                         # (bi, P, 2K)
        b0 = b0bw[..., :K].astype(jnp.int32)   # indices (exact in f32)
        bw = b0bw[..., K:]
        col_ids = jax.lax.broadcasted_iota(jnp.int32, (bi, P, NM), 2)
        sel = jnp.zeros((bi, P, NM), jnp.float32)
        for k in range(K):                     # K tiny & static: K vectorized adds
            sel = sel + jnp.where(col_ids == b0[:, :, k:k + 1],
                                  bw[:, :, k:k + 1], 0.0)
        # blend[b,p,w] = sum_k bw[b,p,k] * xf[b, b0[b,p,k], w]
        blend = jnp.einsum("bpr,brw->bpw", sel, xf,
                           preferred_element_type=jnp.float32)       # (bi, P, W0)

        # ---- MLP: ReLU -> Linear -> ReLU -> Linear -> Sigmoid -----------------
        h = jnp.maximum(blend.reshape(bi * P, W0), 0.0)
        w1 = const_ref[r_w1:r_w1 + W0, :H]
        b1 = const_ref[r_b1:r_b1 + 1, :H]
        h = jnp.maximum(jnp.dot(h, w1, preferred_element_type=jnp.float32) + b1,
                        0.0)
        w2 = const_ref[r_w2:r_w2 + H, :LW]     # columns >= O are zero-padded
        b2 = const_ref[r_b2:r_b2 + 1, :LW]
        o = jnp.dot(h, w2, preferred_element_type=jnp.float32) + b2
        # Numerically-stable sigmoid (exp on the EUP, no inf intermediate).
        e = jnp.exp(-jnp.abs(o))
        sig = jnp.where(o >= 0.0, 1.0 / (1.0 + e), e / (1.0 + e))
        out_ref[...] = sig[:, :O]                                    # (bi*P, O)

    return kernel


def make_ibk_forward(first, W1, b1, W2, b2, *, block_insts=16):
    """One-time parameter packing; returns a jitted batched forward.

    Weights use the torch nn.Linear (out_features, in_features) layout:
      first: (W0, D, D), W1: (H, W0), b1: (H,), W2: (O, H), b2: (O,)
    Returned forward(x, B0, BW, y=None):
      x, y: (B, N, D) (or (N, D)),  B0, BW: (B, P, K)  ->  (B, P, O)
    B0 entries must lie in [0, N*N); out-of-range entries contribute 0
    (silently) instead of raising as torch indexing would.
    """
    first = jnp.asarray(first, jnp.float32)
    W1 = jnp.asarray(W1, jnp.float32)
    b1 = jnp.asarray(b1, jnp.float32)
    W2 = jnp.asarray(W2, jnp.float32)
    b2 = jnp.asarray(b2, jnp.float32)
    W0, D, _ = first.shape
    H = W1.shape[0]
    O = W2.shape[0]
    DD = D * D
    LW = max(W0, H)                    # lane width of the packed constant slab

    # firstFF[d*D+e, w] = first[w, d, e]  (so  z @ firstFF  contracts both dims)
    first_ff = jnp.transpose(first, (1, 2, 0)).reshape(DD, W0)

    # Block-diagonal replication matrix: (x|y) @ repxy gives
    #   lanes [0,DD)   : xcols[n, d*D+e] = x[n, d]
    #   lanes [DD,2DD) : ycols[m, d*D+e] = y[m, e]
    repx = jnp.kron(jnp.eye(D, dtype=jnp.float32), jnp.ones((1, D), jnp.float32))
    repy = jnp.kron(jnp.ones((1, D), jnp.float32), jnp.eye(D, dtype=jnp.float32))
    zeros = jnp.zeros((D, DD), jnp.float32)
    repxy = jnp.concatenate(
        [jnp.concatenate([repx, zeros], axis=1),
         jnp.concatenate([zeros, repy], axis=1)], axis=0)            # (2D, 2*DD)

    def _rup8(r):
        return (r + 7) // 8 * 8

    def _pad(a, rows, cols):
        return jnp.pad(a, ((0, rows - a.shape[0]), (0, cols - a.shape[1])))

    # Pack every small weight into one (rows, LW) slab with 8-sublane-aligned
    # static row offsets -> a single VMEM-resident constant operand.
    pieces = [("first", first_ff),        # (DD, W0)
              ("w1", W1.T),               # (W0, H)
              ("b1", b1.reshape(1, H)),
              ("w2", W2.T),               # (H, O) -> zero-padded cols to LW
              ("b2", b2.reshape(1, O))]
    offs, rows, r = {}, [], 0
    for name, a in pieces:
        offs[name] = r
        pr = _rup8(a.shape[0])
        rows.append(_pad(a, pr, LW))
        r += pr
    const_slab = jnp.concatenate(rows, axis=0)                       # (r, LW)

    @jax.jit
    def forward(x, B0, BW, y=None):
        if y is None:
            y = x
        x = jnp.asarray(x, jnp.float32)
        y = jnp.asarray(y, jnp.float32)
        B0a = jnp.asarray(B0)
        BWa = jnp.asarray(BW, jnp.float32)
        squeeze = x.ndim == 2
        if squeeze:
            x, y, B0a, BWa = x[None], y[None], B0a[None], BWa[None]
        assert y.shape == x.shape, "kernel requires y.shape == x.shape (M == N)"
        B, N, _ = x.shape
        _, P, K = B0a.shape

        # Largest instance-block <= block_insts that divides B.  Per-step VMEM is
        # ~1-2 MiB at bi=16, far under the scoped limit on v5e/v6e/v7x.
        bi = max(d for d in range(1, min(B, block_insts) + 1) if B % d == 0)
        assert (bi * P) % 8 == 0 or bi == B, "instance block breaks (8,128) tiling"

        kernel = _build_kernel(bi=bi, N=N, D=D, P=P, K=K, W0=W0, H=H, O=O, LW=LW,
                               r_first=offs["first"], r_w1=offs["w1"],
                               r_b1=offs["b1"], r_w2=offs["w2"], r_b2=offs["b2"])

        # Merge streamed operands so each grid step issues few, regular DMAs.
        xy = jnp.concatenate([x, y], axis=-1)                        # (B, N, 2D)
        b0bw = jnp.concatenate([B0a.astype(jnp.float32), BWa], axis=-1)  # (B,P,2K)

        out = pl.pallas_call(
            kernel,
            out_shape=jax.ShapeDtypeStruct((B * P, O), jnp.float32),
            grid=(B // bi,),
            in_specs=[
                pl.BlockSpec((bi, N, 2 * D), lambda i: (i, 0, 0)),   # streamed
                pl.BlockSpec((bi, P, 2 * K), lambda i: (i, 0, 0)),   # streamed
                pl.BlockSpec(repxy.shape, lambda i: (0, 0)),         # resident
                pl.BlockSpec(const_slab.shape, lambda i: (0, 0)),    # resident
            ],
            out_specs=pl.BlockSpec((bi * P, O), lambda i: (i, 0)),
            compiler_params=pltpu.CompilerParams(
                dimension_semantics=("parallel",)),
        )(xy, b0bw, repxy, const_slab)

        out = out.reshape(B, P, O)
        return out[0] if squeeze else out

    return forward


def reference_forward(params, B0, BW, x, y=None):
    """Pure-JAX mirror of the torch forward (single instance), for checking."""
    if y is None:
        y = x
    first, W1, b1, W2, b2 = params
    r1 = jnp.einsum("nd,wde->wne", x, first)          # x @ first
    r2 = jnp.einsum("wne,me->wnm", r1, y)             # ... @ y.T
    xf = r2.reshape(r2.shape[0], -1).T                # flatten(1,2).transpose(0,1)
    blend = (xf[B0] * BW[..., None]).sum(axis=1)      # (x[B[0]] * B[1][...,None]).sum(1)
    h = jnp.maximum(blend, 0.0)
    h = jnp.maximum(h @ W1.T + b1, 0.0)
    o = h @ W2.T + b2
    return jax.nn.sigmoid(o)


if __name__ == "__main__":
    # Small shapes consistent with the module.
    D, O = 8, 4            # input_dim, output_dim
    W0, H = 32, 32         # width0, width (depth = 2)
    N = 8                  # points per instance (y = x  ->  N*M = 64 kron rows)
    P, K = 16, 4           # B[0]/B[1]: P blended outputs, K indexed rows each
    B = 32                 # instances batched through one call (grid of 2 blocks)

    key = jax.random.PRNGKey(0)
    ks = jax.random.split(key, 8)

    bound0 = 1.0 / math.sqrt(W0)     # matches 2/sqrt(w0)*rand - 1/sqrt(w0)
    first = jax.random.uniform(ks[0], (W0, D, D), jnp.float32, -bound0, bound0)
    bnd1 = 1.0 / math.sqrt(W0)       # nn.Linear(W0, H) default init range
    W1 = jax.random.uniform(ks[1], (H, W0), jnp.float32, -bnd1, bnd1)
    b1 = jax.random.uniform(ks[2], (H,), jnp.float32, -bnd1, bnd1)
    bnd2 = 1.0 / math.sqrt(H)        # nn.Linear(H, O)
    W2 = jax.random.uniform(ks[3], (O, H), jnp.float32, -bnd2, bnd2)
    b2 = jax.random.uniform(ks[4], (O,), jnp.float32, -bnd2, bnd2)

    x = jax.random.normal(ks[5], (B, N, D), jnp.float32)
    B0 = jax.random.randint(ks[6], (B, P, K), 0, N * N, dtype=jnp.int32)
    BW = jax.random.uniform(ks[7], (B, P, K), jnp.float32)

    forward = make_ibk_forward(first, W1, b1, W2, b2, block_insts=16)
    out = jax.block_until_ready(forward(x, B0, BW))

    params = (first, W1, b1, W2, b2)
    ref = jax.vmap(lambda xi, b0i, bwi: reference_forward(params, b0i, bwi, xi))(
        x, B0, BW)

    assert out.shape == (B, P, O)
    max_diff = float(jnp.max(jnp.abs(out - ref)))
    assert bool(jnp.allclose(out, ref, atol=1e-4, rtol=1e-4)), (
        "max abs diff = %g" % max_diff)
    print("KERNEL_OK")
</pallas_src>

<mosaic_0001>
module attributes {stable_mosaic.version = 11 : i64} {
  func.func @kernel(%arg0: i32, %arg1: memref<16x8x16xf32, #tpu.memory_space<vmem>>, %arg2: memref<16x16x8xf32, #tpu.memory_space<vmem>>, %arg3: memref<16x128xf32, #tpu.memory_space<vmem>>, %arg4: memref<144x32xf32, #tpu.memory_space<vmem>>, %arg5: memref<256x4xf32, #tpu.memory_space<vmem>>) attributes {dimension_semantics = [#tpu.dimension_semantics<parallel>], iteration_bounds = array<i64: 2>, scalar_prefetch = 0 : i64, scratch_operands = 0 : i64, tpu.core_type = #tpu.core_type<tc>, window_params = [{transform_indices = @transform_0, window_bounds = array<i64: 16, 8, 16>}, {transform_indices = @transform_1, window_bounds = array<i64: 16, 16, 8>}, {pipeline_mode = #tpu.pipeline_mode<synchronous>, transform_indices = @transform_2, window_bounds = array<i64: 16, 128>}, {pipeline_mode = #tpu.pipeline_mode<synchronous>, transform_indices = @transform_3, window_bounds = array<i64: 144, 32>}, {transform_indices = @transform_4, window_bounds = array<i64: 256, 4>}]} {
    %c0 = arith.constant 0 : index
    %c0_0 = arith.constant 0 : index
    %c0_1 = arith.constant 0 : index
    %0 = vector.load %arg1[%c0, %c0_0, %c0_1] : memref<16x8x16xf32, #tpu.memory_space<vmem>>, vector<16x8x16xf32>
    %1 = vector.shape_cast %0 : vector<16x8x16xf32> to vector<128x16xf32>
    %c0_2 = arith.constant 0 : index
    %c0_3 = arith.constant 0 : index
    %2 = vector.load %arg3[%c0_2, %c0_3] : memref<16x128xf32, #tpu.memory_space<vmem>>, vector<16x128xf32>
    %cst = arith.constant dense<0.000000e+00> : vector<128x128xf32>
    %3 = tpu.matmul %1, %2, %cst {dimension_numbers = #tpu.dot_dimension_numbers<[1], [0], [0], [1], [0, 0, 1, 1], [], []>} : vector<128x16xf32>, vector<16x128xf32>, vector<128x128xf32> -> vector<128x128xf32>
    %4 = vector.extract_strided_slice %3 {offsets = [0, 0], sizes = [128, 64], strides = [1, 1]} : vector<128x128xf32> to vector<128x64xf32>
    %5 = vector.shape_cast %4 : vector<128x64xf32> to vector<16x8x64xf32>
    %6 = vector.extract_strided_slice %3 {offsets = [0, 64], sizes = [128, 64], strides = [1, 1]} : vector<128x128xf32> to vector<128x64xf32>
    %7 = vector.shape_cast %6 : vector<128x64xf32> to vector<16x8x64xf32>
    %8 = vector.shape_cast %5 : vector<16x8x64xf32> to vector<16x8x1x64xf32>
    %9 = vector.shape_cast %7 : vector<16x8x64xf32> to vector<16x1x8x64xf32>
    %10 = vector.broadcast %8 : vector<16x8x1x64xf32> to vector<16x8x8x64xf32>
    %11 = vector.broadcast %9 : vector<16x1x8x64xf32> to vector<16x8x8x64xf32>
    %12 = arith.mulf %10, %11 : vector<16x8x8x64xf32>
    %13 = vector.shape_cast %12 : vector<16x8x8x64xf32> to vector<1024x64xf32>
    %c0_4 = arith.constant 0 : index
    %c0_5 = arith.constant 0 : index
    %14 = vector.load %arg4[%c0_4, %c0_5] : memref<144x32xf32, #tpu.memory_space<vmem>>, vector<64x32xf32>
    %cst_6 = arith.constant dense<0.000000e+00> : vector<1024x32xf32>
    %15 = tpu.matmul %13, %14, %cst_6 {dimension_numbers = #tpu.dot_dimension_numbers<[1], [0], [0], [1], [0, 0, 1, 1], [], []>} : vector<1024x64xf32>, vector<64x32xf32>, vector<1024x32xf32> -> vector<1024x32xf32>
    %16 = vector.shape_cast %15 : vector<1024x32xf32> to vector<16x64x32xf32>
    %c0_7 = arith.constant 0 : index
    %c0_8 = arith.constant 0 : index
    %c0_9 = arith.constant 0 : index
    %17 = vector.load %arg2[%c0_7, %c0_8, %c0_9] : memref<16x16x8xf32, #tpu.memory_space<vmem>>, vector<16x16x8xf32>
    %18 = vector.extract_strided_slice %17 {offsets = [0, 0, 0], sizes = [16, 16, 4], strides = [1, 1, 1]} : vector<16x16x8xf32> to vector<16x16x4xf32>
    %19 = arith.fptosi %18 : vector<16x16x4xf32> to vector<16x16x4xi32>
    %20 = vector.extract_strided_slice %17 {offsets = [0, 0, 4], sizes = [16, 16, 4], strides = [1, 1, 1]} : vector<16x16x8xf32> to vector<16x16x4xf32>
    %21 = tpu.iota {dimensions = array<i32: 2>} : vector<16x16x64xi32>
    %cst_10 = arith.constant 0.000000e+00 : f32
    %22 = vector.broadcast %cst_10 : f32 to vector<16x16x64xf32>
    %23 = vector.extract_strided_slice %19 {offsets = [0, 0, 0], sizes = [16, 16, 1], strides = [1, 1, 1]} : vector<16x16x4xi32> to vector<16x16x1xi32>
    %24 = vector.broadcast %23 : vector<16x16x1xi32> to vector<16x16x64xi32>
    %25 = arith.cmpi eq, %21, %24 : vector<16x16x64xi32>
    %26 = vector.extract_strided_slice %20 {offsets = [0, 0, 0], sizes = [16, 16, 1], strides = [1, 1, 1]} : vector<16x16x4xf32> to vector<16x16x1xf32>
    %cst_11 = arith.constant 0.000000e+00 : f32
    %27 = vector.shape_cast %26 : vector<16x16x1xf32> to vector<16x16x1xf32>
    %28 = vector.broadcast %27 : vector<16x16x1xf32> to vector<16x16x64xf32>
    %29 = vector.broadcast %cst_11 : f32 to vector<16x16x64xf32>
    %30 = arith.select %25, %28, %29 : vector<16x16x64xi1>, vector<16x16x64xf32>
    %31 = arith.addf %22, %30 : vector<16x16x64xf32>
    %32 = vector.extract_strided_slice %19 {offsets = [0, 0, 1], sizes = [16, 16, 1], strides = [1, 1, 1]} : vector<16x16x4xi32> to vector<16x16x1xi32>
    %33 = vector.broadcast %32 : vector<16x16x1xi32> to vector<16x16x64xi32>
    %34 = arith.cmpi eq, %21, %33 : vector<16x16x64xi32>
    %35 = vector.extract_strided_slice %20 {offsets = [0, 0, 1], sizes = [16, 16, 1], strides = [1, 1, 1]} : vector<16x16x4xf32> to vector<16x16x1xf32>
    %cst_12 = arith.constant 0.000000e+00 : f32
    %36 = vector.shape_cast %35 : vector<16x16x1xf32> to vector<16x16x1xf32>
    %37 = vector.broadcast %36 : vector<16x16x1xf32> to vector<16x16x64xf32>
    %38 = vector.broadcast %cst_12 : f32 to vector<16x16x64xf32>
    %39 = arith.select %34, %37, %38 : vector<16x16x64xi1>, vector<16x16x64xf32>
    %40 = arith.addf %31, %39 : vector<16x16x64xf32>
    %41 = vector.extract_strided_slice %19 {offsets = [0, 0, 2], sizes = [16, 16, 1], strides = [1, 1, 1]} : vector<16x16x4xi32> to vector<16x16x1xi32>
    %42 = vector.broadcast %41 : vector<16x16x1xi32> to vector<16x16x64xi32>
    %43 = arith.cmpi eq, %21, %42 : vector<16x16x64xi32>
    %44 = vector.extract_strided_slice %20 {offsets = [0, 0, 2], sizes = [16, 16, 1], strides = [1, 1, 1]} : vector<16x16x4xf32> to vector<16x16x1xf32>
    %cst_13 = arith.constant 0.000000e+00 : f32
    %45 = vector.shape_cast %44 : vector<16x16x1xf32> to vector<16x16x1xf32>
    %46 = vector.broadcast %45 : vector<16x16x1xf32> to vector<16x16x64xf32>
    %47 = vector.broadcast %cst_13 : f32 to vector<16x16x64xf32>
    %48 = arith.select %43, %46, %47 : vector<16x16x64xi1>, vector<16x16x64xf32>
    %49 = arith.addf %40, %48 : vector<16x16x64xf32>
    %50 = vector.extract_strided_slice %19 {offsets = [0, 0, 3], sizes = [16, 16, 1], strides = [1, 1, 1]} : vector<16x16x4xi32> to vector<16x16x1xi32>
    %51 = vector.broadcast %50 : vector<16x16x1xi32> to vector<16x16x64xi32>
    %52 = arith.cmpi eq, %21, %51 : vector<16x16x64xi32>
    %53 = vector.extract_strided_slice %20 {offsets = [0, 0, 3], sizes = [16, 16, 1], strides = [1, 1, 1]} : vector<16x16x4xf32> to vector<16x16x1xf32>
    %cst_14 = arith.constant 0.000000e+00 : f32
    %54 = vector.shape_cast %53 : vector<16x16x1xf32> to vector<16x16x1xf32>
    %55 = vector.broadcast %54 : vector<16x16x1xf32> to vector<16x16x64xf32>
    %56 = vector.broadcast %cst_14 : f32 to vector<16x16x64xf32>
    %57 = arith.select %52, %55, %56 : vector<16x16x64xi1>, vector<16x16x64xf32>
    %58 = arith.addf %49, %57 : vector<16x16x64xf32>
    "tpu.trace_start"() <{level = 10 : i32, message = "bpr,brw->bpw"}> : () -> ()
    %cst_15 = arith.constant dense<0.000000e+00> : vector<16x16x32xf32>
    %59 = tpu.matmul %58, %16, %cst_15 {dimension_numbers = #tpu.dot_dimension_numbers<[2], [1], [1], [2], [0, 0, 0, 1, 1, 2], [0], [0]>} : vector<16x16x64xf32>, vector<16x64x32xf32>, vector<16x16x32xf32> -> vector<16x16x32xf32>
    "tpu.trace_stop"() : () -> ()
    %60 = vector.shape_cast %59 : vector<16x16x32xf32> to vector<256x32xf32>
    %cst_16 = arith.constant 0.000000e+00 : f32
    %61 = vector.broadcast %cst_16 : f32 to vector<256x32xf32>
    %62 = arith.maximumf %60, %61 : vector<256x32xf32>
    %c64 = arith.constant 64 : index
    %c0_17 = arith.constant 0 : index
    %63 = vector.load %arg4[%c64, %c0_17] : memref<144x32xf32, #tpu.memory_space<vmem>>, vector<32x32xf32>
    %c96 = arith.constant 96 : index
    %c0_18 = arith.constant 0 : index
    %64 = vector.load %arg4[%c96, %c0_18] : memref<144x32xf32, #tpu.memory_space<vmem>>, vector<1x32xf32>
    %cst_19 = arith.constant dense<0.000000e+00> : vector<256x32xf32>
    %65 = tpu.matmul %62, %63, %cst_19 {dimension_numbers = #tpu.dot_dimension_numbers<[1], [0], [0], [1], [0, 0, 1, 1], [], []>} : vector<256x32xf32>, vector<32x32xf32>, vector<256x32xf32> -> vector<256x32xf32>
    %66 = vector.broadcast %64 : vector<1x32xf32> to vector<256x32xf32>
    %67 = arith.addf %65, %66 : vector<256x32xf32>
    %cst_20 = arith.constant 0.000000e+00 : f32
    %68 = vector.broadcast %cst_20 : f32 to vector<256x32xf32>
    %69 = arith.maximumf %67, %68 : vector<256x32xf32>
    %c104 = arith.constant 104 : index
    %c0_21 = arith.constant 0 : index
    %70 = vector.load %arg4[%c104, %c0_21] : memref<144x32xf32, #tpu.memory_space<vmem>>, vector<32x32xf32>
    %c136 = arith.constant 136 : index
    %c0_22 = arith.constant 0 : index
    %71 = vector.load %arg4[%c136, %c0_22] : memref<144x32xf32, #tpu.memory_space<vmem>>, vector<1x32xf32>
    %cst_23 = arith.constant dense<0.000000e+00> : vector<256x32xf32>
    %72 = tpu.matmul %69, %70, %cst_23 {dimension_numbers = #tpu.dot_dimension_numbers<[1], [0], [0], [1], [0, 0, 1, 1], [], []>} : vector<256x32xf32>, vector<32x32xf32>, vector<256x32xf32> -> vector<256x32xf32>
    %73 = vector.broadcast %71 : vector<1x32xf32> to vector<256x32xf32>
    %74 = arith.addf %72, %73 : vector<256x32xf32>
    %75 = math.absf %74 : vector<256x32xf32>
    %cst_24 = arith.constant 0.000000e+00 : f32
    %76 = vector.broadcast %cst_24 : f32 to vector<256x32xf32>
    %77 = arith.subf %76, %75 : vector<256x32xf32>
    %78 = math.exp %77 : vector<256x32xf32>
    %cst_25 = arith.constant 0.000000e+00 : f32
    %79 = vector.broadcast %cst_25 : f32 to vector<256x32xf32>
    %80 = arith.cmpf oge, %74, %79 : vector<256x32xf32>
    %cst_26 = arith.constant 1.000000e+00 : f32
    %81 = vector.broadcast %cst_26 : f32 to vector<256x32xf32>
    %82 = arith.addf %81, %78 : vector<256x32xf32>
    %cst_27 = arith.constant 1.000000e+00 : f32
    %83 = vector.broadcast %cst_27 : f32 to vector<256x32xf32>
    %84 = arith.divf %83, %82 : vector<256x32xf32>
    %cst_28 = arith.constant 1.000000e+00 : f32
    %85 = vector.broadcast %cst_28 : f32 to vector<256x32xf32>
    %86 = arith.addf %85, %78 : vector<256x32xf32>
    %87 = arith.divf %78, %86 : vector<256x32xf32>
    %88 = arith.select %80, %84, %87 : vector<256x32xi1>, vector<256x32xf32>
    %89 = vector.extract_strided_slice %88 {offsets = [0, 0], sizes = [256, 4], strides = [1, 1]} : vector<256x32xf32> to vector<256x4xf32>
    %c0_29 = arith.constant 0 : index
    %c0_30 = arith.constant 0 : index
    %90 = vector.load %arg5[%c0_29, %c0_30] : memref<256x4xf32, #tpu.memory_space<vmem>>, vector<256x4xf32>
    tpu.vector_store %arg5[%c0_29, %c0_30], %89 {strides = array<i32>} : memref<256x4xf32, #tpu.memory_space<vmem>>, vector<256x4xf32>,
    return
  }
  func.func @transform_0(%arg0: i32) -> (i32, i32, i32) {
    %c0_i32 = arith.constant 0 : i32
    %c0_i32_0 = arith.constant 0 : i32
    %c0_i32_1 = arith.constant 0 : i32
    return %arg0, %c0_i32, %c0_i32_0 : i32, i32, i32
  }
  func.func @transform_1(%arg0: i32) -> (i32, i32, i32) {
    %c0_i32 = arith.constant 0 : i32
    %c0_i32_0 = arith.constant 0 : i32
    %c0_i32_1 = arith.constant 0 : i32
    return %arg0, %c0_i32, %c0_i32_0 : i32, i32, i32
  }
  func.func @transform_2(%arg0: i32) -> (i32, i32) {
    %c0_i32 = arith.constant 0 : i32
    %c0_i32_0 = arith.constant 0 : i32
    %c0_i32_1 = arith.constant 0 : i32
    return %c0_i32, %c0_i32_0 : i32, i32
  }
  func.func @transform_3(%arg0: i32) -> (i32, i32) {
    %c0_i32 = arith.constant 0 : i32
    %c0_i32_0 = arith.constant 0 : i32
    %c0_i32_1 = arith.constant 0 : i32
    return %c0_i32, %c0_i32_0 : i32, i32
  }
  func.func @transform_4(%arg0: i32) -> (i32, i32) {
    %c0_i32 = arith.constant 0 : i32
    %c0_i32_0 = arith.constant 0 : i32
    return %arg0, %c0_i32 : i32, i32
  }
}

</mosaic_0001>

<llo_original>
// kernel: forward.1
$region0: #{forward.1}
  #allocation0 [shape = 'u32[]', space=smem, size = 0x4, offset = 0x4, fixed_abs, tag = 'smem constant byte address 0x4 - core index']
  #allocation1 [shape = 'u32[72,128]{1,0:T(1,128)}', space=vmem, size = 0x9000, scoped, tag = 'internal scratch']
  %s0 = inlined_call_operand.vmem [shape: f32[32,8,16], index: 0, kind: input, shape index: {}]
  %s1 = inlined_call_operand.vmem [shape: f32[32,16,8], index: 1, kind: input, shape index: {}]
  %s2 = inlined_call_operand.vmem [shape: f32[16,128], index: 2, kind: input, shape index: {}]
  %s3 = inlined_call_operand.vmem [shape: f32[144,32], index: 3, kind: input, shape index: {}]
  %s4 = inlined_call_operand.vmem [shape: f32[512,4], index: 4, kind: output, shape index: {}]
  %s5 = sld [smem:[#allocation0]]
  $region49: #{forward.1} parent=0
    _
  %s7 = ssub.s32 1, %s5
  %s8 = scalar_select 0, %s7, %s5
  loop: start=0, step=1, limit=4
  $region2: #{forward.1} parent=0 // loop_pre_header
    _
  $region3: #{forward.1} parent=0 // loop_header
    %s10 = sphi 0, %s14
    %p11 = scmp.ge.s32.totalorder %s10, 4
    %s20 = sphi 0, %s22
    %s23 = sphi 0, %s20
    %s24 = sphi 0, %s23
    %s40 = sphi 0, %s24
    %s46 = sphi 0, %s48
    %s49 = sphi 0, %s46
    %s50 = sphi 0, %s49
    %s66 = sphi 0, %s50
    %s70 = sphi 0, %s70
    %s72 = sphi 0, %s70
    %s73 = sphi 0, %s72
    %s87 = sphi 0, %s73
    %s91 = sphi 0, %s91
    %s93 = sphi 0, %s91
    %s94 = sphi 0, %s93
    %s108 = sphi 0, %s94
    %s114 = sphi 0, %s116
    %s117 = sphi 0, %s114
    %s118 = sphi 0, %s117
    %s134 = sphi 0, %s118
  $region4: #{forward.1} parent=0 // loop_header_branch
    %13 = sbr.rel (%p11) target = $region8
  $region5: #{forward.1} parent=0 // loop_body
    %s15 = ssub.s32 %s10, 1
    %s16 = ssub.s32 %s10, 2
    %s17 = sadd.s32 %s10, 1
    %s18 = ssub.s32 %s10, %s17
    %p19 = scmp.eq.s32.totalorder %s18, 0
    %s21 = sadd.s32 %s20, 1
    %s22 = scalar_select %p19, %s20, %s21
    %p25 = pneg %p19
    %p26 = scmp.eq.s32.totalorder %s10, 1
    %p27 = por %p25, %p26
    %p28 = scmp.ne.s32.totalorder %s20, %s23
    %p29 = scmp.eq.s32.totalorder %s10, 0
    %p30 = por %p28, %p29
    %p31 = scmp.ne.s32.totalorder %s20, %s23
    %p32 = scmp.eq.s32.totalorder %s15, 1
    %p33 = por %p31, %p32
    %p34 = scmp.ne.s32.totalorder %s23, %s24
    %p35 = scmp.eq.s32.totalorder %s15, 0
    %p36 = por %p34, %p35
    %p37 = scmp.ne.s32.totalorder %s23, %s24
    %p38 = scmp.eq.s32.totalorder %s16, 1
    %p39 = por %p37, %p38
    %p41 = scmp.ne.s32.totalorder %s24, %s40
    %p42 = scmp.eq.s32.totalorder %s16, 0
    %p43 = por %p41, %p42
    %s44 = ssub.s32 %s10, %s17
    %p45 = scmp.eq.s32.totalorder %s44, 0
    %s47 = sadd.s32 %s46, 1
    %s48 = scalar_select %p45, %s46, %s47
    %p51 = pneg %p45
    %p52 = scmp.eq.s32.totalorder %s10, 1
    %p53 = por %p51, %p52
    %p54 = scmp.ne.s32.totalorder %s46, %s49
    %p55 = scmp.eq.s32.totalorder %s10, 0
    %p56 = por %p54, %p55
    %p57 = scmp.ne.s32.totalorder %s46, %s49
    %p58 = scmp.eq.s32.totalorder %s15, 1
    %p59 = por %p57, %p58
    %p60 = scmp.ne.s32.totalorder %s49, %s50
    %p61 = scmp.eq.s32.totalorder %s15, 0
    %p62 = por %p60, %p61
    %p63 = scmp.ne.s32.totalorder %s49, %s50
    %p64 = scmp.eq.s32.totalorder %s16, 1
    %p65 = por %p63, %p64
    %p67 = scmp.ne.s32.totalorder %s50, %s66
    %p68 = scmp.eq.s32.totalorder %s16, 0
    %p69 = por %p67, %p68
    %s71 = sadd.s32 %s70, 1
    %p74 = scmp.eq.s32.totalorder %s10, 1
    %p75 = scmp.ne.s32.totalorder %s70, %s72
    %p76 = scmp.eq.s32.totalorder %s10, 0
    %p77 = por %p75, %p76
    %p78 = scmp.ne.s32.totalorder %s70, %s72
    %p79 = scmp.eq.s32.totalorder %s15, 1
    %p80 = por %p78, %p79
    %p81 = scmp.ne.s32.totalorder %s72, %s73
    %p82 = scmp.eq.s32.totalorder %s15, 0
    %p83 = por %p81, %p82
    %p84 = scmp.ne.s32.totalorder %s72, %s73
    %p85 = scmp.eq.s32.totalorder %s16, 1
    %p86 = por %p84, %p85
    %p88 = scmp.ne.s32.totalorder %s73, %s87
    %p89 = scmp.eq.s32.totalorder %s16, 0
    %p90 = por %p88, %p89
    %s92 = sadd.s32 %s91, 1
    %p95 = scmp.eq.s32.totalorder %s10, 1
    %p96 = scmp.ne.s32.totalorder %s91, %s93
    %p97 = scmp.eq.s32.totalorder %s10, 0
    %p98 = por %p96, %p97
    %p99 = scmp.ne.s32.totalorder %s91, %s93
    %p100 = scmp.eq.s32.totalorder %s15, 1
    %p101 = por %p99, %p100
    %p102 = scmp.ne.s32.totalorder %s93, %s94
    %p103 = scmp.eq.s32.totalorder %s15, 0
    %p104 = por %p102, %p103
    %p105 = scmp.ne.s32.totalorder %s93, %s94
    %p106 = scmp.eq.s32.totalorder %s16, 1
    %p107 = por %p105, %p106
    %p109 = scmp.ne.s32.totalorder %s94, %s108
    %p110 = scmp.eq.s32.totalorder %s16, 0
    %p111 = por %p109, %p110
    %s112 = ssub.s32 %s10, %s17
    %p113 = scmp.eq.s32.totalorder %s112, 0
    %s115 = sadd.s32 %s114, 1
    %s116 = scalar_select %p113, %s114, %s115
    %p119 = pneg %p113
    %p120 = scmp.eq.s32.totalorder %s10, 1
    %p121 = por %p119, %p120
    %p122 = scmp.ne.s32.totalorder %s114, %s117
    %p123 = scmp.eq.s32.totalorder %s10, 0
    %p124 = por %p122, %p123
    %p125 = scmp.ne.s32.totalorder %s114, %s117
    %p126 = scmp.eq.s32.totalorder %s15, 1
    %p127 = por %p125, %p126
    %p128 = scmp.ne.s32.totalorder %s117, %s118
    %p129 = scmp.eq.s32.totalorder %s15, 0
    %p130 = por %p128, %p129
    %p131 = scmp.ne.s32.totalorder %s117, %s118
    %p132 = scmp.eq.s32.totalorder %s16, 1
    %p133 = por %p131, %p132
    %p135 = scmp.ne.s32.totalorder %s118, %s134
    %p136 = scmp.eq.s32.totalorder %s16, 0
    %p137 = por %p135, %p136
    %p138 = scmp.le.s32.totalorder 1, %s10
    %p139 = scmp.lt.s32.totalorder %s10, 3
    %p140 = pnand %p138, %p139
    %p141 = pneg %p140
    // Predicated region
    $region9: #{forward.1} parent=5 // pred_check
      _
    $region10: #{forward.1} parent=5 // pred_check_branch
      %143 = sbr.rel (%p140) target = $region12
    $region11: #{forward.1} parent=5 // pred_region
      %s144 = ssub.s32 %s10, 1
      // Predicated region
      $region13: #{forward.1} parent=11 // pred_check
        %p145 = pneg %p83
      $region14: #{forward.1} parent=11 // pred_check_branch
        %147 = sbr.rel (%p145) target = $region16
      $region15: #{forward.1} parent=11 // pred_region
        _
      $region16: #{forward.1} parent=11 // pred_fallthru
        _
      // Predicated region
      $region17: #{forward.1} parent=11 // pred_check
        %p148 = pneg %p104
      $region18: #{forward.1} parent=11 // pred_check_branch
        %150 = sbr.rel (%p148) target = $region20
      $region19: #{forward.1} parent=11 // pred_region
        _
      $region20: #{forward.1} parent=11 // pred_fallthru
        _
    $region12: #{forward.1} parent=5 // pred_fallthru
      _
    %p151 = scmp.lt.s32.totalorder %s10, 2
    // Predicated region
    $region21: #{forward.1} parent=5 // pred_check
      %p152 = pneg %p151
    $region22: #{forward.1} parent=5 // pred_check_branch
      %154 = sbr.rel (%p152) target = $region24
    $region23: #{forward.1} parent=5 // pred_region
      // Predicated region
      $region25: #{forward.1} parent=23 // pred_check
        %p155 = pneg %p30
      $region26: #{forward.1} parent=23 // pred_check_branch
        %157 = sbr.rel (%p155) target = $region28
      $region27: #{forward.1} parent=23 // pred_region
        %s158 = smul.u32 16, %s10
        %p159 = scmp.lt.s32.totalorder %s158, 31
        %s160 = scalar_select %p159, %s158, 31
        %s161 = smul.addr %s160, 8
        %s162 = scalar_lea.vmem %s0, %s161
        %s163 = smul.u32 16, %s10
      $region28: #{forward.1} parent=23 // pred_fallthru
        _
      // Predicated region
      $region29: #{forward.1} parent=23 // pred_check
        %p164 = pneg %p56
      $region30: #{forward.1} parent=23 // pred_check_branch
        %166 = sbr.rel (%p164) target = $region32
      $region31: #{forward.1} parent=23 // pred_region
        %s167 = smul.u32 16, %s10
        %p168 = scmp.lt.s32.totalorder %s167, 31
        %s169 = scalar_select %p168, %s167, 31
        %s170 = smul.addr %s169, 2
        %s171 = smul.addr %s170, 8
        %s172 = scalar_lea.vmem %s1, %s171
        %s173 = smul.u32 16, %s10
      $region32: #{forward.1} parent=23 // pred_fallthru
        _
    $region24: #{forward.1} parent=5 // pred_fallthru
      _
    %p174 = scmp.le.s32.totalorder 1, %s10
    %p175 = scmp.lt.s32.totalorder %s10, 3
    %p176 = pnand %p174, %p175
    %p177 = pneg %p176
    // Predicated region
    $region33: #{forward.1} parent=5 // pred_check
      _
    $region34: #{forward.1} parent=5 // pred_check_branch
      %179 = sbr.rel (%p176) target = $region36
    $region35: #{forward.1} parent=5 // pred_region
      %s180 = ssub.s32 %s10, 1
      %s181 = smul.u32 16, %s15
      %p182 = scmp.lt.s32.totalorder %s181, 31
      %s183 = scalar_select %p182, %s181, 31
      %s184 = smul.addr %s183, 8
      %s185 = scalar_lea.vmem %s0, %s184
      %p186 = pneg %p36
      %p187 = pneg %p33
      %s188 = smul.u32 16, %s15
      %p189 = scmp.lt.s32.totalorder %s188, 31
      %s190 = scalar_select %p189, %s188, 31
      %s191 = smul.addr %s190, 2
      %s192 = smul.addr %s191, 8
      %s193 = scalar_lea.vmem %s1, %s192
      %p194 = pneg %p62
      %p195 = pneg %p59
      %p196 = pneg %p83
      %p197 = pneg %p80
      %p198 = pneg %p104
      %p199 = pneg %p101
      %p200 = pneg %p130
      %p201 = pneg %p127
      %s202 = smul.u32 32, %s15
      %p203 = scmp.lt.s32.totalorder %s202, 63
      %s204 = scalar_select %p203, %s202, 63
      %s205 = smul.addr %s204, 8
      %s206 = scalar_lea.vmem %s4, %s205
      %s207 = smul.u32 16, %s15
      %p208 = scmp.lt.s32.totalorder %s207, 31
      %s209 = scalar_select %p208, %s207, 31
      %s210 = smul.addr %s209, 8
      %s211 = scalar_lea.vmem %s0, %s210
      %s212 = smul.u32 16, %s15
      %s213 = smul.u32 16, %s15
      %p214 = scmp.lt.s32.totalorder %s213, 31
      %s215 = scalar_select %p214, %s213, 31
      %s216 = smul.addr %s215, 2
      %s217 = smul.addr %s216, 8
      %s218 = scalar_lea.vmem %s1, %s217
      %s219 = smul.u32 16, %s15
      %s220 = smul.u32 32, %s15
      %p221 = scmp.lt.s32.totalorder %s220, 63
      %s222 = scalar_select %p221, %s220, 63
      %s223 = smul.addr %s222, 8
      %s224 = scalar_lea.vmem %s4, %s223
      %s225 = smul.u32 32, %s15
      %v226 = vld [vmem:[%s211] sm:$0xff]
      %v227 = vld [vmem:[%s211 + $0x8] sm:$0xff]
      %v228 = vld [vmem:[%s211 + $0x10] sm:$0xff]
      %v229 = vld [vmem:[%s211 + $0x18] sm:$0xff]
      %v230 = vld [vmem:[%s211 + $0x20] sm:$0xff]
      %v231 = vld [vmem:[%s211 + $0x28] sm:$0xff]
      %v232 = vld [vmem:[%s211 + $0x30] sm:$0xff]
      %v233 = vld [vmem:[%s211 + $0x38] sm:$0xff]
      %v234 = vld [vmem:[%s211 + $0x40] sm:$0xff]
      %v235 = vld [vmem:[%s211 + $0x48] sm:$0xff]
      %v236 = vld [vmem:[%s211 + $0x50] sm:$0xff]
      %v237 = vld [vmem:[%s211 + $0x58] sm:$0xff]
      %v238 = vld [vmem:[%s211 + $0x60] sm:$0xff]
      %v239 = vld [vmem:[%s211 + $0x68] sm:$0xff]
      %v240 = vld [vmem:[%s211 + $0x70] sm:$0xff]
      %v241 = vld [vmem:[%s211 + $0x78] sm:$0xff]
      %v242 = vld [vmem:[%s2] sm:$0xff]
      %v243 = vld [vmem:[%s2 + $0x8] sm:$0xff]
      %vm244 = vcmask 130048
      %v246 = vsel %vm244, %v226, 0
      %v249 = vsel %vm244, %v227, 0
      %v252 = vsel %vm244, %v228, 0
      %v255 = vsel %vm244, %v229, 0
      %v258 = vsel %vm244, %v230, 0
      %v261 = vsel %vm244, %v231, 0
      %v264 = vsel %vm244, %v232, 0
      %v267 = vsel %vm244, %v233, 0
      %v270 = vsel %vm244, %v234, 0
      %v273 = vsel %vm244, %v235, 0
      %v276 = vsel %vm244, %v236, 0
      %v279 = vsel %vm244, %v237, 0
      %v282 = vsel %vm244, %v238, 0
      %v285 = vsel %vm244, %v239, 0
      %v288 = vsel %vm244, %v240, 0
      %v291 = vsel %vm244, %v241, 0
      %293 = vmatpush.msra.mxu0 0.0
      %294 = vmatpush.msra.mxu0 0.0
      %295 = vmatpush.msra.mxu0 0.0
      %296 = vmatpush.msra.mxu0 0.0
      %297 = vmatpush.msra.mxu0 0.0
      %298 = vmatpush.msra.mxu0 0.0
      %299 = vmatpush.msra.mxu0 0.0
      %300 = vmatpush.msra.mxu0 0.0
      %301 = vmatpush.msra.mxu0 0.0
      %302 = vmatpush.msra.mxu0 0.0
      %303 = vmatpush.msra.mxu0 0.0
      %304 = vmatpush.msra.mxu0 0.0
      %305 = vmatpush.msra.mxu0 0.0
      %306 = vmatpush.msra.mxu0 0.0
      %307 = vmatpush.msra.mxu0 %v243
      %308 = vmatpush.msra.mxu0 %v242
      %309 = vmatmul.f32.gmra.mxu0 %v246
      %v310 = vpop.f32.mrf.mxu0
      %v311 = vadd.f32 0.0, %v310
      %312 = vmatmul.f32.gmra.mxu0 %v249
      %v313 = vpop.f32.mrf.mxu0
      %v314 = vadd.f32 0.0, %v313
      %315 = vmatmul.f32.gmra.mxu0 %v252
      %v316 = vpop.f32.mrf.mxu0
      %v317 = vadd.f32 0.0, %v316
      %318 = vmatmul.f32.gmra.mxu0 %v255
      %v319 = vpop.f32.mrf.mxu0
      %v320 = vadd.f32 0.0, %v319
      %321 = vmatmul.f32.gmra.mxu0 %v258
      %v322 = vpop.f32.mrf.mxu0
      %v323 = vadd.f32 0.0, %v322
      %324 = vmatmul.f32.gmra.mxu0 %v261
      %v325 = vpop.f32.mrf.mxu0
      %v326 = vadd.f32 0.0, %v325
      %327 = vmatmul.f32.gmra.mxu0 %v264
      %v328 = vpop.f32.mrf.mxu0
      %v329 = vadd.f32 0.0, %v328
      %330 = vmatmul.f32.gmra.mxu0 %v267
      %v331 = vpop.f32.mrf.mxu0
      %v332 = vadd.f32 0.0, %v331
      %333 = vmatmul.f32.gmra.mxu0 %v270
      %v334 = vpop.f32.mrf.mxu0
      %v335 = vadd.f32 0.0, %v334
      %336 = vmatmul.f32.gmra.mxu0 %v273
      %v337 = vpop.f32.mrf.mxu0
      %v338 = vadd.f32 0.0, %v337
      %339 = vmatmul.f32.gmra.mxu0 %v276
      %v340 = vpop.f32.mrf.mxu0
      %v341 = vadd.f32 0.0, %v340
      %342 = vmatmul.f32.gmra.mxu0 %v279
      %v343 = vpop.f32.mrf.mxu0
      %v344 = vadd.f32 0.0, %v343
      %345 = vmatmul.f32.gmra.mxu0 %v282
      %v346 = vpop.f32.mrf.mxu0
      %v347 = vadd.f32 0.0, %v346
      %348 = vmatmul.f32.gmra.mxu0 %v285
      %v349 = vpop.f32.mrf.mxu0
      %v350 = vadd.f32 0.0, %v349
      %351 = vmatmul.f32.gmra.mxu0 %v288
      %v352 = vpop.f32.mrf.mxu0
      %v353 = vadd.f32 0.0, %v352
      %354 = vmatmul.f32.gmra.mxu0 %v291
      %v355 = vpop.f32.mrf.mxu0
      %v356 = vadd.f32 0.0, %v355
      %357 = vdwg.mxu0
      %v374 = vrot.slane %v311, 1
      %v375 = vrot.slane %v311, 2
      %v376 = vrot.slane %v311, 3
      %v377 = vrot.slane %v311, 4
      %v378 = vrot.slane %v311, 5
      %v379 = vrot.slane %v311, 6
      %v380 = vrot.slane %v311, 7
      %v381 = vrot.slane %v314, 1
      %v382 = vrot.slane %v314, 2
      %v383 = vrot.slane %v314, 3
      %v384 = vrot.slane %v314, 4
      %v385 = vrot.slane %v314, 5
      %v386 = vrot.slane %v314, 6
      %v387 = vrot.slane %v314, 7
      %v388 = vrot.slane %v317, 1
      %v389 = vrot.slane %v317, 2
      %v390 = vrot.slane %v317, 3
      %v391 = vrot.slane %v317, 4
      %v392 = vrot.slane %v317, 5
      %v393 = vrot.slane %v317, 6
      %v394 = vrot.slane %v317, 7
      %v395 = vrot.slane %v320, 1
      %v396 = vrot.slane %v320, 2
      %v397 = vrot.slane %v320, 3
      %v398 = vrot.slane %v320, 4
      %v399 = vrot.slane %v320, 5
      %v400 = vrot.slane %v320, 6
      %v401 = vrot.slane %v320, 7
      %v402 = vrot.slane %v323, 1
      %v403 = vrot.slane %v323, 2
      %v404 = vrot.slane %v323, 3
      %v405 = vrot.slane %v323, 4
      %v406 = vrot.slane %v323, 5
      %v407 = vrot.slane %v323, 6
      %v408 = vrot.slane %v323, 7
      %v409 = vrot.slane %v326, 1
      %v410 = vrot.slane %v326, 2
      %v411 = vrot.slane %v326, 3
      %v412 = vrot.slane %v326, 4
      %v413 = vrot.slane %v326, 5
      %v414 = vrot.slane %v326, 6
      %v415 = vrot.slane %v326, 7
      %v416 = vrot.slane %v329, 1
      %v417 = vrot.slane %v329, 2
      %v418 = vrot.slane %v329, 3
      %v419 = vrot.slane %v329, 4
      %v420 = vrot.slane %v329, 5
      %v421 = vrot.slane %v329, 6
      %v422 = vrot.slane %v329, 7
      %v423 = vrot.slane %v332, 1
      %v424 = vrot.slane %v332, 2
      %v425 = vrot.slane %v332, 3
      %v426 = vrot.slane %v332, 4
      %v427 = vrot.slane %v332, 5
      %v428 = vrot.slane %v332, 6
      %v429 = vrot.slane %v332, 7
      %v430 = vrot.slane %v335, 1
      %v431 = vrot.slane %v335, 2
      %v432 = vrot.slane %v335, 3
      %v433 = vrot.slane %v335, 4
      %v434 = vrot.slane %v335, 5
      %v435 = vrot.slane %v335, 6
      %v436 = vrot.slane %v335, 7
      %v437 = vrot.slane %v338, 1
      %v438 = vrot.slane %v338, 2
      %v439 = vrot.slane %v338, 3
      %v440 = vrot.slane %v338, 4
      %v441 = vrot.slane %v338, 5
      %v442 = vrot.slane %v338, 6
      %v443 = vrot.slane %v338, 7
      %v444 = vrot.slane %v341, 1
      %v445 = vrot.slane %v341, 2
      %v446 = vrot.slane %v341, 3
      %v447 = vrot.slane %v341, 4
      %v448 = vrot.slane %v341, 5
      %v449 = vrot.slane %v341, 6
      %v450 = vrot.slane %v341, 7
      %v451 = vrot.slane %v344, 1
      %v452 = vrot.slane %v344, 2
      %v453 = vrot.slane %v344, 3
      %v454 = vrot.slane %v344, 4
      %v455 = vrot.slane %v344, 5
      %v456 = vrot.slane %v344, 6
      %v457 = vrot.slane %v344, 7
      %v458 = vrot.slane %v347, 1
      %v459 = vrot.slane %v347, 2
      %v460 = vrot.slane %v347, 3
      %v461 = vrot.slane %v347, 4
      %v462 = vrot.slane %v347, 5
      %v463 = vrot.slane %v347, 6
      %v464 = vrot.slane %v347, 7
      %v465 = vrot.slane %v350, 1
      %v466 = vrot.slane %v350, 2
      %v467 = vrot.slane %v350, 3
      %v468 = vrot.slane %v350, 4
      %v469 = vrot.slane %v350, 5
      %v470 = vrot.slane %v350, 6
      %v471 = vrot.slane %v350, 7
      %v472 = vrot.slane %v353, 1
      %v473 = vrot.slane %v353, 2
      %v474 = vrot.slane %v353, 3
      %v475 = vrot.slane %v353, 4
      %v476 = vrot.slane %v353, 5
      %v477 = vrot.slane %v353, 6
      %v478 = vrot.slane %v353, 7
      %v479 = vrot.slane %v356, 1
      %v480 = vrot.slane %v356, 2
      %v481 = vrot.slane %v356, 3
      %v482 = vrot.slane %v356, 4
      %v483 = vrot.slane %v356, 5
      %v484 = vrot.slane %v356, 6
      %v485 = vrot.slane %v356, 7
      %v486 = vperm.slane %v311, 0
      %v487 = vperm.slane %v374, 0
      %v488 = vperm.slane %v375, 0
      %v489 = vperm.slane %v376, 0
      %v490 = vperm.slane %v377, 0
      %v491 = vperm.slane %v378, 0
      %v492 = vperm.slane %v379, 0
      %v493 = vperm.slane %v380, 0
      %v494 = vperm.slane %v314, 0
      %v495 = vperm.slane %v381, 0
      %v496 = vperm.slane %v382, 0
      %v497 = vperm.slane %v383, 0
      %v498 = vperm.slane %v384, 0
      %v499 = vperm.slane %v385, 0
      %v500 = vperm.slane %v386, 0
      %v501 = vperm.slane %v387, 0
      %v502 = vperm.slane %v317, 0
      %v503 = vperm.slane %v388, 0
      %v504 = vperm.slane %v389, 0
      %v505 = vperm.slane %v390, 0
      %v506 = vperm.slane %v391, 0
      %v507 = vperm.slane %v392, 0
      %v508 = vperm.slane %v393, 0
      %v509 = vperm.slane %v394, 0
      %v510 = vperm.slane %v320, 0
      %v511 = vperm.slane %v395, 0
      %v512 = vperm.slane %v396, 0
      %v513 = vperm.slane %v397, 0
      %v514 = vperm.slane %v398, 0
      %v515 = vperm.slane %v399, 0
      %v516 = vperm.slane %v400, 0
      %v517 = vperm.slane %v401, 0
      %v518 = vperm.slane %v323, 0
      %v519 = vperm.slane %v402, 0
      %v520 = vperm.slane %v403, 0
      %v521 = vperm.slane %v404, 0
      %v522 = vperm.slane %v405, 0
      %v523 = vperm.slane %v406, 0
      %v524 = vperm.slane %v407, 0
      %v525 = vperm.slane %v408, 0
      %v526 = vperm.slane %v326, 0
      %v527 = vperm.slane %v409, 0
      %v528 = vperm.slane %v410, 0
      %v529 = vperm.slane %v411, 0
      %v530 = vperm.slane %v412, 0
      %v531 = vperm.slane %v413, 0
      %v532 = vperm.slane %v414, 0
      %v533 = vperm.slane %v415, 0
      %v534 = vperm.slane %v329, 0
      %v535 = vperm.slane %v416, 0
      %v536 = vperm.slane %v417, 0
      %v537 = vperm.slane %v418, 0
      %v538 = vperm.slane %v419, 0
      %v539 = vperm.slane %v420, 0
      %v540 = vperm.slane %v421, 0
      %v541 = vperm.slane %v422, 0
      %v542 = vperm.slane %v332, 0
      %v543 = vperm.slane %v423, 0
      %v544 = vperm.slane %v424, 0
      %v545 = vperm.slane %v425, 0
      %v546 = vperm.slane %v426, 0
      %v547 = vperm.slane %v427, 0
      %v548 = vperm.slane %v428, 0
      %v549 = vperm.slane %v429, 0
      %v550 = vperm.slane %v335, 0
      %v551 = vperm.slane %v430, 0
      %v552 = vperm.slane %v431, 0
      %v553 = vperm.slane %v432, 0
      %v554 = vperm.slane %v433, 0
      %v555 = vperm.slane %v434, 0
      %v556 = vperm.slane %v435, 0
      %v557 = vperm.slane %v436, 0
      %v558 = vperm.slane %v338, 0
      %v559 = vperm.slane %v437, 0
      %v560 = vperm.slane %v438, 0
      %v561 = vperm.slane %v439, 0
      %v562 = vperm.slane %v440, 0
      %v563 = vperm.slane %v441, 0
      %v564 = vperm.slane %v442, 0
      %v565 = vperm.slane %v443, 0
      %v566 = vperm.slane %v341, 0
      %v567 = vperm.slane %v444, 0
      %v568 = vperm.slane %v445, 0
      %v569 = vperm.slane %v446, 0
      %v570 = vperm.slane %v447, 0
      %v571 = vperm.slane %v448, 0
      %v572 = vperm.slane %v449, 0
      %v573 = vperm.slane %v450, 0
      %v574 = vperm.slane %v344, 0
      %v575 = vperm.slane %v451, 0
      %v576 = vperm.slane %v452, 0
      %v577 = vperm.slane %v453, 0
      %v578 = vperm.slane %v454, 0
      %v579 = vperm.slane %v455, 0
      %v580 = vperm.slane %v456, 0
      %v581 = vperm.slane %v457, 0
      %v582 = vperm.slane %v347, 0
      %v583 = vperm.slane %v458, 0
      %v584 = vperm.slane %v459, 0
      %v585 = vperm.slane %v460, 0
      %v586 = vperm.slane %v461, 0
      %v587 = vperm.slane %v462, 0
      %v588 = vperm.slane %v463, 0
      %v589 = vperm.slane %v464, 0
      %v590 = vperm.slane %v350, 0
      %v591 = vperm.slane %v465, 0
      %v592 = vperm.slane %v466, 0
      %v593 = vperm.slane %v467, 0
      %v594 = vperm.slane %v468, 0
      %v595 = vperm.slane %v469, 0
      %v596 = vperm.slane %v470, 0
      %v597 = vperm.slane %v471, 0
      %v598 = vperm.slane %v353, 0
      %v599 = vperm.slane %v472, 0
      %v600 = vperm.slane %v473, 0
      %v601 = vperm.slane %v474, 0
      %v602 = vperm.slane %v475, 0
      %v603 = vperm.slane %v476, 0
      %v604 = vperm.slane %v477, 0
      %v605 = vperm.slane %v478, 0
      %v606 = vperm.slane %v356, 0
      %v607 = vperm.slane %v479, 0
      %v608 = vperm.slane %v480, 0
      %v609 = vperm.slane %v481, 0
      %v610 = vperm.slane %v482, 0
      %v611 = vperm.slane %v483, 0
      %v612 = vperm.slane %v484, 0
      %v613 = vperm.slane %v485, 0
      %742 = vrot.lane.b32.xlu0 %v311, 64
      %v743 = vpop.permute.xlu0 %742
      %744 = vrot.lane.b32.xlu0 %v314, 64
      %v745 = vpop.permute.xlu0 %744
      %746 = vrot.lane.b32.xlu0 %v317, 64
      %v747 = vpop.permute.xlu0 %746
      %748 = vrot.lane.b32.xlu0 %v320, 64
      %v749 = vpop.permute.xlu0 %748
      %750 = vrot.lane.b32.xlu0 %v323, 64
      %v751 = vpop.permute.xlu0 %750
      %752 = vrot.lane.b32.xlu0 %v326, 64
      %v753 = vpop.permute.xlu0 %752
      %754 = vrot.lane.b32.xlu0 %v329, 64
      %v755 = vpop.permute.xlu0 %754
      %756 = vrot.lane.b32.xlu0 %v332, 64
      %v757 = vpop.permute.xlu0 %756
      %758 = vrot.lane.b32.xlu0 %v335, 64
      %v759 = vpop.permute.xlu0 %758
      %760 = vrot.lane.b32.xlu0 %v338, 64
      %v761 = vpop.permute.xlu0 %760
      %762 = vrot.lane.b32.xlu0 %v341, 64
      %v763 = vpop.permute.xlu0 %762
      %764 = vrot.lane.b32.xlu0 %v344, 64
      %v765 = vpop.permute.xlu0 %764
      %766 = vrot.lane.b32.xlu0 %v347, 64
      %v767 = vpop.permute.xlu0 %766
      %768 = vrot.lane.b32.xlu0 %v350, 64
      %v769 = vpop.permute.xlu0 %768
      %770 = vrot.lane.b32.xlu0 %v353, 64
      %v771 = vpop.permute.xlu0 %770
      %772 = vrot.lane.b32.xlu0 %v356, 64
      %v773 = vpop.permute.xlu0 %772
      %v790 = vmul.f32 %v486, %v743
      %v791 = vmul.f32 %v487, %v743
      %v792 = vmul.f32 %v488, %v743
      %v793 = vmul.f32 %v489, %v743
      %v794 = vmul.f32 %v490, %v743
      %v795 = vmul.f32 %v491, %v743
      %v796 = vmul.f32 %v492, %v743
      %v797 = vmul.f32 %v493, %v743
      %v798 = vmul.f32 %v494, %v745
      %v799 = vmul.f32 %v495, %v745
      %v800 = vmul.f32 %v496, %v745
      %v801 = vmul.f32 %v497, %v745
      %v802 = vmul.f32 %v498, %v745
      %v803 = vmul.f32 %v499, %v745
      %v804 = vmul.f32 %v500, %v745
      %v805 = vmul.f32 %v501, %v745
      %v806 = vmul.f32 %v502, %v747
      %v807 = vmul.f32 %v503, %v747
      %v808 = vmul.f32 %v504, %v747
      %v809 = vmul.f32 %v505, %v747
      %v810 = vmul.f32 %v506, %v747
      %v811 = vmul.f32 %v507, %v747
      %v812 = vmul.f32 %v508, %v747
      %v813 = vmul.f32 %v509, %v747
      %v814 = vmul.f32 %v510, %v749
      %v815 = vmul.f32 %v511, %v749
      %v816 = vmul.f32 %v512, %v749
      %v817 = vmul.f32 %v513, %v749
      %v818 = vmul.f32 %v514, %v749
      %v819 = vmul.f32 %v515, %v749
      %v820 = vmul.f32 %v516, %v749
      %v821 = vmul.f32 %v517, %v749
      %v822 = vmul.f32 %v518, %v751
      %v823 = vmul.f32 %v519, %v751
      %v824 = vmul.f32 %v520, %v751
      %v825 = vmul.f32 %v521, %v751
      %v826 = vmul.f32 %v522, %v751
      %v827 = vmul.f32 %v523, %v751
      %v828 = vmul.f32 %v524, %v751
      %v829 = vmul.f32 %v525, %v751
      %v830 = vmul.f32 %v526, %v753
      %v831 = vmul.f32 %v527, %v753
      %v832 = vmul.f32 %v528, %v753
      %v833 = vmul.f32 %v529, %v753
      %v834 = vmul.f32 %v530, %v753
      %v835 = vmul.f32 %v531, %v753
      %v836 = vmul.f32 %v532, %v753
      %v837 = vmul.f32 %v533, %v753
      %v838 = vmul.f32 %v534, %v755
      %v839 = vmul.f32 %v535, %v755
      %v840 = vmul.f32 %v536, %v755
      %v841 = vmul.f32 %v537, %v755
      %v842 = vmul.f32 %v538, %v755
      %v843 = vmul.f32 %v539, %v755
      %v844 = vmul.f32 %v540, %v755
      %v845 = vmul.f32 %v541, %v755
      %v846 = vmul.f32 %v542, %v757
      %v847 = vmul.f32 %v543, %v757
      %v848 = vmul.f32 %v544, %v757
      %v849 = vmul.f32 %v545, %v757
      %v850 = vmul.f32 %v546, %v757
      %v851 = vmul.f32 %v547, %v757
      %v852 = vmul.f32 %v548, %v757
      %v853 = vmul.f32 %v549, %v757
      %v854 = vmul.f32 %v550, %v759
      %v855 = vmul.f32 %v551, %v759
      %v856 = vmul.f32 %v552, %v759
      %v857 = vmul.f32 %v553, %v759
      %v858 = vmul.f32 %v554, %v759
      %v859 = vmul.f32 %v555, %v759
      %v860 = vmul.f32 %v556, %v759
      %v861 = vmul.f32 %v557, %v759
      %v862 = vmul.f32 %v558, %v761
      %v863 = vmul.f32 %v559, %v761
      %v864 = vmul.f32 %v560, %v761
      %v865 = vmul.f32 %v561, %v761
      %v866 = vmul.f32 %v562, %v761
      %v867 = vmul.f32 %v563, %v761
      %v868 = vmul.f32 %v564, %v761
      %v869 = vmul.f32 %v565, %v761
      %v870 = vmul.f32 %v566, %v763
      %v871 = vmul.f32 %v567, %v763
      %v872 = vmul.f32 %v568, %v763
      %v873 = vmul.f32 %v569, %v763
      %v874 = vmul.f32 %v570, %v763
      %v875 = vmul.f32 %v571, %v763
      %v876 = vmul.f32 %v572, %v763
      %v877 = vmul.f32 %v573, %v763
      %v878 = vmul.f32 %v574, %v765
      %v879 = vmul.f32 %v575, %v765
      %v880 = vmul.f32 %v576, %v765
      %v881 = vmul.f32 %v577, %v765
      %v882 = vmul.f32 %v578, %v765
      %v883 = vmul.f32 %v579, %v765
      %v884 = vmul.f32 %v580, %v765
      %v885 = vmul.f32 %v581, %v765
      %v886 = vmul.f32 %v582, %v767
      %v887 = vmul.f32 %v583, %v767
      %v888 = vmul.f32 %v584, %v767
      %v889 = vmul.f32 %v585, %v767
      %v890 = vmul.f32 %v586, %v767
      %v891 = vmul.f32 %v587, %v767
      %v892 = vmul.f32 %v588, %v767
      %v893 = vmul.f32 %v589, %v767
      %v894 = vmul.f32 %v590, %v769
      %v895 = vmul.f32 %v591, %v769
      %v896 = vmul.f32 %v592, %v769
      %v897 = vmul.f32 %v593, %v769
      %v898 = vmul.f32 %v594, %v769
      %v899 = vmul.f32 %v595, %v769
      %v900 = vmul.f32 %v596, %v769
      %v901 = vmul.f32 %v597, %v769
      %v902 = vmul.f32 %v598, %v771
      %v903 = vmul.f32 %v599, %v771
      %v904 = vmul.f32 %v600, %v771
      %v905 = vmul.f32 %v601, %v771
      %v906 = vmul.f32 %v602, %v771
      %v907 = vmul.f32 %v603, %v771
      %v908 = vmul.f32 %v604, %v771
      %v909 = vmul.f32 %v605, %v771
      %v910 = vmul.f32 %v606, %v773
      %v911 = vmul.f32 %v607, %v773
      %v912 = vmul.f32 %v608, %v773
      %v913 = vmul.f32 %v609, %v773
      %v914 = vmul.f32 %v610, %v773
      %v915 = vmul.f32 %v611, %v773
      %v916 = vmul.f32 %v612, %v773
      %v917 = vmul.f32 %v613, %v773
      %v918 = vld [vmem:[%s3] sm:$0xff]
      %v919 = vld [vmem:[%s3 + $0x8] sm:$0xff]
      %v920 = vld [vmem:[%s3 + $0x10] sm:$0xff]
      %v921 = vld [vmem:[%s3 + $0x18] sm:$0xff]
      %v922 = vld [vmem:[%s3 + $0x20] sm:$0xff]
      %v923 = vld [vmem:[%s3 + $0x28] sm:$0xff]
      %v924 = vld [vmem:[%s3 + $0x30] sm:$0xff]
      %v925 = vld [vmem:[%s3 + $0x38] sm:$0xff]
      %vm926 = vcmask 523264
      %v928 = vsel %vm926, %v790, 0
      %v931 = vsel %vm926, %v791, 0
      %v934 = vsel %vm926, %v792, 0
      %v937 = vsel %vm926, %v793, 0
      %v940 = vsel %vm926, %v794, 0
      %v943 = vsel %vm926, %v795, 0
      %v946 = vsel %vm926, %v796, 0
      %v949 = vsel %vm926, %v797, 0
      %v952 = vsel %vm926, %v798, 0
      %v955 = vsel %vm926, %v799, 0
      %v958 = vsel %vm926, %v800, 0
      %v961 = vsel %vm926, %v801, 0
      %v964 = vsel %vm926, %v802, 0
      %v967 = vsel %vm926, %v803, 0
      %v970 = vsel %vm926, %v804, 0
      %v973 = vsel %vm926, %v805, 0
      %v976 = vsel %vm926, %v806, 0
      %v979 = vsel %vm926, %v807, 0
      %v982 = vsel %vm926, %v808, 0
      %v985 = vsel %vm926, %v809, 0
      %v988 = vsel %vm926, %v810, 0
      %v991 = vsel %vm926, %v811, 0
      %v994 = vsel %vm926, %v812, 0
      %v997 = vsel %vm926, %v813, 0
      %v1000 = vsel %vm926, %v814, 0
      %v1003 = vsel %vm926, %v815, 0
      %v1006 = vsel %vm926, %v816, 0
      %v1009 = vsel %vm926, %v817, 0
      %v1012 = vsel %vm926, %v818, 0
      %v1015 = vsel %vm926, %v819, 0
      %v1018 = vsel %vm926, %v820, 0
      %v1021 = vsel %vm926, %v821, 0
      %v1024 = vsel %vm926, %v822, 0
      %v1027 = vsel %vm926, %v823, 0
      %v1030 = vsel %vm926, %v824, 0
      %v1033 = vsel %vm926, %v825, 0
      %v1036 = vsel %vm926, %v826, 0
      %v1039 = vsel %vm926, %v827, 0
      %v1042 = vsel %vm926, %v828, 0
      %v1045 = vsel %vm926, %v829, 0
      %v1048 = vsel %vm926, %v830, 0
      %v1051 = vsel %vm926, %v831, 0
      %v1054 = vsel %vm926, %v832, 0
      %v1057 = vsel %vm926, %v833, 0
      %v1060 = vsel %vm926, %v834, 0
      %v1063 = vsel %vm926, %v835, 0
      %v1066 = vsel %vm926, %v836, 0
      %v1069 = vsel %vm926, %v837, 0
      %v1072 = vsel %vm926, %v838, 0
      %v1075 = vsel %vm926, %v839, 0
      %v1078 = vsel %vm926, %v840, 0
      %v1081 = vsel %vm926, %v841, 0
      %v1084 = vsel %vm926, %v842, 0
      %v1087 = vsel %vm926, %v843, 0
      %v1090 = vsel %vm926, %v844, 0
      %v1093 = vsel %vm926, %v845, 0
      %v1096 = vsel %vm926, %v846, 0
      %v1099 = vsel %vm926, %v847, 0
      %v1102 = vsel %vm926, %v848, 0
      %v1105 = vsel %vm926, %v849, 0
      %v1108 = vsel %vm926, %v850, 0
      %v1111 = vsel %vm926, %v851, 0
      %v1114 = vsel %vm926, %v852, 0
      %v1117 = vsel %vm926, %v853, 0
      %v1120 = vsel %vm926, %v854, 0
      %v1123 = vsel %vm926, %v855, 0
      %v1126 = vsel %vm926, %v856, 0
      %v1129 = vsel %vm926, %v857, 0
      %v1132 = vsel %vm926, %v858, 0
      %v1135 = vsel %vm926, %v859, 0
      %v1138 = vsel %vm926, %v860, 0
      %v1141 = vsel %vm926, %v861, 0
      %v1144 = vsel %vm926, %v862, 0
      %v1147 = vsel %vm926, %v863, 0
      %v1150 = vsel %vm926, %v864, 0
      %v1153 = vsel %vm926, %v865, 0
      %v1156 = vsel %vm926, %v866, 0
      %v1159 = vsel %vm926, %v867, 0
      %v1162 = vsel %vm926, %v868, 0
      %v1165 = vsel %vm926, %v869, 0
      %v1168 = vsel %vm926, %v870, 0
      %v1171 = vsel %vm926, %v871, 0
      %v1174 = vsel %vm926, %v872, 0
      %v1177 = vsel %vm926, %v873, 0
      %v1180 = vsel %vm926, %v874, 0
      %v1183 = vsel %vm926, %v875, 0
      %v1186 = vsel %vm926, %v876, 0
      %v1189 = vsel %vm926, %v877, 0
      %v1192 = vsel %vm926, %v878, 0
      %v1195 = vsel %vm926, %v879, 0
      %v1198 = vsel %vm926, %v880, 0
      %v1201 = vsel %vm926, %v881, 0
      %v1204 = vsel %vm926, %v882, 0
      %v1207 = vsel %vm926, %v883, 0
      %v1210 = vsel %vm926, %v884, 0
      %v1213 = vsel %vm926, %v885, 0
      %v1216 = vsel %vm926, %v886, 0
      %v1219 = vsel %vm926, %v887, 0
      %v1222 = vsel %vm926, %v888, 0
      %v1225 = vsel %vm926, %v889, 0
      %v1228 = vsel %vm926, %v890, 0
      %v1231 = vsel %vm926, %v891, 0
      %v1234 = vsel %vm926, %v892, 0
      %v1237 = vsel %vm926, %v893, 0
      %v1240 = vsel %vm926, %v894, 0
      %v1243 = vsel %vm926, %v895, 0
      %v1246 = vsel %vm926, %v896, 0
      %v1249 = vsel %vm926, %v897, 0
      %v1252 = vsel %vm926, %v898, 0
      %v1255 = vsel %vm926, %v899, 0
      %v1258 = vsel %vm926, %v900, 0
      %v1261 = vsel %vm926, %v901, 0
      %v1264 = vsel %vm926, %v902, 0
      %v1267 = vsel %vm926, %v903, 0
      %v1270 = vsel %vm926, %v904, 0
      %v1273 = vsel %vm926, %v905, 0
      %v1276 = vsel %vm926, %v906, 0
      %v1279 = vsel %vm926, %v907, 0
      %v1282 = vsel %vm926, %v908, 0
      %v1285 = vsel %vm926, %v909, 0
      %v1288 = vsel %vm926, %v910, 0
      %v1291 = vsel %vm926, %v911, 0
      %v1294 = vsel %vm926, %v912, 0
      %v1297 = vsel %vm926, %v913, 0
      %v1300 = vsel %vm926, %v914, 0
      %v1303 = vsel %vm926, %v915, 0
      %v1306 = vsel %vm926, %v916, 0
      %v1309 = vsel %vm926, %v917, 0
      %1311 = vmatpush.msra.mxu0 0.0
      %1312 = vmatpush.msra.mxu0 0.0
      %1313 = vmatpush.msra.mxu0 0.0
      %1314 = vmatpush.msra.mxu0 0.0
      %1315 = vmatpush.msra.mxu0 0.0
      %1316 = vmatpush.msra.mxu0 0.0
      %1317 = vmatpush.msra.mxu0 0.0
      %1318 = vmatpush.msra.mxu0 0.0
      %1319 = vmatpush.msra.mxu0 %v925
      %1320 = vmatpush.msra.mxu0 %v924
      %1321 = vmatpush.msra.mxu0 %v923
      %1322 = vmatpush.msra.mxu0 %v922
      %1323 = vmatpush.msra.mxu0 %v921
      %1324 = vmatpush.msra.mxu0 %v920
      %1325 = vmatpush.msra.mxu0 %v919
      %1326 = vmatpush.msra.mxu0 %v918
      %1327 = vmatmul.f32.gmra.mxu0 %v928
      %v1328 = vpop.f32.mrf.mxu0
      %v1329 = vadd.f32 0.0, %v1328
      %1330 = vmatmul.f32.gmra.mxu0 %v931
      %v1331 = vpop.f32.mrf.mxu0
      %v1332 = vadd.f32 0.0, %v1331
      %1333 = vmatmul.f32.gmra.mxu0 %v934
      %v1334 = vpop.f32.mrf.mxu0
      %v1335 = vadd.f32 0.0, %v1334
      %1336 = vmatmul.f32.gmra.mxu0 %v937
      %v1337 = vpop.f32.mrf.mxu0
      %v1338 = vadd.f32 0.0, %v1337
      %1339 = vmatmul.f32.gmra.mxu0 %v940
      %v1340 = vpop.f32.mrf.mxu0
      %v1341 = vadd.f32 0.0, %v1340
      %1342 = vmatmul.f32.gmra.mxu0 %v943
      %v1343 = vpop.f32.mrf.mxu0
      %v1344 = vadd.f32 0.0, %v1343
      %1345 = vmatmul.f32.gmra.mxu0 %v946
      %v1346 = vpop.f32.mrf.mxu0
      %v1347 = vadd.f32 0.0, %v1346
      %1348 = vmatmul.f32.gmra.mxu0 %v949
      %v1349 = vpop.f32.mrf.mxu0
      %v1350 = vadd.f32 0.0, %v1349
      %1351 = vmatmul.f32.gmra.mxu0 %v952
      %v1352 = vpop.f32.mrf.mxu0
      %v1353 = vadd.f32 0.0, %v1352
      %1354 = vmatmul.f32.gmra.mxu0 %v955
      %v1355 = vpop.f32.mrf.mxu0
      %v1356 = vadd.f32 0.0, %v1355
      %1357 = vmatmul.f32.gmra.mxu0 %v958
      %v1358 = vpop.f32.mrf.mxu0
      %v1359 = vadd.f32 0.0, %v1358
      %1360 = vmatmul.f32.gmra.mxu0 %v961
      %v1361 = vpop.f32.mrf.mxu0
      %v1362 = vadd.f32 0.0, %v1361
      %1363 = vmatmul.f32.gmra.mxu0 %v964
      %v1364 = vpop.f32.mrf.mxu0
      %v1365 = vadd.f32 0.0, %v1364
      %1366 = vmatmul.f32.gmra.mxu0 %v967
      %v1367 = vpop.f32.mrf.mxu0
      %v1368 = vadd.f32 0.0, %v1367
      %1369 = vmatmul.f32.gmra.mxu0 %v970
      %v1370 = vpop.f32.mrf.mxu0
      %v1371 = vadd.f32 0.0, %v1370
      %1372 = vmatmul.f32.gmra.mxu0 %v973
      %v1373 = vpop.f32.mrf.mxu0
      %v1374 = vadd.f32 0.0, %v1373
      %1375 = vmatmul.f32.gmra.mxu0 %v976
      %v1376 = vpop.f32.mrf.mxu0
      %v1377 = vadd.f32 0.0, %v1376
      %1378 = vmatmul.f32.gmra.mxu0 %v979
      %v1379 = vpop.f32.mrf.mxu0
      %v1380 = vadd.f32 0.0, %v1379
      %1381 = vmatmul.f32.gmra.mxu0 %v982
      %v1382 = vpop.f32.mrf.mxu0
      %v1383 = vadd.f32 0.0, %v1382
      %1384 = vmatmul.f32.gmra.mxu0 %v985
      %v1385 = vpop.f32.mrf.mxu0
      %v1386 = vadd.f32 0.0, %v1385
      %1387 = vmatmul.f32.gmra.mxu0 %v988
      %v1388 = vpop.f32.mrf.mxu0
      %v1389 = vadd.f32 0.0, %v1388
      %1390 = vmatmul.f32.gmra.mxu0 %v991
      %v1391 = vpop.f32.mrf.mxu0
      %v1392 = vadd.f32 0.0, %v1391
      %1393 = vmatmul.f32.gmra.mxu0 %v994
      %v1394 = vpop.f32.mrf.mxu0
      %v1395 = vadd.f32 0.0, %v1394
      %1396 = vmatmul.f32.gmra.mxu0 %v997
      %v1397 = vpop.f32.mrf.mxu0
      %v1398 = vadd.f32 0.0, %v1397
      %1399 = vmatmul.f32.gmra.mxu0 %v1000
      %v1400 = vpop.f32.mrf.mxu0
      %v1401 = vadd.f32 0.0, %v1400
      %1402 = vmatmul.f32.gmra.mxu0 %v1003
      %v1403 = vpop.f32.mrf.mxu0
      %v1404 = vadd.f32 0.0, %v1403
      %1405 = vmatmul.f32.gmra.mxu0 %v1006
      %v1406 = vpop.f32.mrf.mxu0
      %v1407 = vadd.f32 0.0, %v1406
      %1408 = vmatmul.f32.gmra.mxu0 %v1009
      %v1409 = vpop.f32.mrf.mxu0
      %v1410 = vadd.f32 0.0, %v1409
      %1411 = vmatmul.f32.gmra.mxu0 %v1012
      %v1412 = vpop.f32.mrf.mxu0
      %v1413 = vadd.f32 0.0, %v1412
      %1414 = vmatmul.f32.gmra.mxu0 %v1015
      %v1415 = vpop.f32.mrf.mxu0
      %v1416 = vadd.f32 0.0, %v1415
      %1417 = vmatmul.f32.gmra.mxu0 %v1018
      %v1418 = vpop.f32.mrf.mxu0
      %v1419 = vadd.f32 0.0, %v1418
      %1420 = vmatmul.f32.gmra.mxu0 %v1021
      %v1421 = vpop.f32.mrf.mxu0
      %v1422 = vadd.f32 0.0, %v1421
      %1423 = vmatmul.f32.gmra.mxu0 %v1024
      %v1424 = vpop.f32.mrf.mxu0
      %v1425 = vadd.f32 0.0, %v1424
      %1426 = vmatmul.f32.gmra.mxu0 %v1027
      %v1427 = vpop.f32.mrf.mxu0
      %v1428 = vadd.f32 0.0, %v1427
      %1429 = vmatmul.f32.gmra.mxu0 %v1030
      %v1430 = vpop.f32.mrf.mxu0
      %v1431 = vadd.f32 0.0, %v1430
      %1432 = vmatmul.f32.gmra.mxu0 %v1033
      %v1433 = vpop.f32.mrf.mxu0
      %v1434 = vadd.f32 0.0, %v1433
      %1435 = vmatmul.f32.gmra.mxu0 %v1036
      %v1436 = vpop.f32.mrf.mxu0
      %v1437 = vadd.f32 0.0, %v1436
      %1438 = vmatmul.f32.gmra.mxu0 %v1039
      %v1439 = vpop.f32.mrf.mxu0
      %v1440 = vadd.f32 0.0, %v1439
      %1441 = vmatmul.f32.gmra.mxu0 %v1042
      %v1442 = vpop.f32.mrf.mxu0
      %v1443 = vadd.f32 0.0, %v1442
      %1444 = vmatmul.f32.gmra.mxu0 %v1045
      %v1445 = vpop.f32.mrf.mxu0
      %v1446 = vadd.f32 0.0, %v1445
      %1447 = vmatmul.f32.gmra.mxu0 %v1048
      %v1448 = vpop.f32.mrf.mxu0
      %v1449 = vadd.f32 0.0, %v1448
      %1450 = vmatmul.f32.gmra.mxu0 %v1051
      %v1451 = vpop.f32.mrf.mxu0
      %v1452 = vadd.f32 0.0, %v1451
      %1453 = vmatmul.f32.gmra.mxu0 %v1054
      %v1454 = vpop.f32.mrf.mxu0
      %v1455 = vadd.f32 0.0, %v1454
      %1456 = vmatmul.f32.gmra.mxu0 %v1057
      %v1457 = vpop.f32.mrf.mxu0
      %v1458 = vadd.f32 0.0, %v1457
      %1459 = vmatmul.f32.gmra.mxu0 %v1060
      %v1460 = vpop.f32.mrf.mxu0
      %v1461 = vadd.f32 0.0, %v1460
      %1462 = vmatmul.f32.gmra.mxu0 %v1063
      %v1463 = vpop.f32.mrf.mxu0
      %v1464 = vadd.f32 0.0, %v1463
      %1465 = vmatmul.f32.gmra.mxu0 %v1066
      %v1466 = vpop.f32.mrf.mxu0
      %v1467 = vadd.f32 0.0, %v1466
      %1468 = vmatmul.f32.gmra.mxu0 %v1069
      %v1469 = vpop.f32.mrf.mxu0
      %v1470 = vadd.f32 0.0, %v1469
      %1471 = vmatmul.f32.gmra.mxu0 %v1072
      %v1472 = vpop.f32.mrf.mxu0
      %v1473 = vadd.f32 0.0, %v1472
      %1474 = vmatmul.f32.gmra.mxu0 %v1075
      %v1475 = vpop.f32.mrf.mxu0
      %v1476 = vadd.f32 0.0, %v1475
      %1477 = vmatmul.f32.gmra.mxu0 %v1078
      %v1478 = vpop.f32.mrf.mxu0
      %v1479 = vadd.f32 0.0, %v1478
      %1480 = vmatmul.f32.gmra.mxu0 %v1081
      %v1481 = vpop.f32.mrf.mxu0
      %v1482 = vadd.f32 0.0, %v1481
      %1483 = vmatmul.f32.gmra.mxu0 %v1084
      %v1484 = vpop.f32.mrf.mxu0
      %v1485 = vadd.f32 0.0, %v1484
      %1486 = vmatmul.f32.gmra.mxu0 %v1087
      %v1487 = vpop.f32.mrf.mxu0
      %v1488 = vadd.f32 0.0, %v1487
      %1489 = vmatmul.f32.gmra.mxu0 %v1090
      %v1490 = vpop.f32.mrf.mxu0
      %v1491 = vadd.f32 0.0, %v1490
      %1492 = vmatmul.f32.gmra.mxu0 %v1093
      %v1493 = vpop.f32.mrf.mxu0
      %v1494 = vadd.f32 0.0, %v1493
      %1495 = vmatmul.f32.gmra.mxu0 %v1096
      %v1496 = vpop.f32.mrf.mxu0
      %v1497 = vadd.f32 0.0, %v1496
      %1498 = vmatmul.f32.gmra.mxu0 %v1099
      %v1499 = vpop.f32.mrf.mxu0
      %v1500 = vadd.f32 0.0, %v1499
      %1501 = vmatmul.f32.gmra.mxu0 %v1102
      %v1502 = vpop.f32.mrf.mxu0
      %v1503 = vadd.f32 0.0, %v1502
      %1504 = vmatmul.f32.gmra.mxu0 %v1105
      %v1505 = vpop.f32.mrf.mxu0
      %v1506 = vadd.f32 0.0, %v1505
      %1507 = vmatmul.f32.gmra.mxu0 %v1108
      %v1508 = vpop.f32.mrf.mxu0
      %v1509 = vadd.f32 0.0, %v1508
      %1510 = vmatmul.f32.gmra.mxu0 %v1111
      %v1511 = vpop.f32.mrf.mxu0
      %v1512 = vadd.f32 0.0, %v1511
      %1513 = vmatmul.f32.gmra.mxu0 %v1114
      %v1514 = vpop.f32.mrf.mxu0
      %v1515 = vadd.f32 0.0, %v1514
      %1516 = vmatmul.f32.gmra.mxu0 %v1117
      %v1517 = vpop.f32.mrf.mxu0
      %v1518 = vadd.f32 0.0, %v1517
      %1519 = vmatmul.f32.gmra.mxu0 %v1120
      %v1520 = vpop.f32.mrf.mxu0
      %v1521 = vadd.f32 0.0, %v1520
      %1522 = vmatmul.f32.gmra.mxu0 %v1123
      %v1523 = vpop.f32.mrf.mxu0
      %v1524 = vadd.f32 0.0, %v1523
      %1525 = vmatmul.f32.gmra.mxu0 %v1126
      %v1526 = vpop.f32.mrf.mxu0
      %v1527 = vadd.f32 0.0, %v1526
      %1528 = vmatmul.f32.gmra.mxu0 %v1129
      %v1529 = vpop.f32.mrf.mxu0
      %v1530 = vadd.f32 0.0, %v1529
      %1531 = vmatmul.f32.gmra.mxu0 %v1132
      %v1532 = vpop.f32.mrf.mxu0
      %v1533 = vadd.f32 0.0, %v1532
      %1534 = vmatmul.f32.gmra.mxu0 %v1135
      %v1535 = vpop.f32.mrf.mxu0
      %v1536 = vadd.f32 0.0, %v1535
      %1537 = vmatmul.f32.gmra.mxu0 %v1138
      %v1538 = vpop.f32.mrf.mxu0
      %v1539 = vadd.f32 0.0, %v1538
      %1540 = vmatmul.f32.gmra.mxu0 %v1141
      %v1541 = vpop.f32.mrf.mxu0
      %v1542 = vadd.f32 0.0, %v1541
      %1543 = vmatmul.f32.gmra.mxu0 %v1144
      %v1544 = vpop.f32.mrf.mxu0
      %v1545 = vadd.f32 0.0, %v1544
      %1546 = vmatmul.f32.gmra.mxu0 %v1147
      %v1547 = vpop.f32.mrf.mxu0
      %v1548 = vadd.f32 0.0, %v1547
      %1549 = vmatmul.f32.gmra.mxu0 %v1150
      %v1550 = vpop.f32.mrf.mxu0
      %v1551 = vadd.f32 0.0, %v1550
      %1552 = vmatmul.f32.gmra.mxu0 %v1153
      %v1553 = vpop.f32.mrf.mxu0
      %v1554 = vadd.f32 0.0, %v1553
      %1555 = vmatmul.f32.gmra.mxu0 %v1156
      %v1556 = vpop.f32.mrf.mxu0
      %v1557 = vadd.f32 0.0, %v1556
      %1558 = vmatmul.f32.gmra.mxu0 %v1159
      %v1559 = vpop.f32.mrf.mxu0
      %v1560 = vadd.f32 0.0, %v1559
      %1561 = vmatmul.f32.gmra.mxu0 %v1162
      %v1562 = vpop.f32.mrf.mxu0
      %v1563 = vadd.f32 0.0, %v1562
      %1564 = vmatmul.f32.gmra.mxu0 %v1165
      %v1565 = vpop.f32.mrf.mxu0
      %v1566 = vadd.f32 0.0, %v1565
      %1567 = vmatmul.f32.gmra.mxu0 %v1168
      %v1568 = vpop.f32.mrf.mxu0
      %v1569 = vadd.f32 0.0, %v1568
      %1570 = vmatmul.f32.gmra.mxu0 %v1171
      %v1571 = vpop.f32.mrf.mxu0
      %v1572 = vadd.f32 0.0, %v1571
      %1573 = vmatmul.f32.gmra.mxu0 %v1174
      %v1574 = vpop.f32.mrf.mxu0
      %v1575 = vadd.f32 0.0, %v1574
      %1576 = vmatmul.f32.gmra.mxu0 %v1177
      %v1577 = vpop.f32.mrf.mxu0
      %v1578 = vadd.f32 0.0, %v1577
      %1579 = vmatmul.f32.gmra.mxu0 %v1180
      %v1580 = vpop.f32.mrf.mxu0
      %v1581 = vadd.f32 0.0, %v1580
      %1582 = vmatmul.f32.gmra.mxu0 %v1183
      %v1583 = vpop.f32.mrf.mxu0
      %v1584 = vadd.f32 0.0, %v1583
      %1585 = vmatmul.f32.gmra.mxu0 %v1186
      %v1586 = vpop.f32.mrf.mxu0
      %v1587 = vadd.f32 0.0, %v1586
      %1588 = vmatmul.f32.gmra.mxu0 %v1189
      %v1589 = vpop.f32.mrf.mxu0
      %v1590 = vadd.f32 0.0, %v1589
      %1591 = vmatmul.f32.gmra.mxu0 %v1192
      %v1592 = vpop.f32.mrf.mxu0
      %v1593 = vadd.f32 0.0, %v1592
      %1594 = vmatmul.f32.gmra.mxu0 %v1195
      %v1595 = vpop.f32.mrf.mxu0
      %v1596 = vadd.f32 0.0, %v1595
      %1597 = vmatmul.f32.gmra.mxu0 %v1198
      %v1598 = vpop.f32.mrf.mxu0
      %v1599 = vadd.f32 0.0, %v1598
      %1600 = vmatmul.f32.gmra.mxu0 %v1201
      %v1601 = vpop.f32.mrf.mxu0
      %v1602 = vadd.f32 0.0, %v1601
      %1603 = vmatmul.f32.gmra.mxu0 %v1204
      %v1604 = vpop.f32.mrf.mxu0
      %v1605 = vadd.f32 0.0, %v1604
      %1606 = vmatmul.f32.gmra.mxu0 %v1207
      %v1607 = vpop.f32.mrf.mxu0
      %v1608 = vadd.f32 0.0, %v1607
      %1609 = vmatmul.f32.gmra.mxu0 %v1210
      %v1610 = vpop.f32.mrf.mxu0
      %v1611 = vadd.f32 0.0, %v1610
      %1612 = vmatmul.f32.gmra.mxu0 %v1213
      %v1613 = vpop.f32.mrf.mxu0
      %v1614 = vadd.f32 0.0, %v1613
      %1615 = vmatmul.f32.gmra.mxu0 %v1216
      %v1616 = vpop.f32.mrf.mxu0
      %v1617 = vadd.f32 0.0, %v1616
      %1618 = vmatmul.f32.gmra.mxu0 %v1219
      %v1619 = vpop.f32.mrf.mxu0
      %v1620 = vadd.f32 0.0, %v1619
      %1621 = vmatmul.f32.gmra.mxu0 %v1222
      %v1622 = vpop.f32.mrf.mxu0
      %v1623 = vadd.f32 0.0, %v1622
      %1624 = vmatmul.f32.gmra.mxu0 %v1225
      %v1625 = vpop.f32.mrf.mxu0
      %v1626 = vadd.f32 0.0, %v1625
      %1627 = vmatmul.f32.gmra.mxu0 %v1228
      %v1628 = vpop.f32.mrf.mxu0
      %v1629 = vadd.f32 0.0, %v1628
      %1630 = vmatmul.f32.gmra.mxu0 %v1231
      %v1631 = vpop.f32.mrf.mxu0
      %v1632 = vadd.f32 0.0, %v1631
      %1633 = vmatmul.f32.gmra.mxu0 %v1234
      %v1634 = vpop.f32.mrf.mxu0
      %v1635 = vadd.f32 0.0, %v1634
      %1636 = vmatmul.f32.gmra.mxu0 %v1237
      %v1637 = vpop.f32.mrf.mxu0
      %v1638 = vadd.f32 0.0, %v1637
      %1639 = vmatmul.f32.gmra.mxu0 %v1240
      %v1640 = vpop.f32.mrf.mxu0
      %v1641 = vadd.f32 0.0, %v1640
      %1642 = vmatmul.f32.gmra.mxu0 %v1243
      %v1643 = vpop.f32.mrf.mxu0
      %v1644 = vadd.f32 0.0, %v1643
      %1645 = vmatmul.f32.gmra.mxu0 %v1246
      %v1646 = vpop.f32.mrf.mxu0
      %v1647 = vadd.f32 0.0, %v1646
      %1648 = vmatmul.f32.gmra.mxu0 %v1249
      %v1649 = vpop.f32.mrf.mxu0
      %v1650 = vadd.f32 0.0, %v1649
      %1651 = vmatmul.f32.gmra.mxu0 %v1252
      %v1652 = vpop.f32.mrf.mxu0
      %v1653 = vadd.f32 0.0, %v1652
      %1654 = vmatmul.f32.gmra.mxu0 %v1255
      %v1655 = vpop.f32.mrf.mxu0
      %v1656 = vadd.f32 0.0, %v1655
      %1657 = vmatmul.f32.gmra.mxu0 %v1258
      %v1658 = vpop.f32.mrf.mxu0
      %v1659 = vadd.f32 0.0, %v1658
      %1660 = vmatmul.f32.gmra.mxu0 %v1261
      %v1661 = vpop.f32.mrf.mxu0
      %v1662 = vadd.f32 0.0, %v1661
      %1663 = vmatmul.f32.gmra.mxu0 %v1264
      %v1664 = vpop.f32.mrf.mxu0
      %v1665 = vadd.f32 0.0, %v1664
      %1666 = vmatmul.f32.gmra.mxu0 %v1267
      %v1667 = vpop.f32.mrf.mxu0
      %v1668 = vadd.f32 0.0, %v1667
      %1669 = vmatmul.f32.gmra.mxu0 %v1270
      %v1670 = vpop.f32.mrf.mxu0
      %v1671 = vadd.f32 0.0, %v1670
      %1672 = vmatmul.f32.gmra.mxu0 %v1273
      %v1673 = vpop.f32.mrf.mxu0
      %v1674 = vadd.f32 0.0, %v1673
      %1675 = vmatmul.f32.gmra.mxu0 %v1276
      %v1676 = vpop.f32.mrf.mxu0
      %v1677 = vadd.f32 0.0, %v1676
      %1678 = vmatmul.f32.gmra.mxu0 %v1279
      %v1679 = vpop.f32.mrf.mxu0
      %v1680 = vadd.f32 0.0, %v1679
      %1681 = vmatmul.f32.gmra.mxu0 %v1282
      %v1682 = vpop.f32.mrf.mxu0
      %v1683 = vadd.f32 0.0, %v1682
      %1684 = vmatmul.f32.gmra.mxu0 %v1285
      %v1685 = vpop.f32.mrf.mxu0
      %v1686 = vadd.f32 0.0, %v1685
      %1687 = vmatmul.f32.gmra.mxu0 %v1288
      %v1688 = vpop.f32.mrf.mxu0
      %v1689 = vadd.f32 0.0, %v1688
      %1690 = vmatmul.f32.gmra.mxu0 %v1291
      %v1691 = vpop.f32.mrf.mxu0
      %v1692 = vadd.f32 0.0, %v1691
      %1693 = vmatmul.f32.gmra.mxu0 %v1294
      %v1694 = vpop.f32.mrf.mxu0
      %v1695 = vadd.f32 0.0, %v1694
      %1696 = vmatmul.f32.gmra.mxu0 %v1297
      %v1697 = vpop.f32.mrf.mxu0
      %v1698 = vadd.f32 0.0, %v1697
      %1699 = vmatmul.f32.gmra.mxu0 %v1300
      %v1700 = vpop.f32.mrf.mxu0
      %v1701 = vadd.f32 0.0, %v1700
      %1702 = vmatmul.f32.gmra.mxu0 %v1303
      %v1703 = vpop.f32.mrf.mxu0
      %v1704 = vadd.f32 0.0, %v1703
      %1705 = vmatmul.f32.gmra.mxu0 %v1306
      %v1706 = vpop.f32.mrf.mxu0
      %v1707 = vadd.f32 0.0, %v1706
      %1708 = vmatmul.f32.gmra.mxu0 %v1309
      %v1709 = vpop.f32.mrf.mxu0
      %v1710 = vadd.f32 0.0, %v1709
      %1711 = vdwg.mxu0
      %v1712 = vld [vmem:[%s218] sm:$0xff]
      %v1713 = vld [vmem:[%s218 + $0x8] sm:$0xff]
      %v1714 = vld [vmem:[%s218 + $0x10] sm:$0xff]
      %v1715 = vld [vmem:[%s218 + $0x18] sm:$0xff]
      %v1716 = vld [vmem:[%s218 + $0x20] sm:$0xff]
      %v1717 = vld [vmem:[%s218 + $0x28] sm:$0xff]
      %v1718 = vld [vmem:[%s218 + $0x30] sm:$0xff]
      %v1719 = vld [vmem:[%s218 + $0x38] sm:$0xff]
      %v1720 = vld [vmem:[%s218 + $0x40] sm:$0xff]
      %v1721 = vld [vmem:[%s218 + $0x48] sm:$0xff]
      %v1722 = vld [vmem:[%s218 + $0x50] sm:$0xff]
      %v1723 = vld [vmem:[%s218 + $0x58] sm:$0xff]
      %v1724 = vld [vmem:[%s218 + $0x60] sm:$0xff]
      %v1725 = vld [vmem:[%s218 + $0x68] sm:$0xff]
      %v1726 = vld [vmem:[%s218 + $0x70] sm:$0xff]
      %v1727 = vld [vmem:[%s218 + $0x78] sm:$0xff]
      %v1728 = vld [vmem:[%s218 + $0x80] sm:$0xff]
      %v1729 = vld [vmem:[%s218 + $0x88] sm:$0xff]
      %v1730 = vld [vmem:[%s218 + $0x90] sm:$0xff]
      %v1731 = vld [vmem:[%s218 + $0x98] sm:$0xff]
      %v1732 = vld [vmem:[%s218 + $0xa0] sm:$0xff]
      %v1733 = vld [vmem:[%s218 + $0xa8] sm:$0xff]
      %v1734 = vld [vmem:[%s218 + $0xb0] sm:$0xff]
      %v1735 = vld [vmem:[%s218 + $0xb8] sm:$0xff]
      %v1736 = vld [vmem:[%s218 + $0xc0] sm:$0xff]
      %v1737 = vld [vmem:[%s218 + $0xc8] sm:$0xff]
      %v1738 = vld [vmem:[%s218 + $0xd0] sm:$0xff]
      %v1739 = vld [vmem:[%s218 + $0xd8] sm:$0xff]
      %v1740 = vld [vmem:[%s218 + $0xe0] sm:$0xff]
      %v1741 = vld [vmem:[%s218 + $0xe8] sm:$0xff]
      %v1742 = vld [vmem:[%s218 + $0xf0] sm:$0xff]
      %v1743 = vld [vmem:[%s218 + $0xf8] sm:$0xff]
      %v1744 = vcvt.f32.s32.to.zero.pseudo %v1712
      %v1745 = vcvt.f32.s32.to.zero.pseudo %v1713
      %v1746 = vcvt.f32.s32.to.zero.pseudo %v1714
      %v1747 = vcvt.f32.s32.to.zero.pseudo %v1715
      %v1748 = vcvt.f32.s32.to.zero.pseudo %v1716
      %v1749 = vcvt.f32.s32.to.zero.pseudo %v1717
      %v1750 = vcvt.f32.s32.to.zero.pseudo %v1718
      %v1751 = vcvt.f32.s32.to.zero.pseudo %v1719
      %v1752 = vcvt.f32.s32.to.zero.pseudo %v1720
      %v1753 = vcvt.f32.s32.to.zero.pseudo %v1721
      %v1754 = vcvt.f32.s32.to.zero.pseudo %v1722
      %v1755 = vcvt.f32.s32.to.zero.pseudo %v1723
      %v1756 = vcvt.f32.s32.to.zero.pseudo %v1724
      %v1757 = vcvt.f32.s32.to.zero.pseudo %v1725
      %v1758 = vcvt.f32.s32.to.zero.pseudo %v1726
      %v1759 = vcvt.f32.s32.to.zero.pseudo %v1727
      %v1760 = vcvt.f32.s32.to.zero.pseudo %v1728
      %v1761 = vcvt.f32.s32.to.zero.pseudo %v1729
      %v1762 = vcvt.f32.s32.to.zero.pseudo %v1730
      %v1763 = vcvt.f32.s32.to.zero.pseudo %v1731
      %v1764 = vcvt.f32.s32.to.zero.pseudo %v1732
      %v1765 = vcvt.f32.s32.to.zero.pseudo %v1733
      %v1766 = vcvt.f32.s32.to.zero.pseudo %v1734
      %v1767 = vcvt.f32.s32.to.zero.pseudo %v1735
      %v1768 = vcvt.f32.s32.to.zero.pseudo %v1736
      %v1769 = vcvt.f32.s32.to.zero.pseudo %v1737
      %v1770 = vcvt.f32.s32.to.zero.pseudo %v1738
      %v1771 = vcvt.f32.s32.to.zero.pseudo %v1739
      %v1772 = vcvt.f32.s32.to.zero.pseudo %v1740
      %v1773 = vcvt.f32.s32.to.zero.pseudo %v1741
      %v1774 = vcvt.f32.s32.to.zero.pseudo %v1742
      %v1775 = vcvt.f32.s32.to.zero.pseudo %v1743
      %v1776 = vlaneseq
      %v1777 = vand.u32 %v1776, 127
      %1778 = vset.pattern.permute.xlu0 0
      %1779 = vperm.xlu0 %1778, %v1744
      %v1780 = vpop.permute.xlu0 %1779
      %1781 = vset.pattern.permute.xlu0 0
      %1782 = vperm.xlu0 %1781, %v1745
      %v1783 = vpop.permute.xlu0 %1782
      %1784 = vset.pattern.permute.xlu0 0
      %1785 = vperm.xlu0 %1784, %v1746
      %v1786 = vpop.permute.xlu0 %1785
      %1787 = vset.pattern.permute.xlu0 0
      %1788 = vperm.xlu0 %1787, %v1747
      %v1789 = vpop.permute.xlu0 %1788
      %1790 = vset.pattern.permute.xlu0 0
      %1791 = vperm.xlu0 %1790, %v1748
      %v1792 = vpop.permute.xlu0 %1791
      %1793 = vset.pattern.permute.xlu0 0
      %1794 = vperm.xlu0 %1793, %v1749
      %v1795 = vpop.permute.xlu0 %1794
      %1796 = vset.pattern.permute.xlu0 0
      %1797 = vperm.xlu0 %1796, %v1750
      %v1798 = vpop.permute.xlu0 %1797
      %1799 = vset.pattern.permute.xlu0 0
      %1800 = vperm.xlu0 %1799, %v1751
      %v1801 = vpop.permute.xlu0 %1800
      %1802 = vset.pattern.permute.xlu0 0
      %1803 = vperm.xlu0 %1802, %v1752
      %v1804 = vpop.permute.xlu0 %1803
      %1805 = vset.pattern.permute.xlu0 0
      %1806 = vperm.xlu0 %1805, %v1753
      %v1807 = vpop.permute.xlu0 %1806
      %1808 = vset.pattern.permute.xlu0 0
      %1809 = vperm.xlu0 %1808, %v1754
      %v1810 = vpop.permute.xlu0 %1809
      %1811 = vset.pattern.permute.xlu0 0
      %1812 = vperm.xlu0 %1811, %v1755
      %v1813 = vpop.permute.xlu0 %1812
      %1814 = vset.pattern.permute.xlu0 0
      %1815 = vperm.xlu0 %1814, %v1756
      %v1816 = vpop.permute.xlu0 %1815
      %1817 = vset.pattern.permute.xlu0 0
      %1818 = vperm.xlu0 %1817, %v1757
      %v1819 = vpop.permute.xlu0 %1818
      %1820 = vset.pattern.permute.xlu0 0
      %1821 = vperm.xlu0 %1820, %v1758
      %v1822 = vpop.permute.xlu0 %1821
      %1823 = vset.pattern.permute.xlu0 0
      %1824 = vperm.xlu0 %1823, %v1759
      %v1825 = vpop.permute.xlu0 %1824
      %1826 = vset.pattern.permute.xlu0 0
      %1827 = vperm.xlu0 %1826, %v1760
      %v1828 = vpop.permute.xlu0 %1827
      %1829 = vset.pattern.permute.xlu0 0
      %1830 = vperm.xlu0 %1829, %v1761
      %v1831 = vpop.permute.xlu0 %1830
      %1832 = vset.pattern.permute.xlu0 0
      %1833 = vperm.xlu0 %1832, %v1762
      %v1834 = vpop.permute.xlu0 %1833
      %1835 = vset.pattern.permute.xlu0 0
      %1836 = vperm.xlu0 %1835, %v1763
      %v1837 = vpop.permute.xlu0 %1836
      %1838 = vset.pattern.permute.xlu0 0
      %1839 = vperm.xlu0 %1838, %v1764
      %v1840 = vpop.permute.xlu0 %1839
      %1841 = vset.pattern.permute.xlu0 0
      %1842 = vperm.xlu0 %1841, %v1765
      %v1843 = vpop.permute.xlu0 %1842
      %1844 = vset.pattern.permute.xlu0 0
      %1845 = vperm.xlu0 %1844, %v1766
      %v1846 = vpop.permute.xlu0 %1845
      %1847 = vset.pattern.permute.xlu0 0
      %1848 = vperm.xlu0 %1847, %v1767
      %v1849 = vpop.permute.xlu0 %1848
      %1850 = vset.pattern.permute.xlu0 0
      %1851 = vperm.xlu0 %1850, %v1768
      %v1852 = vpop.permute.xlu0 %1851
      %1853 = vset.pattern.permute.xlu0 0
      %1854 = vperm.xlu0 %1853, %v1769
      %v1855 = vpop.permute.xlu0 %1854
      %1856 = vset.pattern.permute.xlu0 0
      %1857 = vperm.xlu0 %1856, %v1770
      %v1858 = vpop.permute.xlu0 %1857
      %1859 = vset.pattern.permute.xlu0 0
      %1860 = vperm.xlu0 %1859, %v1771
      %v1861 = vpop.permute.xlu0 %1860
      %1862 = vset.pattern.permute.xlu0 0
      %1863 = vperm.xlu0 %1862, %v1772
      %v1864 = vpop.permute.xlu0 %1863
      %1865 = vset.pattern.permute.xlu0 0
      %1866 = vperm.xlu0 %1865, %v1773
      %v1867 = vpop.permute.xlu0 %1866
      %1868 = vset.pattern.permute.xlu0 0
      %1869 = vperm.xlu0 %1868, %v1774
      %v1870 = vpop.permute.xlu0 %1869
      %1871 = vset.pattern.permute.xlu0 0
      %1872 = vperm.xlu0 %1871, %v1775
      %v1873 = vpop.permute.xlu0 %1872
      %vm1874 = vcmp.eq.s32.totalorder %v1777, %v1780
      %vm1875 = vcmp.eq.s32.totalorder %v1777, %v1783
      %vm1876 = vcmp.eq.s32.totalorder %v1777, %v1786
      %vm1877 = vcmp.eq.s32.totalorder %v1777, %v1789
      %vm1878 = vcmp.eq.s32.totalorder %v1777, %v1792
      %vm1879 = vcmp.eq.s32.totalorder %v1777, %v1795
      %vm1880 = vcmp.eq.s32.totalorder %v1777, %v1798
      %vm1881 = vcmp.eq.s32.totalorder %v1777, %v1801
      %vm1882 = vcmp.eq.s32.totalorder %v1777, %v1804
      %vm1883 = vcmp.eq.s32.totalorder %v1777, %v1807
      %vm1884 = vcmp.eq.s32.totalorder %v1777, %v1810
      %vm1885 = vcmp.eq.s32.totalorder %v1777, %v1813
      %vm1886 = vcmp.eq.s32.totalorder %v1777, %v1816
      %vm1887 = vcmp.eq.s32.totalorder %v1777, %v1819
      %vm1888 = vcmp.eq.s32.totalorder %v1777, %v1822
      %vm1889 = vcmp.eq.s32.totalorder %v1777, %v1825
      %vm1890 = vcmp.eq.s32.totalorder %v1777, %v1828
      %vm1891 = vcmp.eq.s32.totalorder %v1777, %v1831
      %vm1892 = vcmp.eq.s32.totalorder %v1777, %v1834
      %vm1893 = vcmp.eq.s32.totalorder %v1777, %v1837
      %vm1894 = vcmp.eq.s32.totalorder %v1777, %v1840
      %vm1895 = vcmp.eq.s32.totalorder %v1777, %v1843
      %vm1896 = vcmp.eq.s32.totalorder %v1777, %v1846
      %vm1897 = vcmp.eq.s32.totalorder %v1777, %v1849
      %vm1898 = vcmp.eq.s32.totalorder %v1777, %v1852
      %vm1899 = vcmp.eq.s32.totalorder %v1777, %v1855
      %vm1900 = vcmp.eq.s32.totalorder %v1777, %v1858
      %vm1901 = vcmp.eq.s32.totalorder %v1777, %v1861
      %vm1902 = vcmp.eq.s32.totalorder %v1777, %v1864
      %vm1903 = vcmp.eq.s32.totalorder %v1777, %v1867
      %vm1904 = vcmp.eq.s32.totalorder %v1777, %v1870
      %vm1905 = vcmp.eq.s32.totalorder %v1777, %v1873
      %1907 = vset.pattern.permute.xlu0 4
      %1908 = vperm.xlu0 %1907, %v1712
      %v1909 = vpop.permute.xlu0 %1908
      %1912 = vset.pattern.permute.xlu0 4
      %1913 = vperm.xlu0 %1912, %v1713
      %v1914 = vpop.permute.xlu0 %1913
      %1917 = vset.pattern.permute.xlu0 4
      %1918 = vperm.xlu0 %1917, %v1714
      %v1919 = vpop.permute.xlu0 %1918
      %1922 = vset.pattern.permute.xlu0 4
      %1923 = vperm.xlu0 %1922, %v1715
      %v1924 = vpop.permute.xlu0 %1923
      %1927 = vset.pattern.permute.xlu0 4
      %1928 = vperm.xlu0 %1927, %v1716
      %v1929 = vpop.permute.xlu0 %1928
      %1932 = vset.pattern.permute.xlu0 4
      %1933 = vperm.xlu0 %1932, %v1717
      %v1934 = vpop.permute.xlu0 %1933
      %1937 = vset.pattern.permute.xlu0 4
      %1938 = vperm.xlu0 %1937, %v1718
      %v1939 = vpop.permute.xlu0 %1938
      %1942 = vset.pattern.permute.xlu0 4
      %1943 = vperm.xlu0 %1942, %v1719
      %v1944 = vpop.permute.xlu0 %1943
      %1947 = vset.pattern.permute.xlu0 4
      %1948 = vperm.xlu0 %1947, %v1720
      %v1949 = vpop.permute.xlu0 %1948
      %1952 = vset.pattern.permute.xlu0 4
      %1953 = vperm.xlu0 %1952, %v1721
      %v1954 = vpop.permute.xlu0 %1953
      %1957 = vset.pattern.permute.xlu0 4
      %1958 = vperm.xlu0 %1957, %v1722
      %v1959 = vpop.permute.xlu0 %1958
      %1962 = vset.pattern.permute.xlu0 4
      %1963 = vperm.xlu0 %1962, %v1723
      %v1964 = vpop.permute.xlu0 %1963
      %1967 = vset.pattern.permute.xlu0 4
      %1968 = vperm.xlu0 %1967, %v1724
      %v1969 = vpop.permute.xlu0 %1968
      %1972 = vset.pattern.permute.xlu0 4
      %1973 = vperm.xlu0 %1972, %v1725
      %v1974 = vpop.permute.xlu0 %1973
      %1977 = vset.pattern.permute.xlu0 4
      %1978 = vperm.xlu0 %1977, %v1726
      %v1979 = vpop.permute.xlu0 %1978
      %1982 = vset.pattern.permute.xlu0 4
      %1983 = vperm.xlu0 %1982, %v1727
      %v1984 = vpop.permute.xlu0 %1983
      %1987 = vset.pattern.permute.xlu0 4
      %1988 = vperm.xlu0 %1987, %v1728
      %v1989 = vpop.permute.xlu0 %1988
      %1992 = vset.pattern.permute.xlu0 4
      %1993 = vperm.xlu0 %1992, %v1729
      %v1994 = vpop.permute.xlu0 %1993
      %1997 = vset.pattern.permute.xlu0 4
      %1998 = vperm.xlu0 %1997, %v1730
      %v1999 = vpop.permute.xlu0 %1998
      %2002 = vset.pattern.permute.xlu0 4
      %2003 = vperm.xlu0 %2002, %v1731
      %v2004 = vpop.permute.xlu0 %2003
      %2007 = vset.pattern.permute.xlu0 4
      %2008 = vperm.xlu0 %2007, %v1732
      %v2009 = vpop.permute.xlu0 %2008
      %2012 = vset.pattern.permute.xlu0 4
      %2013 = vperm.xlu0 %2012, %v1733
      %v2014 = vpop.permute.xlu0 %2013
      %2017 = vset.pattern.permute.xlu0 4
      %2018 = vperm.xlu0 %2017, %v1734
      %v2019 = vpop.permute.xlu0 %2018
      %2022 = vset.pattern.permute.xlu0 4
      %2023 = vperm.xlu0 %2022, %v1735
      %v2024 = vpop.permute.xlu0 %2023
      %2027 = vset.pattern.permute.xlu0 4
      %2028 = vperm.xlu0 %2027, %v1736
      %v2029 = vpop.permute.xlu0 %2028
      %2032 = vset.pattern.permute.xlu0 4
      %2033 = vperm.xlu0 %2032, %v1737
      %v2034 = vpop.permute.xlu0 %2033
      %2037 = vset.pattern.permute.xlu0 4
      %2038 = vperm.xlu0 %2037, %v1738
      %v2039 = vpop.permute.xlu0 %2038
      %2042 = vset.pattern.permute.xlu0 4
      %2043 = vperm.xlu0 %2042, %v1739
      %v2044 = vpop.permute.xlu0 %2043
      %2047 = vset.pattern.permute.xlu0 4
      %2048 = vperm.xlu0 %2047, %v1740
      %v2049 = vpop.permute.xlu0 %2048
      %2052 = vset.pattern.permute.xlu0 4
      %2053 = vperm.xlu0 %2052, %v1741
      %v2054 = vpop.permute.xlu0 %2053
      %2057 = vset.pattern.permute.xlu0 4
      %2058 = vperm.xlu0 %2057, %v1742
      %v2059 = vpop.permute.xlu0 %2058
      %2062 = vset.pattern.permute.xlu0 4
      %2063 = vperm.xlu0 %2062, %v1743
      %v2064 = vpop.permute.xlu0 %2063
      %v2066 = vsel %vm1874, %v1909, 0.0
      %v2067 = vsel %vm1875, %v1914, 0.0
      %v2068 = vsel %vm1876, %v1919, 0.0
      %v2069 = vsel %vm1877, %v1924, 0.0
      %v2070 = vsel %vm1878, %v1929, 0.0
      %v2071 = vsel %vm1879, %v1934, 0.0
      %v2072 = vsel %vm1880, %v1939, 0.0
      %v2073 = vsel %vm1881, %v1944, 0.0
      %v2074 = vsel %vm1882, %v1949, 0.0
      %v2075 = vsel %vm1883, %v1954, 0.0
      %v2076 = vsel %vm1884, %v1959, 0.0
      %v2077 = vsel %vm1885, %v1964, 0.0
      %v2078 = vsel %vm1886, %v1969, 0.0
      %v2079 = vsel %vm1887, %v1974, 0.0
      %v2080 = vsel %vm1888, %v1979, 0.0
      %v2081 = vsel %vm1889, %v1984, 0.0
      %v2082 = vsel %vm1890, %v1989, 0.0
      %v2083 = vsel %vm1891, %v1994, 0.0
      %v2084 = vsel %vm1892, %v1999, 0.0
      %v2085 = vsel %vm1893, %v2004, 0.0
      %v2086 = vsel %vm1894, %v2009, 0.0
      %v2087 = vsel %vm1895, %v2014, 0.0
      %v2088 = vsel %vm1896, %v2019, 0.0
      %v2089 = vsel %vm1897, %v2024, 0.0
      %v2090 = vsel %vm1898, %v2029, 0.0
      %v2091 = vsel %vm1899, %v2034, 0.0
      %v2092 = vsel %vm1900, %v2039, 0.0
      %v2093 = vsel %vm1901, %v2044, 0.0
      %v2094 = vsel %vm1902, %v2049, 0.0
      %v2095 = vsel %vm1903, %v2054, 0.0
      %v2096 = vsel %vm1904, %v2059, 0.0
      %v2097 = vsel %vm1905, %v2064, 0.0
      %v2098 = vadd.f32 %v2066, 0.0
      %v2099 = vadd.f32 %v2067, 0.0
      %v2100 = vadd.f32 %v2068, 0.0
      %v2101 = vadd.f32 %v2069, 0.0
      %v2102 = vadd.f32 %v2070, 0.0
      %v2103 = vadd.f32 %v2071, 0.0
      %v2104 = vadd.f32 %v2072, 0.0
      %v2105 = vadd.f32 %v2073, 0.0
      %v2106 = vadd.f32 %v2074, 0.0
      %v2107 = vadd.f32 %v2075, 0.0
      %v2108 = vadd.f32 %v2076, 0.0
      %v2109 = vadd.f32 %v2077, 0.0
      %v2110 = vadd.f32 %v2078, 0.0
      %v2111 = vadd.f32 %v2079, 0.0
      %v2112 = vadd.f32 %v2080, 0.0
      %v2113 = vadd.f32 %v2081, 0.0
      %v2114 = vadd.f32 %v2082, 0.0
      %v2115 = vadd.f32 %v2083, 0.0
      %v2116 = vadd.f32 %v2084, 0.0
      %v2117 = vadd.f32 %v2085, 0.0
      %v2118 = vadd.f32 %v2086, 0.0
      %v2119 = vadd.f32 %v2087, 0.0
      %v2120 = vadd.f32 %v2088, 0.0
      %v2121 = vadd.f32 %v2089, 0.0
      %v2122 = vadd.f32 %v2090, 0.0
      %v2123 = vadd.f32 %v2091, 0.0
      %v2124 = vadd.f32 %v2092, 0.0
      %v2125 = vadd.f32 %v2093, 0.0
      %v2126 = vadd.f32 %v2094, 0.0
      %v2127 = vadd.f32 %v2095, 0.0
      %v2128 = vadd.f32 %v2096, 0.0
      %v2129 = vadd.f32 %v2097, 0.0
      %2130 = vset.pattern.permute.xlu0 1
      %2131 = vperm.xlu0 %2130, %v1744
      %v2132 = vpop.permute.xlu0 %2131
      %2133 = vset.pattern.permute.xlu0 1
      %2134 = vperm.xlu0 %2133, %v1745
      %v2135 = vpop.permute.xlu0 %2134
      %2136 = vset.pattern.permute.xlu0 1
      %2137 = vperm.xlu0 %2136, %v1746
      %v2138 = vpop.permute.xlu0 %2137
      %2139 = vset.pattern.permute.xlu0 1
      %2140 = vperm.xlu0 %2139, %v1747
      %v2141 = vpop.permute.xlu0 %2140
      %2142 = vset.pattern.permute.xlu0 1
      %2143 = vperm.xlu0 %2142, %v1748
      %v2144 = vpop.permute.xlu0 %2143
      %2145 = vset.pattern.permute.xlu0 1
      %2146 = vperm.xlu0 %2145, %v1749
      %v2147 = vpop.permute.xlu0 %2146
      %2148 = vset.pattern.permute.xlu0 1
      %2149 = vperm.xlu0 %2148, %v1750
      %v2150 = vpop.permute.xlu0 %2149
      %2151 = vset.pattern.permute.xlu0 1
      %2152 = vperm.xlu0 %2151, %v1751
      %v2153 = vpop.permute.xlu0 %2152
      %2154 = vset.pattern.permute.xlu0 1
      %2155 = vperm.xlu0 %2154, %v1752
      %v2156 = vpop.permute.xlu0 %2155
      %2157 = vset.pattern.permute.xlu0 1
      %2158 = vperm.xlu0 %2157, %v1753
      %v2159 = vpop.permute.xlu0 %2158
      %2160 = vset.pattern.permute.xlu0 1
      %2161 = vperm.xlu0 %2160, %v1754
      %v2162 = vpop.permute.xlu0 %2161
      %2163 = vset.pattern.permute.xlu0 1
      %2164 = vperm.xlu0 %2163, %v1755
      %v2165 = vpop.permute.xlu0 %2164
      %2166 = vset.pattern.permute.xlu0 1
      %2167 = vperm.xlu0 %2166, %v1756
      %v2168 = vpop.permute.xlu0 %2167
      %2169 = vset.pattern.permute.xlu0 1
      %2170 = vperm.xlu0 %2169, %v1757
      %v2171 = vpop.permute.xlu0 %2170
      %2172 = vset.pattern.permute.xlu0 1
      %2173 = vperm.xlu0 %2172, %v1758
      %v2174 = vpop.permute.xlu0 %2173
      %2175 = vset.pattern.permute.xlu0 1
      %2176 = vperm.xlu0 %2175, %v1759
      %v2177 = vpop.permute.xlu0 %2176
      %2178 = vset.pattern.permute.xlu0 1
      %2179 = vperm.xlu0 %2178, %v1760
      %v2180 = vpop.permute.xlu0 %2179
      %2181 = vset.pattern.permute.xlu0 1
      %2182 = vperm.xlu0 %2181, %v1761
      %v2183 = vpop.permute.xlu0 %2182
      %2184 = vset.pattern.permute.xlu0 1
      %2185 = vperm.xlu0 %2184, %v1762
      %v2186 = vpop.permute.xlu0 %2185
      %2187 = vset.pattern.permute.xlu0 1
      %2188 = vperm.xlu0 %2187, %v1763
      %v2189 = vpop.permute.xlu0 %2188
      %2190 = vset.pattern.permute.xlu0 1
      %2191 = vperm.xlu0 %2190, %v1764
      %v2192 = vpop.permute.xlu0 %2191
      %2193 = vset.pattern.permute.xlu0 1
      %2194 = vperm.xlu0 %2193, %v1765
      %v2195 = vpop.permute.xlu0 %2194
      %2196 = vset.pattern.permute.xlu0 1
      %2197 = vperm.xlu0 %2196, %v1766
      %v2198 = vpop.permute.xlu0 %2197
      %2199 = vset.pattern.permute.xlu0 1
      %2200 = vperm.xlu0 %2199, %v1767
      %v2201 = vpop.permute.xlu0 %2200
      %2202 = vset.pattern.permute.xlu0 1
      %2203 = vperm.xlu0 %2202, %v1768
      %v2204 = vpop.permute.xlu0 %2203
      %2205 = vset.pattern.permute.xlu0 1
      %2206 = vperm.xlu0 %2205, %v1769
      %v2207 = vpop.permute.xlu0 %2206
      %2208 = vset.pattern.permute.xlu0 1
      %2209 = vperm.xlu0 %2208, %v1770
      %v2210 = vpop.permute.xlu0 %2209
      %2211 = vset.pattern.permute.xlu0 1
      %2212 = vperm.xlu0 %2211, %v1771
      %v2213 = vpop.permute.xlu0 %2212
      %2214 = vset.pattern.permute.xlu0 1
      %2215 = vperm.xlu0 %2214, %v1772
      %v2216 = vpop.permute.xlu0 %2215
      %2217 = vset.pattern.permute.xlu0 1
      %2218 = vperm.xlu0 %2217, %v1773
      %v2219 = vpop.permute.xlu0 %2218
      %2220 = vset.pattern.permute.xlu0 1
      %2221 = vperm.xlu0 %2220, %v1774
      %v2222 = vpop.permute.xlu0 %2221
      %2223 = vset.pattern.permute.xlu0 1
      %2224 = vperm.xlu0 %2223, %v1775
      %v2225 = vpop.permute.xlu0 %2224
      %vm2226 = vcmp.eq.s32.totalorder %v1777, %v2132
      %vm2227 = vcmp.eq.s32.totalorder %v1777, %v2135
      %vm2228 = vcmp.eq.s32.totalorder %v1777, %v2138
      %vm2229 = vcmp.eq.s32.totalorder %v1777, %v2141
      %vm2230 = vcmp.eq.s32.totalorder %v1777, %v2144
      %vm2231 = vcmp.eq.s32.totalorder %v1777, %v2147
      %vm2232 = vcmp.eq.s32.totalorder %v1777, %v2150
      %vm2233 = vcmp.eq.s32.totalorder %v1777, %v2153
      %vm2234 = vcmp.eq.s32.totalorder %v1777, %v2156
      %vm2235 = vcmp.eq.s32.totalorder %v1777, %v2159
      %vm2236 = vcmp.eq.s32.totalorder %v1777, %v2162
      %vm2237 = vcmp.eq.s32.totalorder %v1777, %v2165
      %vm2238 = vcmp.eq.s32.totalorder %v1777, %v2168
      %vm2239 = vcmp.eq.s32.totalorder %v1777, %v2171
      %vm2240 = vcmp.eq.s32.totalorder %v1777, %v2174
      %vm2241 = vcmp.eq.s32.totalorder %v1777, %v2177
      %vm2242 = vcmp.eq.s32.totalorder %v1777, %v2180
      %vm2243 = vcmp.eq.s32.totalorder %v1777, %v2183
      %vm2244 = vcmp.eq.s32.totalorder %v1777, %v2186
      %vm2245 = vcmp.eq.s32.totalorder %v1777, %v2189
      %vm2246 = vcmp.eq.s32.totalorder %v1777, %v2192
      %vm2247 = vcmp.eq.s32.totalorder %v1777, %v2195
      %vm2248 = vcmp.eq.s32.totalorder %v1777, %v2198
      %vm2249 = vcmp.eq.s32.totalorder %v1777, %v2201
      %vm2250 = vcmp.eq.s32.totalorder %v1777, %v2204
      %vm2251 = vcmp.eq.s32.totalorder %v1777, %v2207
      %vm2252 = vcmp.eq.s32.totalorder %v1777, %v2210
      %vm2253 = vcmp.eq.s32.totalorder %v1777, %v2213
      %vm2254 = vcmp.eq.s32.totalorder %v1777, %v2216
      %vm2255 = vcmp.eq.s32.totalorder %v1777, %v2219
      %vm2256 = vcmp.eq.s32.totalorder %v1777, %v2222
      %vm2257 = vcmp.eq.s32.totalorder %v1777, %v2225
      %2258 = vset.pattern.permute.xlu0 5
      %2259 = vperm.xlu0 %2258, %v1712
      %v2260 = vpop.permute.xlu0 %2259
      %2262 = vset.pattern.permute.xlu0 5
      %2263 = vperm.xlu0 %2262, %v1713
      %v2264 = vpop.permute.xlu0 %2263
      %2266 = vset.pattern.permute.xlu0 5
      %2267 = vperm.xlu0 %2266, %v1714
      %v2268 = vpop.permute.xlu0 %2267
      %2270 = vset.pattern.permute.xlu0 5
      %2271 = vperm.xlu0 %2270, %v1715
      %v2272 = vpop.permute.xlu0 %2271
      %2274 = vset.pattern.permute.xlu0 5
      %2275 = vperm.xlu0 %2274, %v1716
      %v2276 = vpop.permute.xlu0 %2275
      %2278 = vset.pattern.permute.xlu0 5
      %2279 = vperm.xlu0 %2278, %v1717
      %v2280 = vpop.permute.xlu0 %2279
      %2282 = vset.pattern.permute.xlu0 5
      %2283 = vperm.xlu0 %2282, %v1718
      %v2284 = vpop.permute.xlu0 %2283
      %2286 = vset.pattern.permute.xlu0 5
      %2287 = vperm.xlu0 %2286, %v1719
      %v2288 = vpop.permute.xlu0 %2287
      %2290 = vset.pattern.permute.xlu0 5
      %2291 = vperm.xlu0 %2290, %v1720
      %v2292 = vpop.permute.xlu0 %2291
      %2294 = vset.pattern.permute.xlu0 5
      %2295 = vperm.xlu0 %2294, %v1721
      %v2296 = vpop.permute.xlu0 %2295
      %2298 = vset.pattern.permute.xlu0 5
      %2299 = vperm.xlu0 %2298, %v1722
      %v2300 = vpop.permute.xlu0 %2299
      %2302 = vset.pattern.permute.xlu0 5
      %2303 = vperm.xlu0 %2302, %v1723
      %v2304 = vpop.permute.xlu0 %2303
      %2306 = vset.pattern.permute.xlu0 5
      %2307 = vperm.xlu0 %2306, %v1724
      %v2308 = vpop.permute.xlu0 %2307
      %2310 = vset.pattern.permute.xlu0 5
      %2311 = vperm.xlu0 %2310, %v1725
      %v2312 = vpop.permute.xlu0 %2311
      %2314 = vset.pattern.permute.xlu0 5
      %2315 = vperm.xlu0 %2314, %v1726
      %v2316 = vpop.permute.xlu0 %2315
      %2318 = vset.pattern.permute.xlu0 5
      %2319 = vperm.xlu0 %2318, %v1727
      %v2320 = vpop.permute.xlu0 %2319
      %2322 = vset.pattern.permute.xlu0 5
      %2323 = vperm.xlu0 %2322, %v1728
      %v2324 = vpop.permute.xlu0 %2323
      %2326 = vset.pattern.permute.xlu0 5
      %2327 = vperm.xlu0 %2326, %v1729
      %v2328 = vpop.permute.xlu0 %2327
      %2330 = vset.pattern.permute.xlu0 5
      %2331 = vperm.xlu0 %2330, %v1730
      %v2332 = vpop.permute.xlu0 %2331
      %2334 = vset.pattern.permute.xlu0 5
      %2335 = vperm.xlu0 %2334, %v1731
      %v2336 = vpop.permute.xlu0 %2335
      %2338 = vset.pattern.permute.xlu0 5
      %2339 = vperm.xlu0 %2338, %v1732
      %v2340 = vpop.permute.xlu0 %2339
      %2342 = vset.pattern.permute.xlu0 5
      %2343 = vperm.xlu0 %2342, %v1733
      %v2344 = vpop.permute.xlu0 %2343
      %2346 = vset.pattern.permute.xlu0 5
      %2347 = vperm.xlu0 %2346, %v1734
      %v2348 = vpop.permute.xlu0 %2347
      %2350 = vset.pattern.permute.xlu0 5
      %2351 = vperm.xlu0 %2350, %v1735
      %v2352 = vpop.permute.xlu0 %2351
      %2354 = vset.pattern.permute.xlu0 5
      %2355 = vperm.xlu0 %2354, %v1736
      %v2356 = vpop.permute.xlu0 %2355
      %2358 = vset.pattern.permute.xlu0 5
      %2359 = vperm.xlu0 %2358, %v1737
      %v2360 = vpop.permute.xlu0 %2359
      %2362 = vset.pattern.permute.xlu0 5
      %2363 = vperm.xlu0 %2362, %v1738
      %v2364 = vpop.permute.xlu0 %2363
      %2366 = vset.pattern.permute.xlu0 5
      %2367 = vperm.xlu0 %2366, %v1739
      %v2368 = vpop.permute.xlu0 %2367
      %2370 = vset.pattern.permute.xlu0 5
      %2371 = vperm.xlu0 %2370, %v1740
      %v2372 = vpop.permute.xlu0 %2371
      %2374 = vset.pattern.permute.xlu0 5
      %2375 = vperm.xlu0 %2374, %v1741
      %v2376 = vpop.permute.xlu0 %2375
      %2378 = vset.pattern.permute.xlu0 5
      %2379 = vperm.xlu0 %2378, %v1742
      %v2380 = vpop.permute.xlu0 %2379
      %2382 = vset.pattern.permute.xlu0 5
      %2383 = vperm.xlu0 %2382, %v1743
      %v2384 = vpop.permute.xlu0 %2383
      %v2386 = vsel %vm2226, %v2260, 0.0
      %v2387 = vsel %vm2227, %v2264, 0.0
      %v2388 = vsel %vm2228, %v2268, 0.0
      %v2389 = vsel %vm2229, %v2272, 0.0
      %v2390 = vsel %vm2230, %v2276, 0.0
      %v2391 = vsel %vm2231, %v2280, 0.0
      %v2392 = vsel %vm2232, %v2284, 0.0
      %v2393 = vsel %vm2233, %v2288, 0.0
      %v2394 = vsel %vm2234, %v2292, 0.0
      %v2395 = vsel %vm2235, %v2296, 0.0
      %v2396 = vsel %vm2236, %v2300, 0.0
      %v2397 = vsel %vm2237, %v2304, 0.0
      %v2398 = vsel %vm2238, %v2308, 0.0
      %v2399 = vsel %vm2239, %v2312, 0.0
      %v2400 = vsel %vm2240, %v2316, 0.0
      %v2401 = vsel %vm2241, %v2320, 0.0
      %v2402 = vsel %vm2242, %v2324, 0.0
      %v2403 = vsel %vm2243, %v2328, 0.0
      %v2404 = vsel %vm2244, %v2332, 0.0
      %v2405 = vsel %vm2245, %v2336, 0.0
      %v2406 = vsel %vm2246, %v2340, 0.0
      %v2407 = vsel %vm2247, %v2344, 0.0
      %v2408 = vsel %vm2248, %v2348, 0.0
      %v2409 = vsel %vm2249, %v2352, 0.0
      %v2410 = vsel %vm2250, %v2356, 0.0
      %v2411 = vsel %vm2251, %v2360, 0.0
      %v2412 = vsel %vm2252, %v2364, 0.0
      %v2413 = vsel %vm2253, %v2368, 0.0
      %v2414 = vsel %vm2254, %v2372, 0.0
      %v2415 = vsel %vm2255, %v2376, 0.0
      %v2416 = vsel %vm2256, %v2380, 0.0
      %v2417 = vsel %vm2257, %v2384, 0.0
      %v2418 = vadd.f32 %v2098, %v2386
      %v2419 = vadd.f32 %v2099, %v2387
      %v2420 = vadd.f32 %v2100, %v2388
      %v2421 = vadd.f32 %v2101, %v2389
      %v2422 = vadd.f32 %v2102, %v2390
      %v2423 = vadd.f32 %v2103, %v2391
      %v2424 = vadd.f32 %v2104, %v2392
      %v2425 = vadd.f32 %v2105, %v2393
      %v2426 = vadd.f32 %v2106, %v2394
      %v2427 = vadd.f32 %v2107, %v2395
      %v2428 = vadd.f32 %v2108, %v2396
      %v2429 = vadd.f32 %v2109, %v2397
      %v2430 = vadd.f32 %v2110, %v2398
      %v2431 = vadd.f32 %v2111, %v2399
      %v2432 = vadd.f32 %v2112, %v2400
      %v2433 = vadd.f32 %v2113, %v2401
      %v2434 = vadd.f32 %v2114, %v2402
      %v2435 = vadd.f32 %v2115, %v2403
      %v2436 = vadd.f32 %v2116, %v2404
      %v2437 = vadd.f32 %v2117, %v2405
      %v2438 = vadd.f32 %v2118, %v2406
      %v2439 = vadd.f32 %v2119, %v2407
      %v2440 = vadd.f32 %v2120, %v2408
      %v2441 = vadd.f32 %v2121, %v2409
      %v2442 = vadd.f32 %v2122, %v2410
      %v2443 = vadd.f32 %v2123, %v2411
      %v2444 = vadd.f32 %v2124, %v2412
      %v2445 = vadd.f32 %v2125, %v2413
      %v2446 = vadd.f32 %v2126, %v2414
      %v2447 = vadd.f32 %v2127, %v2415
      %v2448 = vadd.f32 %v2128, %v2416
      %v2449 = vadd.f32 %v2129, %v2417
      %2450 = vset.pattern.permute.xlu0 2
      %2451 = vperm.xlu0 %2450, %v1744
      %v2452 = vpop.permute.xlu0 %2451
      %2453 = vset.pattern.permute.xlu0 2
      %2454 = vperm.xlu0 %2453, %v1745
      %v2455 = vpop.permute.xlu0 %2454
      %2456 = vset.pattern.permute.xlu0 2
      %2457 = vperm.xlu0 %2456, %v1746
      %v2458 = vpop.permute.xlu0 %2457
      %2459 = vset.pattern.permute.xlu0 2
      %2460 = vperm.xlu0 %2459, %v1747
      %v2461 = vpop.permute.xlu0 %2460
      %2462 = vset.pattern.permute.xlu0 2
      %2463 = vperm.xlu0 %2462, %v1748
      %v2464 = vpop.permute.xlu0 %2463
      %2465 = vset.pattern.permute.xlu0 2
      %2466 = vperm.xlu0 %2465, %v1749
      %v2467 = vpop.permute.xlu0 %2466
      %2468 = vset.pattern.permute.xlu0 2
      %2469 = vperm.xlu0 %2468, %v1750
      %v2470 = vpop.permute.xlu0 %2469
      %2471 = vset.pattern.permute.xlu0 2
      %2472 = vperm.xlu0 %2471, %v1751
      %v2473 = vpop.permute.xlu0 %2472
      %2474 = vset.pattern.permute.xlu0 2
      %2475 = vperm.xlu0 %2474, %v1752
      %v2476 = vpop.permute.xlu0 %2475
      %2477 = vset.pattern.permute.xlu0 2
      %2478 = vperm.xlu0 %2477, %v1753
      %v2479 = vpop.permute.xlu0 %2478
      %2480 = vset.pattern.permute.xlu0 2
      %2481 = vperm.xlu0 %2480, %v1754
      %v2482 = vpop.permute.xlu0 %2481
      %2483 = vset.pattern.permute.xlu0 2
      %2484 = vperm.xlu0 %2483, %v1755
      %v2485 = vpop.permute.xlu0 %2484
      %2486 = vset.pattern.permute.xlu0 2
      %2487 = vperm.xlu0 %2486, %v1756
      %v2488 = vpop.permute.xlu0 %2487
      %2489 = vset.pattern.permute.xlu0 2
      %2490 = vperm.xlu0 %2489, %v1757
      %v2491 = vpop.permute.xlu0 %2490
      %2492 = vset.pattern.permute.xlu0 2
      %2493 = vperm.xlu0 %2492, %v1758
      %v2494 = vpop.permute.xlu0 %2493
      %2495 = vset.pattern.permute.xlu0 2
      %2496 = vperm.xlu0 %2495, %v1759
      %v2497 = vpop.permute.xlu0 %2496
      %2498 = vset.pattern.permute.xlu0 2
      %2499 = vperm.xlu0 %2498, %v1760
      %v2500 = vpop.permute.xlu0 %2499
      %2501 = vset.pattern.permute.xlu0 2
      %2502 = vperm.xlu0 %2501, %v1761
      %v2503 = vpop.permute.xlu0 %2502
      %2504 = vset.pattern.permute.xlu0 2
      %2505 = vperm.xlu0 %2504, %v1762
      %v2506 = vpop.permute.xlu0 %2505
      %2507 = vset.pattern.permute.xlu0 2
      %2508 = vperm.xlu0 %2507, %v1763
      %v2509 = vpop.permute.xlu0 %2508
      %2510 = vset.pattern.permute.xlu0 2
      %2511 = vperm.xlu0 %2510, %v1764
      %v2512 = vpop.permute.xlu0 %2511
      %2513 = vset.pattern.permute.xlu0 2
      %2514 = vperm.xlu0 %2513, %v1765
      %v2515 = vpop.permute.xlu0 %2514
      %2516 = vset.pattern.permute.xlu0 2
      %2517 = vperm.xlu0 %2516, %v1766
      %v2518 = vpop.permute.xlu0 %2517
      %2519 = vset.pattern.permute.xlu0 2
      %2520 = vperm.xlu0 %2519, %v1767
      %v2521 = vpop.permute.xlu0 %2520
      %2522 = vset.pattern.permute.xlu0 2
      %2523 = vperm.xlu0 %2522, %v1768
      %v2524 = vpop.permute.xlu0 %2523
      %2525 = vset.pattern.permute.xlu0 2
      %2526 = vperm.xlu0 %2525, %v1769
      %v2527 = vpop.permute.xlu0 %2526
      %2528 = vset.pattern.permute.xlu0 2
      %2529 = vperm.xlu0 %2528, %v1770
      %v2530 = vpop.permute.xlu0 %2529
      %2531 = vset.pattern.permute.xlu0 2
      %2532 = vperm.xlu0 %2531, %v1771
      %v2533 = vpop.permute.xlu0 %2532
      %2534 = vset.pattern.permute.xlu0 2
      %2535 = vperm.xlu0 %2534, %v1772
      %v2536 = vpop.permute.xlu0 %2535
      %2537 = vset.pattern.permute.xlu0 2
      %2538 = vperm.xlu0 %2537, %v1773
      %v2539 = vpop.permute.xlu0 %2538
      %2540 = vset.pattern.permute.xlu0 2
      %2541 = vperm.xlu0 %2540, %v1774
      %v2542 = vpop.permute.xlu0 %2541
      %2543 = vset.pattern.permute.xlu0 2
      %2544 = vperm.xlu0 %2543, %v1775
      %v2545 = vpop.permute.xlu0 %2544
      %vm2546 = vcmp.eq.s32.totalorder %v1777, %v2452
      %vm2547 = vcmp.eq.s32.totalorder %v1777, %v2455
      %vm2548 = vcmp.eq.s32.totalorder %v1777, %v2458
      %vm2549 = vcmp.eq.s32.totalorder %v1777, %v2461
      %vm2550 = vcmp.eq.s32.totalorder %v1777, %v2464
      %vm2551 = vcmp.eq.s32.totalorder %v1777, %v2467
      %vm2552 = vcmp.eq.s32.totalorder %v1777, %v2470
      %vm2553 = vcmp.eq.s32.totalorder %v1777, %v2473
      %vm2554 = vcmp.eq.s32.totalorder %v1777, %v2476
      %vm2555 = vcmp.eq.s32.totalorder %v1777, %v2479
      %vm2556 = vcmp.eq.s32.totalorder %v1777, %v2482
      %vm2557 = vcmp.eq.s32.totalorder %v1777, %v2485
      %vm2558 = vcmp.eq.s32.totalorder %v1777, %v2488
      %vm2559 = vcmp.eq.s32.totalorder %v1777, %v2491
      %vm2560 = vcmp.eq.s32.totalorder %v1777, %v2494
      %vm2561 = vcmp.eq.s32.totalorder %v1777, %v2497
      %vm2562 = vcmp.eq.s32.totalorder %v1777, %v2500
      %vm2563 = vcmp.eq.s32.totalorder %v1777, %v2503
      %vm2564 = vcmp.eq.s32.totalorder %v1777, %v2506
      %vm2565 = vcmp.eq.s32.totalorder %v1777, %v2509
      %vm2566 = vcmp.eq.s32.totalorder %v1777, %v2512
      %vm2567 = vcmp.eq.s32.totalorder %v1777, %v2515
      %vm2568 = vcmp.eq.s32.totalorder %v1777, %v2518
      %vm2569 = vcmp.eq.s32.totalorder %v1777, %v2521
      %vm2570 = vcmp.eq.s32.totalorder %v1777, %v2524
      %vm2571 = vcmp.eq.s32.totalorder %v1777, %v2527
      %vm2572 = vcmp.eq.s32.totalorder %v1777, %v2530
      %vm2573 = vcmp.eq.s32.totalorder %v1777, %v2533
      %vm2574 = vcmp.eq.s32.totalorder %v1777, %v2536
      %vm2575 = vcmp.eq.s32.totalorder %v1777, %v2539
      %vm2576 = vcmp.eq.s32.totalorder %v1777, %v2542
      %vm2577 = vcmp.eq.s32.totalorder %v1777, %v2545
      %2578 = vset.pattern.permute.xlu0 6
      %2579 = vperm.xlu0 %2578, %v1712
      %v2580 = vpop.permute.xlu0 %2579
      %2582 = vset.pattern.permute.xlu0 6
      %2583 = vperm.xlu0 %2582, %v1713
      %v2584 = vpop.permute.xlu0 %2583
      %2586 = vset.pattern.permute.xlu0 6
      %2587 = vperm.xlu0 %2586, %v1714
      %v2588 = vpop.permute.xlu0 %2587
      %2590 = vset.pattern.permute.xlu0 6
      %2591 = vperm.xlu0 %2590, %v1715
      %v2592 = vpop.permute.xlu0 %2591
      %2594 = vset.pattern.permute.xlu0 6
      %2595 = vperm.xlu0 %2594, %v1716
      %v2596 = vpop.permute.xlu0 %2595
      %2598 = vset.pattern.permute.xlu0 6
      %2599 = vperm.xlu0 %2598, %v1717
      %v2600 = vpop.permute.xlu0 %2599
      %2602 = vset.pattern.permute.xlu0 6
      %2603 = vperm.xlu0 %2602, %v1718
      %v2604 = vpop.permute.xlu0 %2603
      %2606 = vset.pattern.permute.xlu0 6
      %2607 = vperm.xlu0 %2606, %v1719
      %v2608 = vpop.permute.xlu0 %2607
      %2610 = vset.pattern.permute.xlu0 6
      %2611 = vperm.xlu0 %2610, %v1720
      %v2612 = vpop.permute.xlu0 %2611
      %2614 = vset.pattern.permute.xlu0 6
      %2615 = vperm.xlu0 %2614, %v1721
      %v2616 = vpop.permute.xlu0 %2615
      %2618 = vset.pattern.permute.xlu0 6
      %2619 = vperm.xlu0 %2618, %v1722
      %v2620 = vpop.permute.xlu0 %2619
      %2622 = vset.pattern.permute.xlu0 6
      %2623 = vperm.xlu0 %2622, %v1723
      %v2624 = vpop.permute.xlu0 %2623
      %2626 = vset.pattern.permute.xlu0 6
      %2627 = vperm.xlu0 %2626, %v1724
      %v2628 = vpop.permute.xlu0 %2627
      %2630 = vset.pattern.permute.xlu0 6
      %2631 = vperm.xlu0 %2630, %v1725
      %v2632 = vpop.permute.xlu0 %2631
      %2634 = vset.pattern.permute.xlu0 6
      %2635 = vperm.xlu0 %2634, %v1726
      %v2636 = vpop.permute.xlu0 %2635
      %2638 = vset.pattern.permute.xlu0 6
      %2639 = vperm.xlu0 %2638, %v1727
      %v2640 = vpop.permute.xlu0 %2639
      %2642 = vset.pattern.permute.xlu0 6
      %2643 = vperm.xlu0 %2642, %v1728
      %v2644 = vpop.permute.xlu0 %2643
      %2646 = vset.pattern.permute.xlu0 6
      %2647 = vperm.xlu0 %2646, %v1729
      %v2648 = vpop.permute.xlu0 %2647
      %2650 = vset.pattern.permute.xlu0 6
      %2651 = vperm.xlu0 %2650, %v1730
      %v2652 = vpop.permute.xlu0 %2651
      %2654 = vset.pattern.permute.xlu0 6
      %2655 = vperm.xlu0 %2654, %v1731
      %v2656 = vpop.permute.xlu0 %2655
      %2658 = vset.pattern.permute.xlu0 6
      %2659 = vperm.xlu0 %2658, %v1732
      %v2660 = vpop.permute.xlu0 %2659
      %2662 = vset.pattern.permute.xlu0 6
      %2663 = vperm.xlu0 %2662, %v1733
      %v2664 = vpop.permute.xlu0 %2663
      %2666 = vset.pattern.permute.xlu0 6
      %2667 = vperm.xlu0 %2666, %v1734
      %v2668 = vpop.permute.xlu0 %2667
      %2670 = vset.pattern.permute.xlu0 6
      %2671 = vperm.xlu0 %2670, %v1735
      %v2672 = vpop.permute.xlu0 %2671
      %2674 = vset.pattern.permute.xlu0 6
      %2675 = vperm.xlu0 %2674, %v1736
      %v2676 = vpop.permute.xlu0 %2675
      %2678 = vset.pattern.permute.xlu0 6
      %2679 = vperm.xlu0 %2678, %v1737
      %v2680 = vpop.permute.xlu0 %2679
      %2682 = vset.pattern.permute.xlu0 6
      %2683 = vperm.xlu0 %2682, %v1738
      %v2684 = vpop.permute.xlu0 %2683
      %2686 = vset.pattern.permute.xlu0 6
      %2687 = vperm.xlu0 %2686, %v1739
      %v2688 = vpop.permute.xlu0 %2687
      %2690 = vset.pattern.permute.xlu0 6
      %2691 = vperm.xlu0 %2690, %v1740
      %v2692 = vpop.permute.xlu0 %2691
      %2694 = vset.pattern.permute.xlu0 6
      %2695 = vperm.xlu0 %2694, %v1741
      %v2696 = vpop.permute.xlu0 %2695
      %2698 = vset.pattern.permute.xlu0 6
      %2699 = vperm.xlu0 %2698, %v1742
      %v2700 = vpop.permute.xlu0 %2699
      %2702 = vset.pattern.permute.xlu0 6
      %2703 = vperm.xlu0 %2702, %v1743
      %v2704 = vpop.permute.xlu0 %2703
      %v2706 = vsel %vm2546, %v2580, 0.0
      %v2707 = vsel %vm2547, %v2584, 0.0
      %v2708 = vsel %vm2548, %v2588, 0.0
      %v2709 = vsel %vm2549, %v2592, 0.0
      %v2710 = vsel %vm2550, %v2596, 0.0
      %v2711 = vsel %vm2551, %v2600, 0.0
      %v2712 = vsel %vm2552, %v2604, 0.0
      %v2713 = vsel %vm2553, %v2608, 0.0
      %v2714 = vsel %vm2554, %v2612, 0.0
      %v2715 = vsel %vm2555, %v2616, 0.0
      %v2716 = vsel %vm2556, %v2620, 0.0
      %v2717 = vsel %vm2557, %v2624, 0.0
      %v2718 = vsel %vm2558, %v2628, 0.0
      %v2719 = vsel %vm2559, %v2632, 0.0
      %v2720 = vsel %vm2560, %v2636, 0.0
      %v2721 = vsel %vm2561, %v2640, 0.0
      %v2722 = vsel %vm2562, %v2644, 0.0
      %v2723 = vsel %vm2563, %v2648, 0.0
      %v2724 = vsel %vm2564, %v2652, 0.0
      %v2725 = vsel %vm2565, %v2656, 0.0
      %v2726 = vsel %vm2566, %v2660, 0.0
      %v2727 = vsel %vm2567, %v2664, 0.0
      %v2728 = vsel %vm2568, %v2668, 0.0
      %v2729 = vsel %vm2569, %v2672, 0.0
      %v2730 = vsel %vm2570, %v2676, 0.0
      %v2731 = vsel %vm2571, %v2680, 0.0
      %v2732 = vsel %vm2572, %v2684, 0.0
      %v2733 = vsel %vm2573, %v2688, 0.0
      %v2734 = vsel %vm2574, %v2692, 0.0
      %v2735 = vsel %vm2575, %v2696, 0.0
      %v2736 = vsel %vm2576, %v2700, 0.0
      %v2737 = vsel %vm2577, %v2704, 0.0
      %v2738 = vadd.f32 %v2418, %v2706
      %v2739 = vadd.f32 %v2419, %v2707
      %v2740 = vadd.f32 %v2420, %v2708
      %v2741 = vadd.f32 %v2421, %v2709
      %v2742 = vadd.f32 %v2422, %v2710
      %v2743 = vadd.f32 %v2423, %v2711
      %v2744 = vadd.f32 %v2424, %v2712
      %v2745 = vadd.f32 %v2425, %v2713
      %v2746 = vadd.f32 %v2426, %v2714
      %v2747 = vadd.f32 %v2427, %v2715
      %v2748 = vadd.f32 %v2428, %v2716
      %v2749 = vadd.f32 %v2429, %v2717
      %v2750 = vadd.f32 %v2430, %v2718
      %v2751 = vadd.f32 %v2431, %v2719
      %v2752 = vadd.f32 %v2432, %v2720
      %v2753 = vadd.f32 %v2433, %v2721
      %v2754 = vadd.f32 %v2434, %v2722
      %v2755 = vadd.f32 %v2435, %v2723
      %v2756 = vadd.f32 %v2436, %v2724
      %v2757 = vadd.f32 %v2437, %v2725
      %v2758 = vadd.f32 %v2438, %v2726
      %v2759 = vadd.f32 %v2439, %v2727
      %v2760 = vadd.f32 %v2440, %v2728
      %v2761 = vadd.f32 %v2441, %v2729
      %v2762 = vadd.f32 %v2442, %v2730
      %v2763 = vadd.f32 %v2443, %v2731
      %v2764 = vadd.f32 %v2444, %v2732
      %v2765 = vadd.f32 %v2445, %v2733
      %v2766 = vadd.f32 %v2446, %v2734
      %v2767 = vadd.f32 %v2447, %v2735
      %v2768 = vadd.f32 %v2448, %v2736
      %v2769 = vadd.f32 %v2449, %v2737
      %2770 = vset.pattern.permute.xlu0 3
      %2771 = vperm.xlu0 %2770, %v1744
      %v2772 = vpop.permute.xlu0 %2771
      %2773 = vset.pattern.permute.xlu0 3
      %2774 = vperm.xlu0 %2773, %v1745
      %v2775 = vpop.permute.xlu0 %2774
      %2776 = vset.pattern.permute.xlu0 3
      %2777 = vperm.xlu0 %2776, %v1746
      %v2778 = vpop.permute.xlu0 %2777
      %2779 = vset.pattern.permute.xlu0 3
      %2780 = vperm.xlu0 %2779, %v1747
      %v2781 = vpop.permute.xlu0 %2780
      %2782 = vset.pattern.permute.xlu0 3
      %2783 = vperm.xlu0 %2782, %v1748
      %v2784 = vpop.permute.xlu0 %2783
      %2785 = vset.pattern.permute.xlu0 3
      %2786 = vperm.xlu0 %2785, %v1749
      %v2787 = vpop.permute.xlu0 %2786
      %2788 = vset.pattern.permute.xlu0 3
      %2789 = vperm.xlu0 %2788, %v1750
      %v2790 = vpop.permute.xlu0 %2789
      %2791 = vset.pattern.permute.xlu0 3
      %2792 = vperm.xlu0 %2791, %v1751
      %v2793 = vpop.permute.xlu0 %2792
      %2794 = vset.pattern.permute.xlu0 3
      %2795 = vperm.xlu0 %2794, %v1752
      %v2796 = vpop.permute.xlu0 %2795
      %2797 = vset.pattern.permute.xlu0 3
      %2798 = vperm.xlu0 %2797, %v1753
      %v2799 = vpop.permute.xlu0 %2798
      %2800 = vset.pattern.permute.xlu0 3
      %2801 = vperm.xlu0 %2800, %v1754
      %v2802 = vpop.permute.xlu0 %2801
      %2803 = vset.pattern.permute.xlu0 3
      %2804 = vperm.xlu0 %2803, %v1755
      %v2805 = vpop.permute.xlu0 %2804
      %2806 = vset.pattern.permute.xlu0 3
      %2807 = vperm.xlu0 %2806, %v1756
      %v2808 = vpop.permute.xlu0 %2807
      %2809 = vset.pattern.permute.xlu0 3
      %2810 = vperm.xlu0 %2809, %v1757
      %v2811 = vpop.permute.xlu0 %2810
      %2812 = vset.pattern.permute.xlu0 3
      %2813 = vperm.xlu0 %2812, %v1758
      %v2814 = vpop.permute.xlu0 %2813
      %2815 = vset.pattern.permute.xlu0 3
      %2816 = vperm.xlu0 %2815, %v1759
      %v2817 = vpop.permute.xlu0 %2816
      %2818 = vset.pattern.permute.xlu0 3
      %2819 = vperm.xlu0 %2818, %v1760
      %v2820 = vpop.permute.xlu0 %2819
      %2821 = vset.pattern.permute.xlu0 3
      %2822 = vperm.xlu0 %2821, %v1761
      %v2823 = vpop.permute.xlu0 %2822
      %2824 = vset.pattern.permute.xlu0 3
      %2825 = vperm.xlu0 %2824, %v1762
      %v2826 = vpop.permute.xlu0 %2825
      %2827 = vset.pattern.permute.xlu0 3
      %2828 = vperm.xlu0 %2827, %v1763
      %v2829 = vpop.permute.xlu0 %2828
      %2830 = vset.pattern.permute.xlu0 3
      %2831 = vperm.xlu0 %2830, %v1764
      %v2832 = vpop.permute.xlu0 %2831
      %2833 = vset.pattern.permute.xlu0 3
      %2834 = vperm.xlu0 %2833, %v1765
      %v2835 = vpop.permute.xlu0 %2834
      %2836 = vset.pattern.permute.xlu0 3
      %2837 = vperm.xlu0 %2836, %v1766
      %v2838 = vpop.permute.xlu0 %2837
      %2839 = vset.pattern.permute.xlu0 3
      %2840 = vperm.xlu0 %2839, %v1767
      %v2841 = vpop.permute.xlu0 %2840
      %2842 = vset.pattern.permute.xlu0 3
      %2843 = vperm.xlu0 %2842, %v1768
      %v2844 = vpop.permute.xlu0 %2843
      %2845 = vset.pattern.permute.xlu0 3
      %2846 = vperm.xlu0 %2845, %v1769
      %v2847 = vpop.permute.xlu0 %2846
      %2848 = vset.pattern.permute.xlu0 3
      %2849 = vperm.xlu0 %2848, %v1770
      %v2850 = vpop.permute.xlu0 %2849
      %2851 = vset.pattern.permute.xlu0 3
      %2852 = vperm.xlu0 %2851, %v1771
      %v2853 = vpop.permute.xlu0 %2852
      %2854 = vset.pattern.permute.xlu0 3
      %2855 = vperm.xlu0 %2854, %v1772
      %v2856 = vpop.permute.xlu0 %2855
      %2857 = vset.pattern.permute.xlu0 3
      %2858 = vperm.xlu0 %2857, %v1773
      %v2859 = vpop.permute.xlu0 %2858
      %2860 = vset.pattern.permute.xlu0 3
      %2861 = vperm.xlu0 %2860, %v1774
      %v2862 = vpop.permute.xlu0 %2861
      %2863 = vset.pattern.permute.xlu0 3
      %2864 = vperm.xlu0 %2863, %v1775
      %v2865 = vpop.permute.xlu0 %2864
      %vm2866 = vcmp.eq.s32.totalorder %v1777, %v2772
      %vm2867 = vcmp.eq.s32.totalorder %v1777, %v2775
      %vm2868 = vcmp.eq.s32.totalorder %v1777, %v2778
      %vm2869 = vcmp.eq.s32.totalorder %v1777, %v2781
      %vm2870 = vcmp.eq.s32.totalorder %v1777, %v2784
      %vm2871 = vcmp.eq.s32.totalorder %v1777, %v2787
      %vm2872 = vcmp.eq.s32.totalorder %v1777, %v2790
      %vm2873 = vcmp.eq.s32.totalorder %v1777, %v2793
      %vm2874 = vcmp.eq.s32.totalorder %v1777, %v2796
      %vm2875 = vcmp.eq.s32.totalorder %v1777, %v2799
      %vm2876 = vcmp.eq.s32.totalorder %v1777, %v2802
      %vm2877 = vcmp.eq.s32.totalorder %v1777, %v2805
      %vm2878 = vcmp.eq.s32.totalorder %v1777, %v2808
      %vm2879 = vcmp.eq.s32.totalorder %v1777, %v2811
      %vm2880 = vcmp.eq.s32.totalorder %v1777, %v2814
      %vm2881 = vcmp.eq.s32.totalorder %v1777, %v2817
      %vm2882 = vcmp.eq.s32.totalorder %v1777, %v2820
      %vm2883 = vcmp.eq.s32.totalorder %v1777, %v2823
      %vm2884 = vcmp.eq.s32.totalorder %v1777, %v2826
      %vm2885 = vcmp.eq.s32.totalorder %v1777, %v2829
      %vm2886 = vcmp.eq.s32.totalorder %v1777, %v2832
      %vm2887 = vcmp.eq.s32.totalorder %v1777, %v2835
      %vm2888 = vcmp.eq.s32.totalorder %v1777, %v2838
      %vm2889 = vcmp.eq.s32.totalorder %v1777, %v2841
      %vm2890 = vcmp.eq.s32.totalorder %v1777, %v2844
      %vm2891 = vcmp.eq.s32.totalorder %v1777, %v2847
      %vm2892 = vcmp.eq.s32.totalorder %v1777, %v2850
      %vm2893 = vcmp.eq.s32.totalorder %v1777, %v2853
      %vm2894 = vcmp.eq.s32.totalorder %v1777, %v2856
      %vm2895 = vcmp.eq.s32.totalorder %v1777, %v2859
      %vm2896 = vcmp.eq.s32.totalorder %v1777, %v2862
      %vm2897 = vcmp.eq.s32.totalorder %v1777, %v2865
      %2898 = vset.pattern.permute.xlu0 7
      %2899 = vperm.xlu0 %2898, %v1712
      %v2900 = vpop.permute.xlu0 %2899
      %2902 = vset.pattern.permute.xlu0 7
      %2903 = vperm.xlu0 %2902, %v1713
      %v2904 = vpop.permute.xlu0 %2903
      %2906 = vset.pattern.permute.xlu0 7
      %2907 = vperm.xlu0 %2906, %v1714
      %v2908 = vpop.permute.xlu0 %2907
      %2910 = vset.pattern.permute.xlu0 7
      %2911 = vperm.xlu0 %2910, %v1715
      %v2912 = vpop.permute.xlu0 %2911
      %2914 = vset.pattern.permute.xlu0 7
      %2915 = vperm.xlu0 %2914, %v1716
      %v2916 = vpop.permute.xlu0 %2915
      %2918 = vset.pattern.permute.xlu0 7
      %2919 = vperm.xlu0 %2918, %v1717
      %v2920 = vpop.permute.xlu0 %2919
      %2922 = vset.pattern.permute.xlu0 7
      %2923 = vperm.xlu0 %2922, %v1718
      %v2924 = vpop.permute.xlu0 %2923
      %2926 = vset.pattern.permute.xlu0 7
      %2927 = vperm.xlu0 %2926, %v1719
      %v2928 = vpop.permute.xlu0 %2927
      %2930 = vset.pattern.permute.xlu0 7
      %2931 = vperm.xlu0 %2930, %v1720
      %v2932 = vpop.permute.xlu0 %2931
      %2934 = vset.pattern.permute.xlu0 7
      %2935 = vperm.xlu0 %2934, %v1721
      %v2936 = vpop.permute.xlu0 %2935
      %2938 = vset.pattern.permute.xlu0 7
      %2939 = vperm.xlu0 %2938, %v1722
      %v2940 = vpop.permute.xlu0 %2939
      %2942 = vset.pattern.permute.xlu0 7
      %2943 = vperm.xlu0 %2942, %v1723
      %v2944 = vpop.permute.xlu0 %2943
      %2946 = vset.pattern.permute.xlu0 7
      %2947 = vperm.xlu0 %2946, %v1724
      %v2948 = vpop.permute.xlu0 %2947
      %2950 = vset.pattern.permute.xlu0 7
      %2951 = vperm.xlu0 %2950, %v1725
      %v2952 = vpop.permute.xlu0 %2951
      %2954 = vset.pattern.permute.xlu0 7
      %2955 = vperm.xlu0 %2954, %v1726
      %v2956 = vpop.permute.xlu0 %2955
      %2958 = vset.pattern.permute.xlu0 7
      %2959 = vperm.xlu0 %2958, %v1727
      %v2960 = vpop.permute.xlu0 %2959
      %2962 = vset.pattern.permute.xlu0 7
      %2963 = vperm.xlu0 %2962, %v1728
      %v2964 = vpop.permute.xlu0 %2963
      %2966 = vset.pattern.permute.xlu0 7
      %2967 = vperm.xlu0 %2966, %v1729
      %v2968 = vpop.permute.xlu0 %2967
      %2970 = vset.pattern.permute.xlu0 7
      %2971 = vperm.xlu0 %2970, %v1730
      %v2972 = vpop.permute.xlu0 %2971
      %2974 = vset.pattern.permute.xlu0 7
      %2975 = vperm.xlu0 %2974, %v1731
      %v2976 = vpop.permute.xlu0 %2975
      %2978 = vset.pattern.permute.xlu0 7
      %2979 = vperm.xlu0 %2978, %v1732
      %v2980 = vpop.permute.xlu0 %2979
      %2982 = vset.pattern.permute.xlu0 7
      %2983 = vperm.xlu0 %2982, %v1733
      %v2984 = vpop.permute.xlu0 %2983
      %2986 = vset.pattern.permute.xlu0 7
      %2987 = vperm.xlu0 %2986, %v1734
      %v2988 = vpop.permute.xlu0 %2987
      %2990 = vset.pattern.permute.xlu0 7
      %2991 = vperm.xlu0 %2990, %v1735
      %v2992 = vpop.permute.xlu0 %2991
      %2994 = vset.pattern.permute.xlu0 7
      %2995 = vperm.xlu0 %2994, %v1736
      %v2996 = vpop.permute.xlu0 %2995
      %2998 = vset.pattern.permute.xlu0 7
      %2999 = vperm.xlu0 %2998, %v1737
      %v3000 = vpop.permute.xlu0 %2999
      %3002 = vset.pattern.permute.xlu0 7
      %3003 = vperm.xlu0 %3002, %v1738
      %v3004 = vpop.permute.xlu0 %3003
      %3006 = vset.pattern.permute.xlu0 7
      %3007 = vperm.xlu0 %3006, %v1739
      %v3008 = vpop.permute.xlu0 %3007
      %3010 = vset.pattern.permute.xlu0 7
      %3011 = vperm.xlu0 %3010, %v1740
      %v3012 = vpop.permute.xlu0 %3011
      %3014 = vset.pattern.permute.xlu0 7
      %3015 = vperm.xlu0 %3014, %v1741
      %v3016 = vpop.permute.xlu0 %3015
      %3018 = vset.pattern.permute.xlu0 7
      %3019 = vperm.xlu0 %3018, %v1742
      %v3020 = vpop.permute.xlu0 %3019
      %3022 = vset.pattern.permute.xlu0 7
      %3023 = vperm.xlu0 %3022, %v1743
      %v3024 = vpop.permute.xlu0 %3023
      %v3026 = vsel %vm2866, %v2900, 0.0
      %v3027 = vsel %vm2867, %v2904, 0.0
      %v3028 = vsel %vm2868, %v2908, 0.0
      %v3029 = vsel %vm2869, %v2912, 0.0
      %v3030 = vsel %vm2870, %v2916, 0.0
      %v3031 = vsel %vm2871, %v2920, 0.0
      %v3032 = vsel %vm2872, %v2924, 0.0
      %v3033 = vsel %vm2873, %v2928, 0.0
      %v3034 = vsel %vm2874, %v2932, 0.0
      %v3035 = vsel %vm2875, %v2936, 0.0
      %v3036 = vsel %vm2876, %v2940, 0.0
      %v3037 = vsel %vm2877, %v2944, 0.0
      %v3038 = vsel %vm2878, %v2948, 0.0
      %v3039 = vsel %vm2879, %v2952, 0.0
      %v3040 = vsel %vm2880, %v2956, 0.0
      %v3041 = vsel %vm2881, %v2960, 0.0
      %v3042 = vsel %vm2882, %v2964, 0.0
      %v3043 = vsel %vm2883, %v2968, 0.0
      %v3044 = vsel %vm2884, %v2972, 0.0
      %v3045 = vsel %vm2885, %v2976, 0.0
      %v3046 = vsel %vm2886, %v2980, 0.0
      %v3047 = vsel %vm2887, %v2984, 0.0
      %v3048 = vsel %vm2888, %v2988, 0.0
      %v3049 = vsel %vm2889, %v2992, 0.0
      %v3050 = vsel %vm2890, %v2996, 0.0
      %v3051 = vsel %vm2891, %v3000, 0.0
      %v3052 = vsel %vm2892, %v3004, 0.0
      %v3053 = vsel %vm2893, %v3008, 0.0
      %v3054 = vsel %vm2894, %v3012, 0.0
      %v3055 = vsel %vm2895, %v3016, 0.0
      %v3056 = vsel %vm2896, %v3020, 0.0
      %v3057 = vsel %vm2897, %v3024, 0.0
      %v3058 = vadd.f32 %v2738, %v3026
      %v3059 = vadd.f32 %v2739, %v3027
      %v3060 = vadd.f32 %v2740, %v3028
      %v3061 = vadd.f32 %v2741, %v3029
      %v3062 = vadd.f32 %v2742, %v3030
      %v3063 = vadd.f32 %v2743, %v3031
      %v3064 = vadd.f32 %v2744, %v3032
      %v3065 = vadd.f32 %v2745, %v3033
      %v3066 = vadd.f32 %v2746, %v3034
      %v3067 = vadd.f32 %v2747, %v3035
      %v3068 = vadd.f32 %v2748, %v3036
      %v3069 = vadd.f32 %v2749, %v3037
      %v3070 = vadd.f32 %v2750, %v3038
      %v3071 = vadd.f32 %v2751, %v3039
      %v3072 = vadd.f32 %v2752, %v3040
      %v3073 = vadd.f32 %v2753, %v3041
      %v3074 = vadd.f32 %v2754, %v3042
      %v3075 = vadd.f32 %v2755, %v3043
      %v3076 = vadd.f32 %v2756, %v3044
      %v3077 = vadd.f32 %v2757, %v3045
      %v3078 = vadd.f32 %v2758, %v3046
      %v3079 = vadd.f32 %v2759, %v3047
      %v3080 = vadd.f32 %v2760, %v3048
      %v3081 = vadd.f32 %v2761, %v3049
      %v3082 = vadd.f32 %v2762, %v3050
      %v3083 = vadd.f32 %v2763, %v3051
      %v3084 = vadd.f32 %v2764, %v3052
      %v3085 = vadd.f32 %v2765, %v3053
      %v3086 = vadd.f32 %v2766, %v3054
      %v3087 = vadd.f32 %v2767, %v3055
      %v3088 = vadd.f32 %v2768, %v3056
      %v3089 = vadd.f32 %v2769, %v3057
      %v3091 = vsel %vm926, %v3058, 0
      %v3094 = vsel %vm926, %v3059, 0
      %3096 = vmatpush.msra.mxu0 0.0
      %3097 = vmatpush.msra.mxu0 0.0
      %3098 = vmatpush.msra.mxu0 0.0
      %3099 = vmatpush.msra.mxu0 0.0
      %3100 = vmatpush.msra.mxu0 0.0
      %3101 = vmatpush.msra.mxu0 0.0
      %3102 = vmatpush.msra.mxu0 0.0
      %3103 = vmatpush.msra.mxu0 0.0
      %3104 = vmatpush.msra.mxu0 %v1350
      %3105 = vmatpush.msra.mxu0 %v1347
      %3106 = vmatpush.msra.mxu0 %v1344
      %3107 = vmatpush.msra.mxu0 %v1341
      %3108 = vmatpush.msra.mxu0 %v1338
      %3109 = vmatpush.msra.mxu0 %v1335
      %3110 = vmatpush.msra.mxu0 %v1332
      %3111 = vmatpush.msra.mxu0 %v1329
      %3112 = vmatmul.f32.gmra.mxu0 %v3091
      %v3113 = vpop.f32.mrf.mxu0
      %v3114 = vadd.f32 0.0, %v3113
      %3115 = vmatmul.f32.gmra.mxu0 %v3094
      %v3116 = vpop.f32.mrf.mxu0
      %v3117 = vadd.f32 0.0, %v3116
      %3118 = vdwg.mxu0
      %v3120 = vsel %vm926, %v3060, 0
      %v3123 = vsel %vm926, %v3061, 0
      %3125 = vmatpush.msra.mxu0 0.0
      %3126 = vmatpush.msra.mxu0 0.0
      %3127 = vmatpush.msra.mxu0 0.0
      %3128 = vmatpush.msra.mxu0 0.0
      %3129 = vmatpush.msra.mxu0 0.0
      %3130 = vmatpush.msra.mxu0 0.0
      %3131 = vmatpush.msra.mxu0 0.0
      %3132 = vmatpush.msra.mxu0 0.0
      %3133 = vmatpush.msra.mxu0 %v1374
      %3134 = vmatpush.msra.mxu0 %v1371
      %3135 = vmatpush.msra.mxu0 %v1368
      %3136 = vmatpush.msra.mxu0 %v1365
      %3137 = vmatpush.msra.mxu0 %v1362
      %3138 = vmatpush.msra.mxu0 %v1359
      %3139 = vmatpush.msra.mxu0 %v1356
      %3140 = vmatpush.msra.mxu0 %v1353
      %3141 = vmatmul.f32.gmra.mxu0 %v3120
      %v3142 = vpop.f32.mrf.mxu0
      %v3143 = vadd.f32 0.0, %v3142
      %3144 = vmatmul.f32.gmra.mxu0 %v3123
      %v3145 = vpop.f32.mrf.mxu0
      %v3146 = vadd.f32 0.0, %v3145
      %3147 = vdwg.mxu0
      %v3149 = vsel %vm926, %v3062, 0
      %v3152 = vsel %vm926, %v3063, 0
      %3154 = vmatpush.msra.mxu0 0.0
      %3155 = vmatpush.msra.mxu0 0.0
      %3156 = vmatpush.msra.mxu0 0.0
      %3157 = vmatpush.msra.mxu0 0.0
      %3158 = vmatpush.msra.mxu0 0.0
      %3159 = vmatpush.msra.mxu0 0.0
      %3160 = vmatpush.msra.mxu0 0.0
      %3161 = vmatpush.msra.mxu0 0.0
      %3162 = vmatpush.msra.mxu0 %v1398
      %3163 = vmatpush.msra.mxu0 %v1395
      %3164 = vmatpush.msra.mxu0 %v1392
      %3165 = vmatpush.msra.mxu0 %v1389
      %3166 = vmatpush.msra.mxu0 %v1386
      %3167 = vmatpush.msra.mxu0 %v1383
      %3168 = vmatpush.msra.mxu0 %v1380
      %3169 = vmatpush.msra.mxu0 %v1377
      %3170 = vmatmul.f32.gmra.mxu0 %v3149
      %v3171 = vpop.f32.mrf.mxu0
      %v3172 = vadd.f32 0.0, %v3171
      %3173 = vmatmul.f32.gmra.mxu0 %v3152
      %v3174 = vpop.f32.mrf.mxu0
      %v3175 = vadd.f32 0.0, %v3174
      %3176 = vdwg.mxu0
      %v3178 = vsel %vm926, %v3064, 0
      %v3181 = vsel %vm926, %v3065, 0
      %3183 = vmatpush.msra.mxu0 0.0
      %3184 = vmatpush.msra.mxu0 0.0
      %3185 = vmatpush.msra.mxu0 0.0
      %3186 = vmatpush.msra.mxu0 0.0
      %3187 = vmatpush.msra.mxu0 0.0
      %3188 = vmatpush.msra.mxu0 0.0
      %3189 = vmatpush.msra.mxu0 0.0
      %3190 = vmatpush.msra.mxu0 0.0
      %3191 = vmatpush.msra.mxu0 %v1422
      %3192 = vmatpush.msra.mxu0 %v1419
      %3193 = vmatpush.msra.mxu0 %v1416
      %3194 = vmatpush.msra.mxu0 %v1413
      %3195 = vmatpush.msra.mxu0 %v1410
      %3196 = vmatpush.msra.mxu0 %v1407
      %3197 = vmatpush.msra.mxu0 %v1404
      %3198 = vmatpush.msra.mxu0 %v1401
      %3199 = vmatmul.f32.gmra.mxu0 %v3178
      %v3200 = vpop.f32.mrf.mxu0
      %v3201 = vadd.f32 0.0, %v3200
      %3202 = vmatmul.f32.gmra.mxu0 %v3181
      %v3203 = vpop.f32.mrf.mxu0
      %v3204 = vadd.f32 0.0, %v3203
      %3205 = vdwg.mxu0
      %v3207 = vsel %vm926, %v3066, 0
      %v3210 = vsel %vm926, %v3067, 0
      %3212 = vmatpush.msra.mxu0 0.0
      %3213 = vmatpush.msra.mxu0 0.0
      %3214 = vmatpush.msra.mxu0 0.0
      %3215 = vmatpush.msra.mxu0 0.0
      %3216 = vmatpush.msra.mxu0 0.0
      %3217 = vmatpush.msra.mxu0 0.0
      %3218 = vmatpush.msra.mxu0 0.0
      %3219 = vmatpush.msra.mxu0 0.0
      %3220 = vmatpush.msra.mxu0 %v1446
      %3221 = vmatpush.msra.mxu0 %v1443
      %3222 = vmatpush.msra.mxu0 %v1440
      %3223 = vmatpush.msra.mxu0 %v1437
      %3224 = vmatpush.msra.mxu0 %v1434
      %3225 = vmatpush.msra.mxu0 %v1431
      %3226 = vmatpush.msra.mxu0 %v1428
      %3227 = vmatpush.msra.mxu0 %v1425
      %3228 = vmatmul.f32.gmra.mxu0 %v3207
      %v3229 = vpop.f32.mrf.mxu0
      %v3230 = vadd.f32 0.0, %v3229
      %3231 = vmatmul.f32.gmra.mxu0 %v3210
      %v3232 = vpop.f32.mrf.mxu0
      %v3233 = vadd.f32 0.0, %v3232
      %3234 = vdwg.mxu0
      %v3236 = vsel %vm926, %v3068, 0
      %v3239 = vsel %vm926, %v3069, 0
      %3241 = vmatpush.msra.mxu0 0.0
      %3242 = vmatpush.msra.mxu0 0.0
      %3243 = vmatpush.msra.mxu0 0.0
      %3244 = vmatpush.msra.mxu0 0.0
      %3245 = vmatpush.msra.mxu0 0.0
      %3246 = vmatpush.msra.mxu0 0.0
      %3247 = vmatpush.msra.mxu0 0.0
      %3248 = vmatpush.msra.mxu0 0.0
      %3249 = vmatpush.msra.mxu0 %v1470
      %3250 = vmatpush.msra.mxu0 %v1467
      %3251 = vmatpush.msra.mxu0 %v1464
      %3252 = vmatpush.msra.mxu0 %v1461
      %3253 = vmatpush.msra.mxu0 %v1458
      %3254 = vmatpush.msra.mxu0 %v1455
      %3255 = vmatpush.msra.mxu0 %v1452
      %3256 = vmatpush.msra.mxu0 %v1449
      %3257 = vmatmul.f32.gmra.mxu0 %v3236
      %v3258 = vpop.f32.mrf.mxu0
      %v3259 = vadd.f32 0.0, %v3258
      %3260 = vmatmul.f32.gmra.mxu0 %v3239
      %v3261 = vpop.f32.mrf.mxu0
      %v3262 = vadd.f32 0.0, %v3261
      %3263 = vdwg.mxu0
      %v3265 = vsel %vm926, %v3070, 0
      %v3268 = vsel %vm926, %v3071, 0
      %3270 = vmatpush.msra.mxu0 0.0
      %3271 = vmatpush.msra.mxu0 0.0
      %3272 = vmatpush.msra.mxu0 0.0
      %3273 = vmatpush.msra.mxu0 0.0
      %3274 = vmatpush.msra.mxu0 0.0
      %3275 = vmatpush.msra.mxu0 0.0
      %3276 = vmatpush.msra.mxu0 0.0
      %3277 = vmatpush.msra.mxu0 0.0
      %3278 = vmatpush.msra.mxu0 %v1494
      %3279 = vmatpush.msra.mxu0 %v1491
      %3280 = vmatpush.msra.mxu0 %v1488
      %3281 = vmatpush.msra.mxu0 %v1485
      %3282 = vmatpush.msra.mxu0 %v1482
      %3283 = vmatpush.msra.mxu0 %v1479
      %3284 = vmatpush.msra.mxu0 %v1476
      %3285 = vmatpush.msra.mxu0 %v1473
      %3286 = vmatmul.f32.gmra.mxu0 %v3265
      %v3287 = vpop.f32.mrf.mxu0
      %v3288 = vadd.f32 0.0, %v3287
      %3289 = vmatmul.f32.gmra.mxu0 %v3268
      %v3290 = vpop.f32.mrf.mxu0
      %v3291 = vadd.f32 0.0, %v3290
      %3292 = vdwg.mxu0
      %v3294 = vsel %vm926, %v3072, 0
      %v3297 = vsel %vm926, %v3073, 0
      %3299 = vmatpush.msra.mxu0 0.0
      %3300 = vmatpush.msra.mxu0 0.0
      %3301 = vmatpush.msra.mxu0 0.0
      %3302 = vmatpush.msra.mxu0 0.0
      %3303 = vmatpush.msra.mxu0 0.0
      %3304 = vmatpush.msra.mxu0 0.0
      %3305 = vmatpush.msra.mxu0 0.0
      %3306 = vmatpush.msra.mxu0 0.0
      %3307 = vmatpush.msra.mxu0 %v1518
      %3308 = vmatpush.msra.mxu0 %v1515
      %3309 = vmatpush.msra.mxu0 %v1512
      %3310 = vmatpush.msra.mxu0 %v1509
      %3311 = vmatpush.msra.mxu0 %v1506
      %3312 = vmatpush.msra.mxu0 %v1503
      %3313 = vmatpush.msra.mxu0 %v1500
      %3314 = vmatpush.msra.mxu0 %v1497
      %3315 = vmatmul.f32.gmra.mxu0 %v3294
      %v3316 = vpop.f32.mrf.mxu0
      %v3317 = vadd.f32 0.0, %v3316
      %3318 = vmatmul.f32.gmra.mxu0 %v3297
      %v3319 = vpop.f32.mrf.mxu0
      %v3320 = vadd.f32 0.0, %v3319
      %3321 = vdwg.mxu0
      %v3323 = vsel %vm926, %v3074, 0
      %v3326 = vsel %vm926, %v3075, 0
      %3328 = vmatpush.msra.mxu0 0.0
      %3329 = vmatpush.msra.mxu0 0.0
      %3330 = vmatpush.msra.mxu0 0.0
      %3331 = vmatpush.msra.mxu0 0.0
      %3332 = vmatpush.msra.mxu0 0.0
      %3333 = vmatpush.msra.mxu0 0.0
      %3334 = vmatpush.msra.mxu0 0.0
      %3335 = vmatpush.msra.mxu0 0.0
      %3336 = vmatpush.msra.mxu0 %v1542
      %3337 = vmatpush.msra.mxu0 %v1539
      %3338 = vmatpush.msra.mxu0 %v1536
      %3339 = vmatpush.msra.mxu0 %v1533
      %3340 = vmatpush.msra.mxu0 %v1530
      %3341 = vmatpush.msra.mxu0 %v1527
      %3342 = vmatpush.msra.mxu0 %v1524
      %3343 = vmatpush.msra.mxu0 %v1521
      %3344 = vmatmul.f32.gmra.mxu0 %v3323
      %v3345 = vpop.f32.mrf.mxu0
      %v3346 = vadd.f32 0.0, %v3345
      %3347 = vmatmul.f32.gmra.mxu0 %v3326
      %v3348 = vpop.f32.mrf.mxu0
      %v3349 = vadd.f32 0.0, %v3348
      %3350 = vdwg.mxu0
      %v3352 = vsel %vm926, %v3076, 0
      %v3355 = vsel %vm926, %v3077, 0
      %3357 = vmatpush.msra.mxu0 0.0
      %3358 = vmatpush.msra.mxu0 0.0
      %3359 = vmatpush.msra.mxu0 0.0
      %3360 = vmatpush.msra.mxu0 0.0
      %3361 = vmatpush.msra.mxu0 0.0
      %3362 = vmatpush.msra.mxu0 0.0
      %3363 = vmatpush.msra.mxu0 0.0
      %3364 = vmatpush.msra.mxu0 0.0
      %3365 = vmatpush.msra.mxu0 %v1566
      %3366 = vmatpush.msra.mxu0 %v1563
      %3367 = vmatpush.msra.mxu0 %v1560
      %3368 = vmatpush.msra.mxu0 %v1557
      %3369 = vmatpush.msra.mxu0 %v1554
      %3370 = vmatpush.msra.mxu0 %v1551
      %3371 = vmatpush.msra.mxu0 %v1548
      %3372 = vmatpush.msra.mxu0 %v1545
      %3373 = vmatmul.f32.gmra.mxu0 %v3352
      %v3374 = vpop.f32.mrf.mxu0
      %v3375 = vadd.f32 0.0, %v3374
      %3376 = vmatmul.f32.gmra.mxu0 %v3355
      %v3377 = vpop.f32.mrf.mxu0
      %v3378 = vadd.f32 0.0, %v3377
      %3379 = vdwg.mxu0
      %v3381 = vsel %vm926, %v3078, 0
      %v3384 = vsel %vm926, %v3079, 0
      %3386 = vmatpush.msra.mxu0 0.0
      %3387 = vmatpush.msra.mxu0 0.0
      %3388 = vmatpush.msra.mxu0 0.0
      %3389 = vmatpush.msra.mxu0 0.0
      %3390 = vmatpush.msra.mxu0 0.0
      %3391 = vmatpush.msra.mxu0 0.0
      %3392 = vmatpush.msra.mxu0 0.0
      %3393 = vmatpush.msra.mxu0 0.0
      %3394 = vmatpush.msra.mxu0 %v1590
      %3395 = vmatpush.msra.mxu0 %v1587
      %3396 = vmatpush.msra.mxu0 %v1584
      %3397 = vmatpush.msra.mxu0 %v1581
      %3398 = vmatpush.msra.mxu0 %v1578
      %3399 = vmatpush.msra.mxu0 %v1575
      %3400 = vmatpush.msra.mxu0 %v1572
      %3401 = vmatpush.msra.mxu0 %v1569
      %3402 = vmatmul.f32.gmra.mxu0 %v3381
      %v3403 = vpop.f32.mrf.mxu0
      %v3404 = vadd.f32 0.0, %v3403
      %3405 = vmatmul.f32.gmra.mxu0 %v3384
      %v3406 = vpop.f32.mrf.mxu0
      %v3407 = vadd.f32 0.0, %v3406
      %3408 = vdwg.mxu0
      %v3410 = vsel %vm926, %v3080, 0
      %v3413 = vsel %vm926, %v3081, 0
      %3415 = vmatpush.msra.mxu0 0.0
      %3416 = vmatpush.msra.mxu0 0.0
      %3417 = vmatpush.msra.mxu0 0.0
      %3418 = vmatpush.msra.mxu0 0.0
      %3419 = vmatpush.msra.mxu0 0.0
      %3420 = vmatpush.msra.mxu0 0.0
      %3421 = vmatpush.msra.mxu0 0.0
      %3422 = vmatpush.msra.mxu0 0.0
      %3423 = vmatpush.msra.mxu0 %v1614
      %3424 = vmatpush.msra.mxu0 %v1611
      %3425 = vmatpush.msra.mxu0 %v1608
      %3426 = vmatpush.msra.mxu0 %v1605
      %3427 = vmatpush.msra.mxu0 %v1602
      %3428 = vmatpush.msra.mxu0 %v1599
      %3429 = vmatpush.msra.mxu0 %v1596
      %3430 = vmatpush.msra.mxu0 %v1593
      %3431 = vmatmul.f32.gmra.mxu0 %v3410
      %v3432 = vpop.f32.mrf.mxu0
      %v3433 = vadd.f32 0.0, %v3432
      %3434 = vmatmul.f32.gmra.mxu0 %v3413
      %v3435 = vpop.f32.mrf.mxu0
      %v3436 = vadd.f32 0.0, %v3435
      %3437 = vdwg.mxu0
      %v3439 = vsel %vm926, %v3082, 0
      %v3442 = vsel %vm926, %v3083, 0
      %3444 = vmatpush.msra.mxu0 0.0
      %3445 = vmatpush.msra.mxu0 0.0
      %3446 = vmatpush.msra.mxu0 0.0
      %3447 = vmatpush.msra.mxu0 0.0
      %3448 = vmatpush.msra.mxu0 0.0
      %3449 = vmatpush.msra.mxu0 0.0
      %3450 = vmatpush.msra.mxu0 0.0
      %3451 = vmatpush.msra.mxu0 0.0
      %3452 = vmatpush.msra.mxu0 %v1638
      %3453 = vmatpush.msra.mxu0 %v1635
      %3454 = vmatpush.msra.mxu0 %v1632
      %3455 = vmatpush.msra.mxu0 %v1629
      %3456 = vmatpush.msra.mxu0 %v1626
      %3457 = vmatpush.msra.mxu0 %v1623
      %3458 = vmatpush.msra.mxu0 %v1620
      %3459 = vmatpush.msra.mxu0 %v1617
      %3460 = vmatmul.f32.gmra.mxu0 %v3439
      %v3461 = vpop.f32.mrf.mxu0
      %v3462 = vadd.f32 0.0, %v3461
      %3463 = vmatmul.f32.gmra.mxu0 %v3442
      %v3464 = vpop.f32.mrf.mxu0
      %v3465 = vadd.f32 0.0, %v3464
      %3466 = vdwg.mxu0
      %v3468 = vsel %vm926, %v3084, 0
      %v3471 = vsel %vm926, %v3085, 0
      %3473 = vmatpush.msra.mxu0 0.0
      %3474 = vmatpush.msra.mxu0 0.0
      %3475 = vmatpush.msra.mxu0 0.0
      %3476 = vmatpush.msra.mxu0 0.0
      %3477 = vmatpush.msra.mxu0 0.0
      %3478 = vmatpush.msra.mxu0 0.0
      %3479 = vmatpush.msra.mxu0 0.0
      %3480 = vmatpush.msra.mxu0 0.0
      %3481 = vmatpush.msra.mxu0 %v1662
      %3482 = vmatpush.msra.mxu0 %v1659
      %3483 = vmatpush.msra.mxu0 %v1656
      %3484 = vmatpush.msra.mxu0 %v1653
      %3485 = vmatpush.msra.mxu0 %v1650
      %3486 = vmatpush.msra.mxu0 %v1647
      %3487 = vmatpush.msra.mxu0 %v1644
      %3488 = vmatpush.msra.mxu0 %v1641
      %3489 = vmatmul.f32.gmra.mxu0 %v3468
      %v3490 = vpop.f32.mrf.mxu0
      %v3491 = vadd.f32 0.0, %v3490
      %3492 = vmatmul.f32.gmra.mxu0 %v3471
      %v3493 = vpop.f32.mrf.mxu0
      %v3494 = vadd.f32 0.0, %v3493
      %3495 = vdwg.mxu0
      %v3497 = vsel %vm926, %v3086, 0
      %v3500 = vsel %vm926, %v3087, 0
      %3502 = vmatpush.msra.mxu0 0.0
      %3503 = vmatpush.msra.mxu0 0.0
      %3504 = vmatpush.msra.mxu0 0.0
      %3505 = vmatpush.msra.mxu0 0.0
      %3506 = vmatpush.msra.mxu0 0.0
      %3507 = vmatpush.msra.mxu0 0.0
      %3508 = vmatpush.msra.mxu0 0.0
      %3509 = vmatpush.msra.mxu0 0.0
      %3510 = vmatpush.msra.mxu0 %v1686
      %3511 = vmatpush.msra.mxu0 %v1683
      %3512 = vmatpush.msra.mxu0 %v1680
      %3513 = vmatpush.msra.mxu0 %v1677
      %3514 = vmatpush.msra.mxu0 %v1674
      %3515 = vmatpush.msra.mxu0 %v1671
      %3516 = vmatpush.msra.mxu0 %v1668
      %3517 = vmatpush.msra.mxu0 %v1665
      %3518 = vmatmul.f32.gmra.mxu0 %v3497
      %v3519 = vpop.f32.mrf.mxu0
      %v3520 = vadd.f32 0.0, %v3519
      %3521 = vmatmul.f32.gmra.mxu0 %v3500
      %v3522 = vpop.f32.mrf.mxu0
      %v3523 = vadd.f32 0.0, %v3522
      %3524 = vdwg.mxu0
      %v3526 = vsel %vm926, %v3088, 0
      %v3529 = vsel %vm926, %v3089, 0
      %3531 = vmatpush.msra.mxu0 0.0
      %3532 = vmatpush.msra.mxu0 0.0
      %3533 = vmatpush.msra.mxu0 0.0
      %3534 = vmatpush.msra.mxu0 0.0
      %3535 = vmatpush.msra.mxu0 0.0
      %3536 = vmatpush.msra.mxu0 0.0
      %3537 = vmatpush.msra.mxu0 0.0
      %3538 = vmatpush.msra.mxu0 0.0
      %3539 = vmatpush.msra.mxu0 %v1710
      %3540 = vmatpush.msra.mxu0 %v1707
      %3541 = vmatpush.msra.mxu0 %v1704
      %3542 = vmatpush.msra.mxu0 %v1701
      %3543 = vmatpush.msra.mxu0 %v1698
      %3544 = vmatpush.msra.mxu0 %v1695
      %3545 = vmatpush.msra.mxu0 %v1692
      %3546 = vmatpush.msra.mxu0 %v1689
      %3547 = vmatmul.f32.gmra.mxu0 %v3526
      %v3548 = vpop.f32.mrf.mxu0
      %v3549 = vadd.f32 0.0, %v3548
      %3550 = vmatmul.f32.gmra.mxu0 %v3529
      %v3551 = vpop.f32.mrf.mxu0
      %v3552 = vadd.f32 0.0, %v3551
      %3553 = vdwg.mxu0
      %v3554 = vmax.f32 %v3114, 0.0
      %v3555 = vmax.f32 %v3117, 0.0
      %v3556 = vmax.f32 %v3143, 0.0
      %v3557 = vmax.f32 %v3146, 0.0
      %v3558 = vmax.f32 %v3172, 0.0
      %v3559 = vmax.f32 %v3175, 0.0
      %v3560 = vmax.f32 %v3201, 0.0
      %v3561 = vmax.f32 %v3204, 0.0
      %v3562 = vmax.f32 %v3230, 0.0
      %v3563 = vmax.f32 %v3233, 0.0
      %v3564 = vmax.f32 %v3259, 0.0
      %v3565 = vmax.f32 %v3262, 0.0
      %v3566 = vmax.f32 %v3288, 0.0
      %v3567 = vmax.f32 %v3291, 0.0
      %v3568 = vmax.f32 %v3317, 0.0
      %v3569 = vmax.f32 %v3320, 0.0
      %v3570 = vmax.f32 %v3346, 0.0
      %v3571 = vmax.f32 %v3349, 0.0
      %v3572 = vmax.f32 %v3375, 0.0
      %v3573 = vmax.f32 %v3378, 0.0
      %v3574 = vmax.f32 %v3404, 0.0
      %v3575 = vmax.f32 %v3407, 0.0
      %v3576 = vmax.f32 %v3433, 0.0
      %v3577 = vmax.f32 %v3436, 0.0
      %v3578 = vmax.f32 %v3462, 0.0
      %v3579 = vmax.f32 %v3465, 0.0
      %v3580 = vmax.f32 %v3491, 0.0
      %v3581 = vmax.f32 %v3494, 0.0
      %v3582 = vmax.f32 %v3520, 0.0
      %v3583 = vmax.f32 %v3523, 0.0
      %v3584 = vmax.f32 %v3549, 0.0
      %v3585 = vmax.f32 %v3552, 0.0
      %v3586 = vld [vmem:[%s3 + $0x40] sm:$0xff]
      %v3587 = vld [vmem:[%s3 + $0x48] sm:$0xff]
      %v3588 = vld [vmem:[%s3 + $0x50] sm:$0xff]
      %v3589 = vld [vmem:[%s3 + $0x58] sm:$0xff]
      %v3590 = vld [vmem:[%s3 + $0x60] sm:$0x1]
      %v3591 = vperm.slane %v3590, 0
      %vm3592 = vcmask 261120
      %v3594 = vsel %vm3592, %v3554, 0
      %v3597 = vsel %vm3592, %v3555, 0
      %v3600 = vsel %vm3592, %v3556, 0
      %v3603 = vsel %vm3592, %v3557, 0
      %v3606 = vsel %vm3592, %v3558, 0
      %v3609 = vsel %vm3592, %v3559, 0
      %v3612 = vsel %vm3592, %v3560, 0
      %v3615 = vsel %vm3592, %v3561, 0
      %v3618 = vsel %vm3592, %v3562, 0
      %v3621 = vsel %vm3592, %v3563, 0
      %v3624 = vsel %vm3592, %v3564, 0
      %v3627 = vsel %vm3592, %v3565, 0
      %v3630 = vsel %vm3592, %v3566, 0
      %v3633 = vsel %vm3592, %v3567, 0
      %v3636 = vsel %vm3592, %v3568, 0
      %v3639 = vsel %vm3592, %v3569, 0
      %v3642 = vsel %vm3592, %v3570, 0
      %v3645 = vsel %vm3592, %v3571, 0
      %v3648 = vsel %vm3592, %v3572, 0
      %v3651 = vsel %vm3592, %v3573, 0
      %v3654 = vsel %vm3592, %v3574, 0
      %v3657 = vsel %vm3592, %v3575, 0
      %v3660 = vsel %vm3592, %v3576, 0
      %v3663 = vsel %vm3592, %v3577, 0
      %v3666 = vsel %vm3592, %v3578, 0
      %v3669 = vsel %vm3592, %v3579, 0
      %v3672 = vsel %vm3592, %v3580, 0
      %v3675 = vsel %vm3592, %v3581, 0
      %v3678 = vsel %vm3592, %v3582, 0
      %v3681 = vsel %vm3592, %v3583, 0
      %v3684 = vsel %vm3592, %v3584, 0
      %v3687 = vsel %vm3592, %v3585, 0
      %3689 = vmatpush.msra.mxu0 0.0
      %3690 = vmatpush.msra.mxu0 0.0
      %3691 = vmatpush.msra.mxu0 0.0
      %3692 = vmatpush.msra.mxu0 0.0
      %3693 = vmatpush.msra.mxu0 0.0
      %3694 = vmatpush.msra.mxu0 0.0
      %3695 = vmatpush.msra.mxu0 0.0
      %3696 = vmatpush.msra.mxu0 0.0
      %3697 = vmatpush.msra.mxu0 0.0
      %3698 = vmatpush.msra.mxu0 0.0
      %3699 = vmatpush.msra.mxu0 0.0
      %3700 = vmatpush.msra.mxu0 0.0
      %3701 = vmatpush.msra.mxu0 %v3589
      %3702 = vmatpush.msra.mxu0 %v3588
      %3703 = vmatpush.msra.mxu0 %v3587
      %3704 = vmatpush.msra.mxu0 %v3586
      %3705 = vmatmul.f32.gmra.mxu0 %v3594
      %v3706 = vpop.f32.mrf.mxu0
      %v3707 = vadd.f32 %v3591, %v3706
      %3708 = vmatmul.f32.gmra.mxu0 %v3597
      %v3709 = vpop.f32.mrf.mxu0
      %v3710 = vadd.f32 %v3591, %v3709
      %3711 = vmatmul.f32.gmra.mxu0 %v3600
      %v3712 = vpop.f32.mrf.mxu0
      %v3713 = vadd.f32 %v3591, %v3712
      %3714 = vmatmul.f32.gmra.mxu0 %v3603
      %v3715 = vpop.f32.mrf.mxu0
      %v3716 = vadd.f32 %v3591, %v3715
      %3717 = vmatmul.f32.gmra.mxu0 %v3606
      %v3718 = vpop.f32.mrf.mxu0
      %v3719 = vadd.f32 %v3591, %v3718
      %3720 = vmatmul.f32.gmra.mxu0 %v3609
      %v3721 = vpop.f32.mrf.mxu0
      %v3722 = vadd.f32 %v3591, %v3721
      %3723 = vmatmul.f32.gmra.mxu0 %v3612
      %v3724 = vpop.f32.mrf.mxu0
      %v3725 = vadd.f32 %v3591, %v3724
      %3726 = vmatmul.f32.gmra.mxu0 %v3615
      %v3727 = vpop.f32.mrf.mxu0
      %v3728 = vadd.f32 %v3591, %v3727
      %3729 = vmatmul.f32.gmra.mxu0 %v3618
      %v3730 = vpop.f32.mrf.mxu0
      %v3731 = vadd.f32 %v3591, %v3730
      %3732 = vmatmul.f32.gmra.mxu0 %v3621
      %v3733 = vpop.f32.mrf.mxu0
      %v3734 = vadd.f32 %v3591, %v3733
      %3735 = vmatmul.f32.gmra.mxu0 %v3624
      %v3736 = vpop.f32.mrf.mxu0
      %v3737 = vadd.f32 %v3591, %v3736
      %3738 = vmatmul.f32.gmra.mxu0 %v3627
      %v3739 = vpop.f32.mrf.mxu0
      %v3740 = vadd.f32 %v3591, %v3739
      %3741 = vmatmul.f32.gmra.mxu0 %v3630
      %v3742 = vpop.f32.mrf.mxu0
      %v3743 = vadd.f32 %v3591, %v3742
      %3744 = vmatmul.f32.gmra.mxu0 %v3633
      %v3745 = vpop.f32.mrf.mxu0
      %v3746 = vadd.f32 %v3591, %v3745
      %3747 = vmatmul.f32.gmra.mxu0 %v3636
      %v3748 = vpop.f32.mrf.mxu0
      %v3749 = vadd.f32 %v3591, %v3748
      %3750 = vmatmul.f32.gmra.mxu0 %v3639
      %v3751 = vpop.f32.mrf.mxu0
      %v3752 = vadd.f32 %v3591, %v3751
      %3753 = vmatmul.f32.gmra.mxu0 %v3642
      %v3754 = vpop.f32.mrf.mxu0
      %v3755 = vadd.f32 %v3591, %v3754
      %3756 = vmatmul.f32.gmra.mxu0 %v3645
      %v3757 = vpop.f32.mrf.mxu0
      %v3758 = vadd.f32 %v3591, %v3757
      %3759 = vmatmul.f32.gmra.mxu0 %v3648
      %v3760 = vpop.f32.mrf.mxu0
      %v3761 = vadd.f32 %v3591, %v3760
      %3762 = vmatmul.f32.gmra.mxu0 %v3651
      %v3763 = vpop.f32.mrf.mxu0
      %v3764 = vadd.f32 %v3591, %v3763
      %3765 = vmatmul.f32.gmra.mxu0 %v3654
      %v3766 = vpop.f32.mrf.mxu0
      %v3767 = vadd.f32 %v3591, %v3766
      %3768 = vmatmul.f32.gmra.mxu0 %v3657
      %v3769 = vpop.f32.mrf.mxu0
      %v3770 = vadd.f32 %v3591, %v3769
      %3771 = vmatmul.f32.gmra.mxu0 %v3660
      %v3772 = vpop.f32.mrf.mxu0
      %v3773 = vadd.f32 %v3591, %v3772
      %3774 = vmatmul.f32.gmra.mxu0 %v3663
      %v3775 = vpop.f32.mrf.mxu0
      %v3776 = vadd.f32 %v3591, %v3775
      %3777 = vmatmul.f32.gmra.mxu0 %v3666
      %v3778 = vpop.f32.mrf.mxu0
      %v3779 = vadd.f32 %v3591, %v3778
      %3780 = vmatmul.f32.gmra.mxu0 %v3669
      %v3781 = vpop.f32.mrf.mxu0
      %v3782 = vadd.f32 %v3591, %v3781
      %3783 = vmatmul.f32.gmra.mxu0 %v3672
      %v3784 = vpop.f32.mrf.mxu0
      %v3785 = vadd.f32 %v3591, %v3784
      %3786 = vmatmul.f32.gmra.mxu0 %v3675
      %v3787 = vpop.f32.mrf.mxu0
      %v3788 = vadd.f32 %v3591, %v3787
      %3789 = vmatmul.f32.gmra.mxu0 %v3678
      %v3790 = vpop.f32.mrf.mxu0
      %v3791 = vadd.f32 %v3591, %v3790
      %3792 = vmatmul.f32.gmra.mxu0 %v3681
      %v3793 = vpop.f32.mrf.mxu0
      %v3794 = vadd.f32 %v3591, %v3793
      %3795 = vmatmul.f32.gmra.mxu0 %v3684
      %v3796 = vpop.f32.mrf.mxu0
      %v3797 = vadd.f32 %v3591, %v3796
      %3798 = vmatmul.f32.gmra.mxu0 %v3687
      %v3799 = vpop.f32.mrf.mxu0
      %v3800 = vadd.f32 %v3591, %v3799
      %3801 = vdwg.mxu0
      %v3802 = vmax.f32 %v3707, 0.0
      %v3803 = vmax.f32 %v3710, 0.0
      %v3804 = vmax.f32 %v3713, 0.0
      %v3805 = vmax.f32 %v3716, 0.0
      %v3806 = vmax.f32 %v3719, 0.0
      %v3807 = vmax.f32 %v3722, 0.0
      %v3808 = vmax.f32 %v3725, 0.0
      %v3809 = vmax.f32 %v3728, 0.0
      %v3810 = vmax.f32 %v3731, 0.0
      %v3811 = vmax.f32 %v3734, 0.0
      %v3812 = vmax.f32 %v3737, 0.0
      %v3813 = vmax.f32 %v3740, 0.0
      %v3814 = vmax.f32 %v3743, 0.0
      %v3815 = vmax.f32 %v3746, 0.0
      %v3816 = vmax.f32 %v3749, 0.0
      %v3817 = vmax.f32 %v3752, 0.0
      %v3818 = vmax.f32 %v3755, 0.0
      %v3819 = vmax.f32 %v3758, 0.0
      %v3820 = vmax.f32 %v3761, 0.0
      %v3821 = vmax.f32 %v3764, 0.0
      %v3822 = vmax.f32 %v3767, 0.0
      %v3823 = vmax.f32 %v3770, 0.0
      %v3824 = vmax.f32 %v3773, 0.0
      %v3825 = vmax.f32 %v3776, 0.0
      %v3826 = vmax.f32 %v3779, 0.0
      %v3827 = vmax.f32 %v3782, 0.0
      %v3828 = vmax.f32 %v3785, 0.0
      %v3829 = vmax.f32 %v3788, 0.0
      %v3830 = vmax.f32 %v3791, 0.0
      %v3831 = vmax.f32 %v3794, 0.0
      %v3832 = vmax.f32 %v3797, 0.0
      %v3833 = vmax.f32 %v3800, 0.0
      %v3834 = vld [vmem:[%s3 + $0x68] sm:$0xff]
      %v3835 = vld [vmem:[%s3 + $0x70] sm:$0xff]
      %v3836 = vld [vmem:[%s3 + $0x78] sm:$0xff]
      %v3837 = vld [vmem:[%s3 + $0x80] sm:$0xff]
      %v3838 = vld [vmem:[%s3 + $0x88] sm:$0x1]
      %v3839 = vperm.slane %v3838, 0
      %v3841 = vsel %vm3592, %v3802, 0
      %v3844 = vsel %vm3592, %v3803, 0
      %v3847 = vsel %vm3592, %v3804, 0
      %v3850 = vsel %vm3592, %v3805, 0
      %v3853 = vsel %vm3592, %v3806, 0
      %v3856 = vsel %vm3592, %v3807, 0
      %v3859 = vsel %vm3592, %v3808, 0
      %v3862 = vsel %vm3592, %v3809, 0
      %v3865 = vsel %vm3592, %v3810, 0
      %v3868 = vsel %vm3592, %v3811, 0
      %v3871 = vsel %vm3592, %v3812, 0
      %v3874 = vsel %vm3592, %v3813, 0
      %v3877 = vsel %vm3592, %v3814, 0
      %v3880 = vsel %vm3592, %v3815, 0
      %v3883 = vsel %vm3592, %v3816, 0
      %v3886 = vsel %vm3592, %v3817, 0
      %v3889 = vsel %vm3592, %v3818, 0
      %v3892 = vsel %vm3592, %v3819, 0
      %v3895 = vsel %vm3592, %v3820, 0
      %v3898 = vsel %vm3592, %v3821, 0
      %v3901 = vsel %vm3592, %v3822, 0
      %v3904 = vsel %vm3592, %v3823, 0
      %v3907 = vsel %vm3592, %v3824, 0
      %v3910 = vsel %vm3592, %v3825, 0
      %v3913 = vsel %vm3592, %v3826, 0
      %v3916 = vsel %vm3592, %v3827, 0
      %v3919 = vsel %vm3592, %v3828, 0
      %v3922 = vsel %vm3592, %v3829, 0
      %v3925 = vsel %vm3592, %v3830, 0
      %v3928 = vsel %vm3592, %v3831, 0
      %v3931 = vsel %vm3592, %v3832, 0
      %v3934 = vsel %vm3592, %v3833, 0
      %3936 = vmatpush.msra.mxu0 0.0
      %3937 = vmatpush.msra.mxu0 0.0
      %3938 = vmatpush.msra.mxu0 0.0
      %3939 = vmatpush.msra.mxu0 0.0
      %3940 = vmatpush.msra.mxu0 0.0
      %3941 = vmatpush.msra.mxu0 0.0
      %3942 = vmatpush.msra.mxu0 0.0
      %3943 = vmatpush.msra.mxu0 0.0
      %3944 = vmatpush.msra.mxu0 0.0
      %3945 = vmatpush.msra.mxu0 0.0
      %3946 = vmatpush.msra.mxu0 0.0
      %3947 = vmatpush.msra.mxu0 0.0
      %3948 = vmatpush.msra.mxu0 %v3837
      %3949 = vmatpush.msra.mxu0 %v3836
      %3950 = vmatpush.msra.mxu0 %v3835
      %3951 = vmatpush.msra.mxu0 %v3834
      %3952 = vmatmul.f32.gmra.mxu0 %v3841
      %v3953 = vpop.f32.mrf.mxu0
      %v3954 = vadd.f32 %v3839, %v3953
      %3955 = vmatmul.f32.gmra.mxu0 %v3844
      %v3956 = vpop.f32.mrf.mxu0
      %v3957 = vadd.f32 %v3839, %v3956
      %3958 = vmatmul.f32.gmra.mxu0 %v3847
      %v3959 = vpop.f32.mrf.mxu0
      %v3960 = vadd.f32 %v3839, %v3959
      %3961 = vmatmul.f32.gmra.mxu0 %v3850
      %v3962 = vpop.f32.mrf.mxu0
      %v3963 = vadd.f32 %v3839, %v3962
      %3964 = vmatmul.f32.gmra.mxu0 %v3853
      %v3965 = vpop.f32.mrf.mxu0
      %v3966 = vadd.f32 %v3839, %v3965
      %3967 = vmatmul.f32.gmra.mxu0 %v3856
      %v3968 = vpop.f32.mrf.mxu0
      %v3969 = vadd.f32 %v3839, %v3968
      %3970 = vmatmul.f32.gmra.mxu0 %v3859
      %v3971 = vpop.f32.mrf.mxu0
      %v3972 = vadd.f32 %v3839, %v3971
      %3973 = vmatmul.f32.gmra.mxu0 %v3862
      %v3974 = vpop.f32.mrf.mxu0
      %v3975 = vadd.f32 %v3839, %v3974
      %3976 = vmatmul.f32.gmra.mxu0 %v3865
      %v3977 = vpop.f32.mrf.mxu0
      %v3978 = vadd.f32 %v3839, %v3977
      %3979 = vmatmul.f32.gmra.mxu0 %v3868
      %v3980 = vpop.f32.mrf.mxu0
      %v3981 = vadd.f32 %v3839, %v3980
      %3982 = vmatmul.f32.gmra.mxu0 %v3871
      %v3983 = vpop.f32.mrf.mxu0
      %v3984 = vadd.f32 %v3839, %v3983
      %3985 = vmatmul.f32.gmra.mxu0 %v3874
      %v3986 = vpop.f32.mrf.mxu0
      %v3987 = vadd.f32 %v3839, %v3986
      %3988 = vmatmul.f32.gmra.mxu0 %v3877
      %v3989 = vpop.f32.mrf.mxu0
      %v3990 = vadd.f32 %v3839, %v3989
      %3991 = vmatmul.f32.gmra.mxu0 %v3880
      %v3992 = vpop.f32.mrf.mxu0
      %v3993 = vadd.f32 %v3839, %v3992
      %3994 = vmatmul.f32.gmra.mxu0 %v3883
      %v3995 = vpop.f32.mrf.mxu0
      %v3996 = vadd.f32 %v3839, %v3995
      %3997 = vmatmul.f32.gmra.mxu0 %v3886
      %v3998 = vpop.f32.mrf.mxu0
      %v3999 = vadd.f32 %v3839, %v3998
      %4000 = vmatmul.f32.gmra.mxu0 %v3889
      %v4001 = vpop.f32.mrf.mxu0
      %v4002 = vadd.f32 %v3839, %v4001
      %4003 = vmatmul.f32.gmra.mxu0 %v3892
      %v4004 = vpop.f32.mrf.mxu0
      %v4005 = vadd.f32 %v3839, %v4004
      %4006 = vmatmul.f32.gmra.mxu0 %v3895
      %v4007 = vpop.f32.mrf.mxu0
      %v4008 = vadd.f32 %v3839, %v4007
      %4009 = vmatmul.f32.gmra.mxu0 %v3898
      %v4010 = vpop.f32.mrf.mxu0
      %v4011 = vadd.f32 %v3839, %v4010
      %4012 = vmatmul.f32.gmra.mxu0 %v3901
      %v4013 = vpop.f32.mrf.mxu0
      %v4014 = vadd.f32 %v3839, %v4013
      %4015 = vmatmul.f32.gmra.mxu0 %v3904
      %v4016 = vpop.f32.mrf.mxu0
      %v4017 = vadd.f32 %v3839, %v4016
      %4018 = vmatmul.f32.gmra.mxu0 %v3907
      %v4019 = vpop.f32.mrf.mxu0
      %v4020 = vadd.f32 %v3839, %v4019
      %4021 = vmatmul.f32.gmra.mxu0 %v3910
      %v4022 = vpop.f32.mrf.mxu0
      %v4023 = vadd.f32 %v3839, %v4022
      %4024 = vmatmul.f32.gmra.mxu0 %v3913
      %v4025 = vpop.f32.mrf.mxu0
      %v4026 = vadd.f32 %v3839, %v4025
      %4027 = vmatmul.f32.gmra.mxu0 %v3916
      %v4028 = vpop.f32.mrf.mxu0
      %v4029 = vadd.f32 %v3839, %v4028
      %4030 = vmatmul.f32.gmra.mxu0 %v3919
      %v4031 = vpop.f32.mrf.mxu0
      %v4032 = vadd.f32 %v3839, %v4031
      %4033 = vmatmul.f32.gmra.mxu0 %v3922
      %v4034 = vpop.f32.mrf.mxu0
      %v4035 = vadd.f32 %v3839, %v4034
      %4036 = vmatmul.f32.gmra.mxu0 %v3925
      %v4037 = vpop.f32.mrf.mxu0
      %v4038 = vadd.f32 %v3839, %v4037
      %4039 = vmatmul.f32.gmra.mxu0 %v3928
      %v4040 = vpop.f32.mrf.mxu0
      %v4041 = vadd.f32 %v3839, %v4040
      %4042 = vmatmul.f32.gmra.mxu0 %v3931
      %v4043 = vpop.f32.mrf.mxu0
      %v4044 = vadd.f32 %v3839, %v4043
      %4045 = vmatmul.f32.gmra.mxu0 %v3934
      %v4046 = vpop.f32.mrf.mxu0
      %v4047 = vadd.f32 %v3839, %v4046
      %4048 = vdwg.mxu0
      %v4049 = vand.u32 2147483647, %v3954
      %v4050 = vand.u32 2147483647, %v3957
      %v4051 = vand.u32 2147483647, %v3960
      %v4052 = vand.u32 2147483647, %v3963
      %v4053 = vand.u32 2147483647, %v3966
      %v4054 = vand.u32 2147483647, %v3969
      %v4055 = vand.u32 2147483647, %v3972
      %v4056 = vand.u32 2147483647, %v3975
      %v4057 = vand.u32 2147483647, %v3978
      %v4058 = vand.u32 2147483647, %v3981
      %v4059 = vand.u32 2147483647, %v3984
      %v4060 = vand.u32 2147483647, %v3987
      %v4061 = vand.u32 2147483647, %v3990
      %v4062 = vand.u32 2147483647, %v3993
      %v4063 = vand.u32 2147483647, %v3996
      %v4064 = vand.u32 2147483647, %v3999
      %v4065 = vand.u32 2147483647, %v4002
      %v4066 = vand.u32 2147483647, %v4005
      %v4067 = vand.u32 2147483647, %v4008
      %v4068 = vand.u32 2147483647, %v4011
      %v4069 = vand.u32 2147483647, %v4014
      %v4070 = vand.u32 2147483647, %v4017
      %v4071 = vand.u32 2147483647, %v4020
      %v4072 = vand.u32 2147483647, %v4023
      %v4073 = vand.u32 2147483647, %v4026
      %v4074 = vand.u32 2147483647, %v4029
      %v4075 = vand.u32 2147483647, %v4032
      %v4076 = vand.u32 2147483647, %v4035
      %v4077 = vand.u32 2147483647, %v4038
      %v4078 = vand.u32 2147483647, %v4041
      %v4079 = vand.u32 2147483647, %v4044
      %v4080 = vand.u32 2147483647, %v4047
      %v4081 = vsub.f32 0.0, %v4049
      %v4082 = vsub.f32 0.0, %v4050
      %v4083 = vsub.f32 0.0, %v4051
      %v4084 = vsub.f32 0.0, %v4052
      %v4085 = vsub.f32 0.0, %v4053
      %v4086 = vsub.f32 0.0, %v4054
      %v4087 = vsub.f32 0.0, %v4055
      %v4088 = vsub.f32 0.0, %v4056
      %v4089 = vsub.f32 0.0, %v4057
      %v4090 = vsub.f32 0.0, %v4058
      %v4091 = vsub.f32 0.0, %v4059
      %v4092 = vsub.f32 0.0, %v4060
      %v4093 = vsub.f32 0.0, %v4061
      %v4094 = vsub.f32 0.0, %v4062
      %v4095 = vsub.f32 0.0, %v4063
      %v4096 = vsub.f32 0.0, %v4064
      %v4097 = vsub.f32 0.0, %v4065
      %v4098 = vsub.f32 0.0, %v4066
      %v4099 = vsub.f32 0.0, %v4067
      %v4100 = vsub.f32 0.0, %v4068
      %v4101 = vsub.f32 0.0, %v4069
      %v4102 = vsub.f32 0.0, %v4070
      %v4103 = vsub.f32 0.0, %v4071
      %v4104 = vsub.f32 0.0, %v4072
      %v4105 = vsub.f32 0.0, %v4073
      %v4106 = vsub.f32 0.0, %v4074
      %v4107 = vsub.f32 0.0, %v4075
      %v4108 = vsub.f32 0.0, %v4076
      %v4109 = vsub.f32 0.0, %v4077
      %v4110 = vsub.f32 0.0, %v4078
      %v4111 = vsub.f32 0.0, %v4079
      %v4112 = vsub.f32 0.0, %v4080
      %v4113 = vmul.f32 %v4081, 1.442695
      %v4114 = vpow.pop %v4113
      %v4115 = vmul.f32 %v4082, 1.442695
      %v4116 = vpow.pop %v4115
      %v4117 = vmul.f32 %v4083, 1.442695
      %v4118 = vpow.pop %v4117
      %v4119 = vmul.f32 %v4084, 1.442695
      %v4120 = vpow.pop %v4119
      %v4121 = vmul.f32 %v4085, 1.442695
      %v4122 = vpow.pop %v4121
      %v4123 = vmul.f32 %v4086, 1.442695
      %v4124 = vpow.pop %v4123
      %v4125 = vmul.f32 %v4087, 1.442695
      %v4126 = vpow.pop %v4125
      %v4127 = vmul.f32 %v4088, 1.442695
      %v4128 = vpow.pop %v4127
      %v4129 = vmul.f32 %v4089, 1.442695
      %v4130 = vpow.pop %v4129
      %v4131 = vmul.f32 %v4090, 1.442695
      %v4132 = vpow.pop %v4131
      %v4133 = vmul.f32 %v4091, 1.442695
      %v4134 = vpow.pop %v4133
      %v4135 = vmul.f32 %v4092, 1.442695
      %v4136 = vpow.pop %v4135
      %v4137 = vmul.f32 %v4093, 1.442695
      %v4138 = vpow.pop %v4137
      %v4139 = vmul.f32 %v4094, 1.442695
      %v4140 = vpow.pop %v4139
      %v4141 = vmul.f32 %v4095, 1.442695
      %v4142 = vpow.pop %v4141
      %v4143 = vmul.f32 %v4096, 1.442695
      %v4144 = vpow.pop %v4143
      %v4145 = vmul.f32 %v4097, 1.442695
      %v4146 = vpow.pop %v4145
      %v4147 = vmul.f32 %v4098, 1.442695
      %v4148 = vpow.pop %v4147
      %v4149 = vmul.f32 %v4099, 1.442695
      %v4150 = vpow.pop %v4149
      %v4151 = vmul.f32 %v4100, 1.442695
      %v4152 = vpow.pop %v4151
      %v4153 = vmul.f32 %v4101, 1.442695
      %v4154 = vpow.pop %v4153
      %v4155 = vmul.f32 %v4102, 1.442695
      %v4156 = vpow.pop %v4155
      %v4157 = vmul.f32 %v4103, 1.442695
      %v4158 = vpow.pop %v4157
      %v4159 = vmul.f32 %v4104, 1.442695
      %v4160 = vpow.pop %v4159
      %v4161 = vmul.f32 %v4105, 1.442695
      %v4162 = vpow.pop %v4161
      %v4163 = vmul.f32 %v4106, 1.442695
      %v4164 = vpow.pop %v4163
      %v4165 = vmul.f32 %v4107, 1.442695
      %v4166 = vpow.pop %v4165
      %v4167 = vmul.f32 %v4108, 1.442695
      %v4168 = vpow.pop %v4167
      %v4169 = vmul.f32 %v4109, 1.442695
      %v4170 = vpow.pop %v4169
      %v4171 = vmul.f32 %v4110, 1.442695
      %v4172 = vpow.pop %v4171
      %v4173 = vmul.f32 %v4111, 1.442695
      %v4174 = vpow.pop %v4173
      %v4175 = vmul.f32 %v4112, 1.442695
      %v4176 = vpow.pop %v4175
      %vm4177 = vcmp.ge.f32.partialorder %v3954, 0.0
      %vm4178 = vcmp.ge.f32.partialorder %v3957, 0.0
      %vm4179 = vcmp.ge.f32.partialorder %v3960, 0.0
      %vm4180 = vcmp.ge.f32.partialorder %v3963, 0.0
      %vm4181 = vcmp.ge.f32.partialorder %v3966, 0.0
      %vm4182 = vcmp.ge.f32.partialorder %v3969, 0.0
      %vm4183 = vcmp.ge.f32.partialorder %v3972, 0.0
      %vm4184 = vcmp.ge.f32.partialorder %v3975, 0.0
      %vm4185 = vcmp.ge.f32.partialorder %v3978, 0.0
      %vm4186 = vcmp.ge.f32.partialorder %v3981, 0.0
      %vm4187 = vcmp.ge.f32.partialorder %v3984, 0.0
      %vm4188 = vcmp.ge.f32.partialorder %v3987, 0.0
      %vm4189 = vcmp.ge.f32.partialorder %v3990, 0.0
      %vm4190 = vcmp.ge.f32.partialorder %v3993, 0.0
      %vm4191 = vcmp.ge.f32.partialorder %v3996, 0.0
      %vm4192 = vcmp.ge.f32.partialorder %v3999, 0.0
      %vm4193 = vcmp.ge.f32.partialorder %v4002, 0.0
      %vm4194 = vcmp.ge.f32.partialorder %v4005, 0.0
      %vm4195 = vcmp.ge.f32.partialorder %v4008, 0.0
      %vm4196 = vcmp.ge.f32.partialorder %v4011, 0.0
      %vm4197 = vcmp.ge.f32.partialorder %v4014, 0.0
      %vm4198 = vcmp.ge.f32.partialorder %v4017, 0.0
      %vm4199 = vcmp.ge.f32.partialorder %v4020, 0.0
      %vm4200 = vcmp.ge.f32.partialorder %v4023, 0.0
      %vm4201 = vcmp.ge.f32.partialorder %v4026, 0.0
      %vm4202 = vcmp.ge.f32.partialorder %v4029, 0.0
      %vm4203 = vcmp.ge.f32.partialorder %v4032, 0.0
      %vm4204 = vcmp.ge.f32.partialorder %v4035, 0.0
      %vm4205 = vcmp.ge.f32.partialorder %v4038, 0.0
      %vm4206 = vcmp.ge.f32.partialorder %v4041, 0.0
      %vm4207 = vcmp.ge.f32.partialorder %v4044, 0.0
      %vm4208 = vcmp.ge.f32.partialorder %v4047, 0.0
      %v4209 = vadd.f32 %v4114, 1.0
      %v4210 = vadd.f32 %v4116, 1.0
      %v4211 = vadd.f32 %v4118, 1.0
      %v4212 = vadd.f32 %v4120, 1.0
      %v4213 = vadd.f32 %v4122, 1.0
      %v4214 = vadd.f32 %v4124, 1.0
      %v4215 = vadd.f32 %v4126, 1.0
      %v4216 = vadd.f32 %v4128, 1.0
      %v4217 = vadd.f32 %v4130, 1.0
      %v4218 = vadd.f32 %v4132, 1.0
      %v4219 = vadd.f32 %v4134, 1.0
      %v4220 = vadd.f32 %v4136, 1.0
      %v4221 = vadd.f32 %v4138, 1.0
      %v4222 = vadd.f32 %v4140, 1.0
      %v4223 = vadd.f32 %v4142, 1.0
      %v4224 = vadd.f32 %v4144, 1.0
      %v4225 = vadd.f32 %v4146, 1.0
      %v4226 = vadd.f32 %v4148, 1.0
      %v4227 = vadd.f32 %v4150, 1.0
      %v4228 = vadd.f32 %v4152, 1.0
      %v4229 = vadd.f32 %v4154, 1.0
      %v4230 = vadd.f32 %v4156, 1.0
      %v4231 = vadd.f32 %v4158, 1.0
      %v4232 = vadd.f32 %v4160, 1.0
      %v4233 = vadd.f32 %v4162, 1.0
      %v4234 = vadd.f32 %v4164, 1.0
      %v4235 = vadd.f32 %v4166, 1.0
      %v4236 = vadd.f32 %v4168, 1.0
      %v4237 = vadd.f32 %v4170, 1.0
      %v4238 = vadd.f32 %v4172, 1.0
      %v4239 = vadd.f32 %v4174, 1.0
      %v4240 = vadd.f32 %v4176, 1.0
      %v4241 = vrcp.pop %v4209
      %v4242 = vmul.f32 %v4209, %v4241
      %v4243 = vsub.f32 1.0, %v4242
      %v4244 = vmul.f32 %v4241, %v4243
      %v4245 = vadd.f32 %v4241, %v4244
      %vm4246 = vweird.f32 %v4209
      %vm4247 = vweird.f32 %v4241
      %vm4248 = vmor %vm4246, %vm4247
      %v4249 = vsel %vm4248, %v4241, %v4245
      %v4250 = vand.u32 2147483647, %v4209
      %vm4251 = vcmp.eq.f32.partialorder %v4250, 8.507059e+37
      %v4252 = vand.u32 %v4209, 2147483648
      %v4253 = vor.u32 1.1754944e-38, %v4252
      %v4254 = vsel %vm4251, %v4253, %v4249
      %v4255 = vmul.f32 1.0, %v4254
      %v4256 = vrcp.pop %v4210
      %v4257 = vmul.f32 %v4210, %v4256
      %v4258 = vsub.f32 1.0, %v4257
      %v4259 = vmul.f32 %v4256, %v4258
      %v4260 = vadd.f32 %v4256, %v4259
      %vm4261 = vweird.f32 %v4210
      %vm4262 = vweird.f32 %v4256
      %vm4263 = vmor %vm4261, %vm4262
      %v4264 = vsel %vm4263, %v4256, %v4260
      %v4265 = vand.u32 2147483647, %v4210
      %vm4266 = vcmp.eq.f32.partialorder %v4265, 8.507059e+37
      %v4267 = vand.u32 %v4210, 2147483648
      %v4268 = vor.u32 1.1754944e-38, %v4267
      %v4269 = vsel %vm4266, %v4268, %v4264
      %v4270 = vmul.f32 1.0, %v4269
      %v4271 = vrcp.pop %v4211
      %v4272 = vmul.f32 %v4211, %v4271
      %v4273 = vsub.f32 1.0, %v4272
      %v4274 = vmul.f32 %v4271, %v4273
      %v4275 = vadd.f32 %v4271, %v4274
      %vm4276 = vweird.f32 %v4211
      %vm4277 = vweird.f32 %v4271
      %vm4278 = vmor %vm4276, %vm4277
      %v4279 = vsel %vm4278, %v4271, %v4275
      %v4280 = vand.u32 2147483647, %v4211
      %vm4281 = vcmp.eq.f32.partialorder %v4280, 8.507059e+37
      %v4282 = vand.u32 %v4211, 2147483648
      %v4283 = vor.u32 1.1754944e-38, %v4282
      %v4284 = vsel %vm4281, %v4283, %v4279
      %v4285 = vmul.f32 1.0, %v4284
      %v4286 = vrcp.pop %v4212
      %v4287 = vmul.f32 %v4212, %v4286
      %v4288 = vsub.f32 1.0, %v4287
      %v4289 = vmul.f32 %v4286, %v4288
      %v4290 = vadd.f32 %v4286, %v4289
      %vm4291 = vweird.f32 %v4212
      %vm4292 = vweird.f32 %v4286
      %vm4293 = vmor %vm4291, %vm4292
      %v4294 = vsel %vm4293, %v4286, %v4290
      %v4295 = vand.u32 2147483647, %v4212
      %vm4296 = vcmp.eq.f32.partialorder %v4295, 8.507059e+37
      %v4297 = vand.u32 %v4212, 2147483648
      %v4298 = vor.u32 1.1754944e-38, %v4297
      %v4299 = vsel %vm4296, %v4298, %v4294
      %v4300 = vmul.f32 1.0, %v4299
      %v4301 = vrcp.pop %v4213
      %v4302 = vmul.f32 %v4213, %v4301
      %v4303 = vsub.f32 1.0, %v4302
      %v4304 = vmul.f32 %v4301, %v4303
      %v4305 = vadd.f32 %v4301, %v4304
      %vm4306 = vweird.f32 %v4213
      %vm4307 = vweird.f32 %v4301
      %vm4308 = vmor %vm4306, %vm4307
      %v4309 = vsel %vm4308, %v4301, %v4305
      %v4310 = vand.u32 2147483647, %v4213
      %vm4311 = vcmp.eq.f32.partialorder %v4310, 8.507059e+37
      %v4312 = vand.u32 %v4213, 2147483648
      %v4313 = vor.u32 1.1754944e-38, %v4312
      %v4314 = vsel %vm4311, %v4313, %v4309
      %v4315 = vmul.f32 1.0, %v4314
      %v4316 = vrcp.pop %v4214
      %v4317 = vmul.f32 %v4214, %v4316
      %v4318 = vsub.f32 1.0, %v4317
      %v4319 = vmul.f32 %v4316, %v4318
      %v4320 = vadd.f32 %v4316, %v4319
      %vm4321 = vweird.f32 %v4214
      %vm4322 = vweird.f32 %v4316
      %vm4323 = vmor %vm4321, %vm4322
      %v4324 = vsel %vm4323, %v4316, %v4320
      %v4325 = vand.u32 2147483647, %v4214
      %vm4326 = vcmp.eq.f32.partialorder %v4325, 8.507059e+37
      %v4327 = vand.u32 %v4214, 2147483648
      %v4328 = vor.u32 1.1754944e-38, %v4327
      %v4329 = vsel %vm4326, %v4328, %v4324
      %v4330 = vmul.f32 1.0, %v4329
      %v4331 = vrcp.pop %v4215
      %v4332 = vmul.f32 %v4215, %v4331
      %v4333 = vsub.f32 1.0, %v4332
      %v4334 = vmul.f32 %v4331, %v4333
      %v4335 = vadd.f32 %v4331, %v4334
      %vm4336 = vweird.f32 %v4215
      %vm4337 = vweird.f32 %v4331
      %vm4338 = vmor %vm4336, %vm4337
      %v4339 = vsel %vm4338, %v4331, %v4335
      %v4340 = vand.u32 2147483647, %v4215
      %vm4341 = vcmp.eq.f32.partialorder %v4340, 8.507059e+37
      %v4342 = vand.u32 %v4215, 2147483648
      %v4343 = vor.u32 1.1754944e-38, %v4342
      %v4344 = vsel %vm4341, %v4343, %v4339
      %v4345 = vmul.f32 1.0, %v4344
      %v4346 = vrcp.pop %v4216
      %v4347 = vmul.f32 %v4216, %v4346
      %v4348 = vsub.f32 1.0, %v4347
      %v4349 = vmul.f32 %v4346, %v4348
      %v4350 = vadd.f32 %v4346, %v4349
      %vm4351 = vweird.f32 %v4216
      %vm4352 = vweird.f32 %v4346
      %vm4353 = vmor %vm4351, %vm4352
      %v4354 = vsel %vm4353, %v4346, %v4350
      %v4355 = vand.u32 2147483647, %v4216
      %vm4356 = vcmp.eq.f32.partialorder %v4355, 8.507059e+37
      %v4357 = vand.u32 %v4216, 2147483648
      %v4358 = vor.u32 1.1754944e-38, %v4357
      %v4359 = vsel %vm4356, %v4358, %v4354
      %v4360 = vmul.f32 1.0, %v4359
      %v4361 = vrcp.pop %v4217
      %v4362 = vmul.f32 %v4217, %v4361
      %v4363 = vsub.f32 1.0, %v4362
      %v4364 = vmul.f32 %v4361, %v4363
      %v4365 = vadd.f32 %v4361, %v4364
      %vm4366 = vweird.f32 %v4217
      %vm4367 = vweird.f32 %v4361
      %vm4368 = vmor %vm4366, %vm4367
      %v4369 = vsel %vm4368, %v4361, %v4365
      %v4370 = vand.u32 2147483647, %v4217
      %vm4371 = vcmp.eq.f32.partialorder %v4370, 8.507059e+37
      %v4372 = vand.u32 %v4217, 2147483648
      %v4373 = vor.u32 1.1754944e-38, %v4372
      %v4374 = vsel %vm4371, %v4373, %v4369
      %v4375 = vmul.f32 1.0, %v4374
      %v4376 = vrcp.pop %v4218
      %v4377 = vmul.f32 %v4218, %v4376
      %v4378 = vsub.f32 1.0, %v4377
      %v4379 = vmul.f32 %v4376, %v4378
      %v4380 = vadd.f32 %v4376, %v4379
      %vm4381 = vweird.f32 %v4218
      %vm4382 = vweird.f32 %v4376
      %vm4383 = vmor %vm4381, %vm4382
      %v4384 = vsel %vm4383, %v4376, %v4380
      %v4385 = vand.u32 2147483647, %v4218
      %vm4386 = vcmp.eq.f32.partialorder %v4385, 8.507059e+37
      %v4387 = vand.u32 %v4218, 2147483648
      %v4388 = vor.u32 1.1754944e-38, %v4387
      %v4389 = vsel %vm4386, %v4388, %v4384
      %v4390 = vmul.f32 1.0, %v4389
      %v4391 = vrcp.pop %v4219
      %v4392 = vmul.f32 %v4219, %v4391
      %v4393 = vsub.f32 1.0, %v4392
      %v4394 = vmul.f32 %v4391, %v4393
      %v4395 = vadd.f32 %v4391, %v4394
      %vm4396 = vweird.f32 %v4219
      %vm4397 = vweird.f32 %v4391
      %vm4398 = vmor %vm4396, %vm4397
      %v4399 = vsel %vm4398, %v4391, %v4395
      %v4400 = vand.u32 2147483647, %v4219
      %vm4401 = vcmp.eq.f32.partialorder %v4400, 8.507059e+37
      %v4402 = vand.u32 %v4219, 2147483648
      %v4403 = vor.u32 1.1754944e-38, %v4402
      %v4404 = vsel %vm4401, %v4403, %v4399
      %v4405 = vmul.f32 1.0, %v4404
      %v4406 = vrcp.pop %v4220
      %v4407 = vmul.f32 %v4220, %v4406
      %v4408 = vsub.f32 1.0, %v4407
      %v4409 = vmul.f32 %v4406, %v4408
      %v4410 = vadd.f32 %v4406, %v4409
      %vm4411 = vweird.f32 %v4220
      %vm4412 = vweird.f32 %v4406
      %vm4413 = vmor %vm4411, %vm4412
      %v4414 = vsel %vm4413, %v4406, %v4410
      %v4415 = vand.u32 2147483647, %v4220
      %vm4416 = vcmp.eq.f32.partialorder %v4415, 8.507059e+37
      %v4417 = vand.u32 %v4220, 2147483648
      %v4418 = vor.u32 1.1754944e-38, %v4417
      %v4419 = vsel %vm4416, %v4418, %v4414
      %v4420 = vmul.f32 1.0, %v4419
      %v4421 = vrcp.pop %v4221
      %v4422 = vmul.f32 %v4221, %v4421
      %v4423 = vsub.f32 1.0, %v4422
      %v4424 = vmul.f32 %v4421, %v4423
      %v4425 = vadd.f32 %v4421, %v4424
      %vm4426 = vweird.f32 %v4221
      %vm4427 = vweird.f32 %v4421
      %vm4428 = vmor %vm4426, %vm4427
      %v4429 = vsel %vm4428, %v4421, %v4425
      %v4430 = vand.u32 2147483647, %v4221
      %vm4431 = vcmp.eq.f32.partialorder %v4430, 8.507059e+37
      %v4432 = vand.u32 %v4221, 2147483648
      %v4433 = vor.u32 1.1754944e-38, %v4432
      %v4434 = vsel %vm4431, %v4433, %v4429
      %v4435 = vmul.f32 1.0, %v4434
      %v4436 = vrcp.pop %v4222
      %v4437 = vmul.f32 %v4222, %v4436
      %v4438 = vsub.f32 1.0, %v4437
      %v4439 = vmul.f32 %v4436, %v4438
      %v4440 = vadd.f32 %v4436, %v4439
      %vm4441 = vweird.f32 %v4222
      %vm4442 = vweird.f32 %v4436
      %vm4443 = vmor %vm4441, %vm4442
      %v4444 = vsel %vm4443, %v4436, %v4440
      %v4445 = vand.u32 2147483647, %v4222
      %vm4446 = vcmp.eq.f32.partialorder %v4445, 8.507059e+37
      %v4447 = vand.u32 %v4222, 2147483648
      %v4448 = vor.u32 1.1754944e-38, %v4447
      %v4449 = vsel %vm4446, %v4448, %v4444
      %v4450 = vmul.f32 1.0, %v4449
      %v4451 = vrcp.pop %v4223
      %v4452 = vmul.f32 %v4223, %v4451
      %v4453 = vsub.f32 1.0, %v4452
      %v4454 = vmul.f32 %v4451, %v4453
      %v4455 = vadd.f32 %v4451, %v4454
      %vm4456 = vweird.f32 %v4223
      %vm4457 = vweird.f32 %v4451
      %vm4458 = vmor %vm4456, %vm4457
      %v4459 = vsel %vm4458, %v4451, %v4455
      %v4460 = vand.u32 2147483647, %v4223
      %vm4461 = vcmp.eq.f32.partialorder %v4460, 8.507059e+37
      %v4462 = vand.u32 %v4223, 2147483648
      %v4463 = vor.u32 1.1754944e-38, %v4462
      %v4464 = vsel %vm4461, %v4463, %v4459
      %v4465 = vmul.f32 1.0, %v4464
      %v4466 = vrcp.pop %v4224
      %v4467 = vmul.f32 %v4224, %v4466
      %v4468 = vsub.f32 1.0, %v4467
      %v4469 = vmul.f32 %v4466, %v4468
      %v4470 = vadd.f32 %v4466, %v4469
      %vm4471 = vweird.f32 %v4224
      %vm4472 = vweird.f32 %v4466
      %vm4473 = vmor %vm4471, %vm4472
      %v4474 = vsel %vm4473, %v4466, %v4470
      %v4475 = vand.u32 2147483647, %v4224
      %vm4476 = vcmp.eq.f32.partialorder %v4475, 8.507059e+37
      %v4477 = vand.u32 %v4224, 2147483648
      %v4478 = vor.u32 1.1754944e-38, %v4477
      %v4479 = vsel %vm4476, %v4478, %v4474
      %v4480 = vmul.f32 1.0, %v4479
      %v4481 = vrcp.pop %v4225
      %v4482 = vmul.f32 %v4225, %v4481
      %v4483 = vsub.f32 1.0, %v4482
      %v4484 = vmul.f32 %v4481, %v4483
      %v4485 = vadd.f32 %v4481, %v4484
      %vm4486 = vweird.f32 %v4225
      %vm4487 = vweird.f32 %v4481
      %vm4488 = vmor %vm4486, %vm4487
      %v4489 = vsel %vm4488, %v4481, %v4485
      %v4490 = vand.u32 2147483647, %v4225
      %vm4491 = vcmp.eq.f32.partialorder %v4490, 8.507059e+37
      %v4492 = vand.u32 %v4225, 2147483648
      %v4493 = vor.u32 1.1754944e-38, %v4492
      %v4494 = vsel %vm4491, %v4493, %v4489
      %v4495 = vmul.f32 1.0, %v4494
      %v4496 = vrcp.pop %v4226
      %v4497 = vmul.f32 %v4226, %v4496
      %v4498 = vsub.f32 1.0, %v4497
      %v4499 = vmul.f32 %v4496, %v4498
      %v4500 = vadd.f32 %v4496, %v4499
      %vm4501 = vweird.f32 %v4226
      %vm4502 = vweird.f32 %v4496
      %vm4503 = vmor %vm4501, %vm4502
      %v4504 = vsel %vm4503, %v4496, %v4500
      %v4505 = vand.u32 2147483647, %v4226
      %vm4506 = vcmp.eq.f32.partialorder %v4505, 8.507059e+37
      %v4507 = vand.u32 %v4226, 2147483648
      %v4508 = vor.u32 1.1754944e-38, %v4507
      %v4509 = vsel %vm4506, %v4508, %v4504
      %v4510 = vmul.f32 1.0, %v4509
      %v4511 = vrcp.pop %v4227
      %v4512 = vmul.f32 %v4227, %v4511
      %v4513 = vsub.f32 1.0, %v4512
      %v4514 = vmul.f32 %v4511, %v4513
      %v4515 = vadd.f32 %v4511, %v4514
      %vm4516 = vweird.f32 %v4227
      %vm4517 = vweird.f32 %v4511
      %vm4518 = vmor %vm4516, %vm4517
      %v4519 = vsel %vm4518, %v4511, %v4515
      %v4520 = vand.u32 2147483647, %v4227
      %vm4521 = vcmp.eq.f32.partialorder %v4520, 8.507059e+37
      %v4522 = vand.u32 %v4227, 2147483648
      %v4523 = vor.u32 1.1754944e-38, %v4522
      %v4524 = vsel %vm4521, %v4523, %v4519
      %v4525 = vmul.f32 1.0, %v4524
      %v4526 = vrcp.pop %v4228
      %v4527 = vmul.f32 %v4228, %v4526
      %v4528 = vsub.f32 1.0, %v4527
      %v4529 = vmul.f32 %v4526, %v4528
      %v4530 = vadd.f32 %v4526, %v4529
      %vm4531 = vweird.f32 %v4228
      %vm4532 = vweird.f32 %v4526
      %vm4533 = vmor %vm4531, %vm4532
      %v4534 = vsel %vm4533, %v4526, %v4530
      %v4535 = vand.u32 2147483647, %v4228
      %vm4536 = vcmp.eq.f32.partialorder %v4535, 8.507059e+37
      %v4537 = vand.u32 %v4228, 2147483648
      %v4538 = vor.u32 1.1754944e-38, %v4537
      %v4539 = vsel %vm4536, %v4538, %v4534
      %v4540 = vmul.f32 1.0, %v4539
      %v4541 = vrcp.pop %v4229
      %v4542 = vmul.f32 %v4229, %v4541
      %v4543 = vsub.f32 1.0, %v4542
      %v4544 = vmul.f32 %v4541, %v4543
      %v4545 = vadd.f32 %v4541, %v4544
      %vm4546 = vweird.f32 %v4229
      %vm4547 = vweird.f32 %v4541
      %vm4548 = vmor %vm4546, %vm4547
      %v4549 = vsel %vm4548, %v4541, %v4545
      %v4550 = vand.u32 2147483647, %v4229
      %vm4551 = vcmp.eq.f32.partialorder %v4550, 8.507059e+37
      %v4552 = vand.u32 %v4229, 2147483648
      %v4553 = vor.u32 1.1754944e-38, %v4552
      %v4554 = vsel %vm4551, %v4553, %v4549
      %v4555 = vmul.f32 1.0, %v4554
      %v4556 = vrcp.pop %v4230
      %v4557 = vmul.f32 %v4230, %v4556
      %v4558 = vsub.f32 1.0, %v4557
      %v4559 = vmul.f32 %v4556, %v4558
      %v4560 = vadd.f32 %v4556, %v4559
      %vm4561 = vweird.f32 %v4230
      %vm4562 = vweird.f32 %v4556
      %vm4563 = vmor %vm4561, %vm4562
      %v4564 = vsel %vm4563, %v4556, %v4560
      %v4565 = vand.u32 2147483647, %v4230
      %vm4566 = vcmp.eq.f32.partialorder %v4565, 8.507059e+37
      %v4567 = vand.u32 %v4230, 2147483648
      %v4568 = vor.u32 1.1754944e-38, %v4567
      %v4569 = vsel %vm4566, %v4568, %v4564
      %v4570 = vmul.f32 1.0, %v4569
      %v4571 = vrcp.pop %v4231
      %v4572 = vmul.f32 %v4231, %v4571
      %v4573 = vsub.f32 1.0, %v4572
      %v4574 = vmul.f32 %v4571, %v4573
      %v4575 = vadd.f32 %v4571, %v4574
      %vm4576 = vweird.f32 %v4231
      %vm4577 = vweird.f32 %v4571
      %vm4578 = vmor %vm4576, %vm4577
      %v4579 = vsel %vm4578, %v4571, %v4575
      %v4580 = vand.u32 2147483647, %v4231
      %vm4581 = vcmp.eq.f32.partialorder %v4580, 8.507059e+37
      %v4582 = vand.u32 %v4231, 2147483648
      %v4583 = vor.u32 1.1754944e-38, %v4582
      %v4584 = vsel %vm4581, %v4583, %v4579
      %v4585 = vmul.f32 1.0, %v4584
      %v4586 = vrcp.pop %v4232
      %v4587 = vmul.f32 %v4232, %v4586
      %v4588 = vsub.f32 1.0, %v4587
      %v4589 = vmul.f32 %v4586, %v4588
      %v4590 = vadd.f32 %v4586, %v4589
      %vm4591 = vweird.f32 %v4232
      %vm4592 = vweird.f32 %v4586
      %vm4593 = vmor %vm4591, %vm4592
      %v4594 = vsel %vm4593, %v4586, %v4590
      %v4595 = vand.u32 2147483647, %v4232
      %vm4596 = vcmp.eq.f32.partialorder %v4595, 8.507059e+37
      %v4597 = vand.u32 %v4232, 2147483648
      %v4598 = vor.u32 1.1754944e-38, %v4597
      %v4599 = vsel %vm4596, %v4598, %v4594
      %v4600 = vmul.f32 1.0, %v4599
      %v4601 = vrcp.pop %v4233
      %v4602 = vmul.f32 %v4233, %v4601
      %v4603 = vsub.f32 1.0, %v4602
      %v4604 = vmul.f32 %v4601, %v4603
      %v4605 = vadd.f32 %v4601, %v4604
      %vm4606 = vweird.f32 %v4233
      %vm4607 = vweird.f32 %v4601
      %vm4608 = vmor %vm4606, %vm4607
      %v4609 = vsel %vm4608, %v4601, %v4605
      %v4610 = vand.u32 2147483647, %v4233
      %vm4611 = vcmp.eq.f32.partialorder %v4610, 8.507059e+37
      %v4612 = vand.u32 %v4233, 2147483648
      %v4613 = vor.u32 1.1754944e-38, %v4612
      %v4614 = vsel %vm4611, %v4613, %v4609
      %v4615 = vmul.f32 1.0, %v4614
      %v4616 = vrcp.pop %v4234
      %v4617 = vmul.f32 %v4234, %v4616
      %v4618 = vsub.f32 1.0, %v4617
      %v4619 = vmul.f32 %v4616, %v4618
      %v4620 = vadd.f32 %v4616, %v4619
      %vm4621 = vweird.f32 %v4234
      %vm4622 = vweird.f32 %v4616
      %vm4623 = vmor %vm4621, %vm4622
      %v4624 = vsel %vm4623, %v4616, %v4620
      %v4625 = vand.u32 2147483647, %v4234
      %vm4626 = vcmp.eq.f32.partialorder %v4625, 8.507059e+37
      %v4627 = vand.u32 %v4234, 2147483648
      %v4628 = vor.u32 1.1754944e-38, %v4627
      %v4629 = vsel %vm4626, %v4628, %v4624
      %v4630 = vmul.f32 1.0, %v4629
      %v4631 = vrcp.pop %v4235
      %v4632 = vmul.f32 %v4235, %v4631
      %v4633 = vsub.f32 1.0, %v4632
      %v4634 = vmul.f32 %v4631, %v4633
      %v4635 = vadd.f32 %v4631, %v4634
      %vm4636 = vweird.f32 %v4235
      %vm4637 = vweird.f32 %v4631
      %vm4638 = vmor %vm4636, %vm4637
      %v4639 = vsel %vm4638, %v4631, %v4635
      %v4640 = vand.u32 2147483647, %v4235
      %vm4641 = vcmp.eq.f32.partialorder %v4640, 8.507059e+37
      %v4642 = vand.u32 %v4235, 2147483648
      %v4643 = vor.u32 1.1754944e-38, %v4642
      %v4644 = vsel %vm4641, %v4643, %v4639
      %v4645 = vmul.f32 1.0, %v4644
      %v4646 = vrcp.pop %v4236
      %v4647 = vmul.f32 %v4236, %v4646
      %v4648 = vsub.f32 1.0, %v4647
      %v4649 = vmul.f32 %v4646, %v4648
      %v4650 = vadd.f32 %v4646, %v4649
      %vm4651 = vweird.f32 %v4236
      %vm4652 = vweird.f32 %v4646
      %vm4653 = vmor %vm4651, %vm4652
      %v4654 = vsel %vm4653, %v4646, %v4650
      %v4655 = vand.u32 2147483647, %v4236
      %vm4656 = vcmp.eq.f32.partialorder %v4655, 8.507059e+37
      %v4657 = vand.u32 %v4236, 2147483648
      %v4658 = vor.u32 1.1754944e-38, %v4657
      %v4659 = vsel %vm4656, %v4658, %v4654
      %v4660 = vmul.f32 1.0, %v4659
      %v4661 = vrcp.pop %v4237
      %v4662 = vmul.f32 %v4237, %v4661
      %v4663 = vsub.f32 1.0, %v4662
      %v4664 = vmul.f32 %v4661, %v4663
      %v4665 = vadd.f32 %v4661, %v4664
      %vm4666 = vweird.f32 %v4237
      %vm4667 = vweird.f32 %v4661
      %vm4668 = vmor %vm4666, %vm4667
      %v4669 = vsel %vm4668, %v4661, %v4665
      %v4670 = vand.u32 2147483647, %v4237
      %vm4671 = vcmp.eq.f32.partialorder %v4670, 8.507059e+37
      %v4672 = vand.u32 %v4237, 2147483648
      %v4673 = vor.u32 1.1754944e-38, %v4672
      %v4674 = vsel %vm4671, %v4673, %v4669
      %v4675 = vmul.f32 1.0, %v4674
      %v4676 = vrcp.pop %v4238
      %v4677 = vmul.f32 %v4238, %v4676
      %v4678 = vsub.f32 1.0, %v4677
      %v4679 = vmul.f32 %v4676, %v4678
      %v4680 = vadd.f32 %v4676, %v4679
      %vm4681 = vweird.f32 %v4238
      %vm4682 = vweird.f32 %v4676
      %vm4683 = vmor %vm4681, %vm4682
      %v4684 = vsel %vm4683, %v4676, %v4680
      %v4685 = vand.u32 2147483647, %v4238
      %vm4686 = vcmp.eq.f32.partialorder %v4685, 8.507059e+37
      %v4687 = vand.u32 %v4238, 2147483648
      %v4688 = vor.u32 1.1754944e-38, %v4687
      %v4689 = vsel %vm4686, %v4688, %v4684
      %v4690 = vmul.f32 1.0, %v4689
      %v4691 = vrcp.pop %v4239
      %v4692 = vmul.f32 %v4239, %v4691
      %v4693 = vsub.f32 1.0, %v4692
      %v4694 = vmul.f32 %v4691, %v4693
      %v4695 = vadd.f32 %v4691, %v4694
      %vm4696 = vweird.f32 %v4239
      %vm4697 = vweird.f32 %v4691
      %vm4698 = vmor %vm4696, %vm4697
      %v4699 = vsel %vm4698, %v4691, %v4695
      %v4700 = vand.u32 2147483647, %v4239
      %vm4701 = vcmp.eq.f32.partialorder %v4700, 8.507059e+37
      %v4702 = vand.u32 %v4239, 2147483648
      %v4703 = vor.u32 1.1754944e-38, %v4702
      %v4704 = vsel %vm4701, %v4703, %v4699
      %v4705 = vmul.f32 1.0, %v4704
      %v4706 = vrcp.pop %v4240
      %v4707 = vmul.f32 %v4240, %v4706
      %v4708 = vsub.f32 1.0, %v4707
      %v4709 = vmul.f32 %v4706, %v4708
      %v4710 = vadd.f32 %v4706, %v4709
      %vm4711 = vweird.f32 %v4240
      %vm4712 = vweird.f32 %v4706
      %vm4713 = vmor %vm4711, %vm4712
      %v4714 = vsel %vm4713, %v4706, %v4710
      %v4715 = vand.u32 2147483647, %v4240
      %vm4716 = vcmp.eq.f32.partialorder %v4715, 8.507059e+37
      %v4717 = vand.u32 %v4240, 2147483648
      %v4718 = vor.u32 1.1754944e-38, %v4717
      %v4719 = vsel %vm4716, %v4718, %v4714
      %v4720 = vmul.f32 1.0, %v4719
      %v4721 = vmul.f32 %v4114, %v4254
      %v4722 = vmul.f32 %v4116, %v4269
      %v4723 = vmul.f32 %v4118, %v4284
      %v4724 = vmul.f32 %v4120, %v4299
      %v4725 = vmul.f32 %v4122, %v4314
      %v4726 = vmul.f32 %v4124, %v4329
      %v4727 = vmul.f32 %v4126, %v4344
      %v4728 = vmul.f32 %v4128, %v4359
      %v4729 = vmul.f32 %v4130, %v4374
      %v4730 = vmul.f32 %v4132, %v4389
      %v4731 = vmul.f32 %v4134, %v4404
      %v4732 = vmul.f32 %v4136, %v4419
      %v4733 = vmul.f32 %v4138, %v4434
      %v4734 = vmul.f32 %v4140, %v4449
      %v4735 = vmul.f32 %v4142, %v4464
      %v4736 = vmul.f32 %v4144, %v4479
      %v4737 = vmul.f32 %v4146, %v4494
      %v4738 = vmul.f32 %v4148, %v4509
      %v4739 = vmul.f32 %v4150, %v4524
      %v4740 = vmul.f32 %v4152, %v4539
      %v4741 = vmul.f32 %v4154, %v4554
      %v4742 = vmul.f32 %v4156, %v4569
      %v4743 = vmul.f32 %v4158, %v4584
      %v4744 = vmul.f32 %v4160, %v4599
      %v4745 = vmul.f32 %v4162, %v4614
      %v4746 = vmul.f32 %v4164, %v4629
      %v4747 = vmul.f32 %v4166, %v4644
      %v4748 = vmul.f32 %v4168, %v4659
      %v4749 = vmul.f32 %v4170, %v4674
      %v4750 = vmul.f32 %v4172, %v4689
      %v4751 = vmul.f32 %v4174, %v4704
      %v4752 = vmul.f32 %v4176, %v4719
      %v4753 = vsel %vm4177, %v4255, %v4721
      %v4754 = vsel %vm4178, %v4270, %v4722
      %v4755 = vsel %vm4179, %v4285, %v4723
      %v4756 = vsel %vm4180, %v4300, %v4724
      %v4757 = vsel %vm4181, %v4315, %v4725
      %v4758 = vsel %vm4182, %v4330, %v4726
      %v4759 = vsel %vm4183, %v4345, %v4727
      %v4760 = vsel %vm4184, %v4360, %v4728
      %v4761 = vsel %vm4185, %v4375, %v4729
      %v4762 = vsel %vm4186, %v4390, %v4730
      %v4763 = vsel %vm4187, %v4405, %v4731
      %v4764 = vsel %vm4188, %v4420, %v4732
      %v4765 = vsel %vm4189, %v4435, %v4733
      %v4766 = vsel %vm4190, %v4450, %v4734
      %v4767 = vsel %vm4191, %v4465, %v4735
      %v4768 = vsel %vm4192, %v4480, %v4736
      %v4769 = vsel %vm4193, %v4495, %v4737
      %v4770 = vsel %vm4194, %v4510, %v4738
      %v4771 = vsel %vm4195, %v4525, %v4739
      %v4772 = vsel %vm4196, %v4540, %v4740
      %v4773 = vsel %vm4197, %v4555, %v4741
      %v4774 = vsel %vm4198, %v4570, %v4742
      %v4775 = vsel %vm4199, %v4585, %v4743
      %v4776 = vsel %vm4200, %v4600, %v4744
      %v4777 = vsel %vm4201, %v4615, %v4745
      %v4778 = vsel %vm4202, %v4630, %v4746
      %v4779 = vsel %vm4203, %v4645, %v4747
      %v4780 = vsel %vm4204, %v4660, %v4748
      %v4781 = vsel %vm4205, %v4675, %v4749
      %v4782 = vsel %vm4206, %v4690, %v4750
      %v4783 = vsel %vm4207, %v4705, %v4751
      %v4784 = vsel %vm4208, %v4720, %v4752
      %vm4785 = vcmask 31744
      %4786 = vst.msk [vmem:[%s224] sm:$0xff] %vm4785, %v4753
      %4787 = vst.msk [vmem:[%s224 + $0x8] sm:$0xff] %vm4785, %v4754
      %4788 = vst.msk [vmem:[%s224 + $0x10] sm:$0xff] %vm4785, %v4755
      %4789 = vst.msk [vmem:[%s224 + $0x18] sm:$0xff] %vm4785, %v4756
      %4790 = vst.msk [vmem:[%s224 + $0x20] sm:$0xff] %vm4785, %v4757
      %4791 = vst.msk [vmem:[%s224 + $0x28] sm:$0xff] %vm4785, %v4758
      %4792 = vst.msk [vmem:[%s224 + $0x30] sm:$0xff] %vm4785, %v4759
      %4793 = vst.msk [vmem:[%s224 + $0x38] sm:$0xff] %vm4785, %v4760
      %4794 = vst.msk [vmem:[%s224 + $0x40] sm:$0xff] %vm4785, %v4761
      %4795 = vst.msk [vmem:[%s224 + $0x48] sm:$0xff] %vm4785, %v4762
      %4796 = vst.msk [vmem:[%s224 + $0x50] sm:$0xff] %vm4785, %v4763
      %4797 = vst.msk [vmem:[%s224 + $0x58] sm:$0xff] %vm4785, %v4764
      %4798 = vst.msk [vmem:[%s224 + $0x60] sm:$0xff] %vm4785, %v4765
      %4799 = vst.msk [vmem:[%s224 + $0x68] sm:$0xff] %vm4785, %v4766
      %4800 = vst.msk [vmem:[%s224 + $0x70] sm:$0xff] %vm4785, %v4767
      %4801 = vst.msk [vmem:[%s224 + $0x78] sm:$0xff] %vm4785, %v4768
      %4802 = vst.msk [vmem:[%s224 + $0x80] sm:$0xff] %vm4785, %v4769
      %4803 = vst.msk [vmem:[%s224 + $0x88] sm:$0xff] %vm4785, %v4770
      %4804 = vst.msk [vmem:[%s224 + $0x90] sm:$0xff] %vm4785, %v4771
      %4805 = vst.msk [vmem:[%s224 + $0x98] sm:$0xff] %vm4785, %v4772
      %4806 = vst.msk [vmem:[%s224 + $0xa0] sm:$0xff] %vm4785, %v4773
      %4807 = vst.msk [vmem:[%s224 + $0xa8] sm:$0xff] %vm4785, %v4774
      %4808 = vst.msk [vmem:[%s224 + $0xb0] sm:$0xff] %vm4785, %v4775
      %4809 = vst.msk [vmem:[%s224 + $0xb8] sm:$0xff] %vm4785, %v4776
      %4810 = vst.msk [vmem:[%s224 + $0xc0] sm:$0xff] %vm4785, %v4777
      %4811 = vst.msk [vmem:[%s224 + $0xc8] sm:$0xff] %vm4785, %v4778
      %4812 = vst.msk [vmem:[%s224 + $0xd0] sm:$0xff] %vm4785, %v4779
      %4813 = vst.msk [vmem:[%s224 + $0xd8] sm:$0xff] %vm4785, %v4780
      %4814 = vst.msk [vmem:[%s224 + $0xe0] sm:$0xff] %vm4785, %v4781
      %4815 = vst.msk [vmem:[%s224 + $0xe8] sm:$0xff] %vm4785, %v4782
      %4816 = vst.msk [vmem:[%s224 + $0xf0] sm:$0xff] %vm4785, %v4783
      %4817 = vst.msk [vmem:[%s224 + $0xf8] sm:$0xff] %vm4785, %v4784
      %s4818 = smul.u32 32, %s15
      %p4819 = scmp.lt.s32.totalorder %s4818, 63
      %s4820 = scalar_select %p4819, %s4818, 63
      %s4821 = smul.addr %s4820, 8
      %s4822 = scalar_lea.vmem %s4, %s4821
      // Predicated region
      $region37: #{forward.1} parent=35 // pred_check
        %p4823 = pneg %p127
      $region38: #{forward.1} parent=35 // pred_check_branch
        %4825 = sbr.rel (%p4823) target = $region40
      $region39: #{forward.1} parent=35 // pred_region
        %s4826 = smul.u32 32, %s15
      $region40: #{forward.1} parent=35 // pred_fallthru
        _
    $region36: #{forward.1} parent=5 // pred_fallthru
      _
    %p4827 = scmp.le.s32.totalorder 2, %s10
    // Predicated region
    $region41: #{forward.1} parent=5 // pred_check
      %p4828 = pneg %p4827
    $region42: #{forward.1} parent=5 // pred_check_branch
      %4830 = sbr.rel (%p4828) target = $region44
    $region43: #{forward.1} parent=5 // pred_region
      %s4831 = ssub.s32 %s10, 2
      // Predicated region
      $region45: #{forward.1} parent=43 // pred_check
        %p4832 = pneg %p133
      $region46: #{forward.1} parent=43 // pred_check_branch
        %4834 = sbr.rel (%p4832) target = $region48
      $region47: #{forward.1} parent=43 // pred_region
        %s4835 = smul.u32 32, %s16
        %p4836 = scmp.lt.s32.totalorder %s4835, 63
        %s4837 = scalar_select %p4836, %s4835, 63
        %s4838 = smul.addr %s4837, 8
        %s4839 = scalar_lea.vmem %s4, %s4838
      $region48: #{forward.1} parent=43 // pred_fallthru
        _
    $region44: #{forward.1} parent=5 // pred_fallthru
      _
  $region6: #{forward.1} parent=0 // loop_footer
    %s14 = sadd.s32 1, %s10
  $region7: #{forward.1} parent=0 // loop_footer_branch
    %9 = sbr.rel target = $region3
  $region8: #{forward.1} parent=0 // loop_exit
    _

</llo_original>
